<compile_context>
chip_gen: v6e
topology: v6e:2x2x1
jax: 0.10.0
libtpu: 0.0.40
codegen_flags: <defaults>
</compile_context>

<pallas_src>
import jax
import jax.numpy as jnp
from jax.experimental import pallas as pl
from jax.experimental.pallas import tpu as pltpu


_PARALLEL2 = pltpu.CompilerParams(dimension_semantics=("parallel", "parallel"))


# ---------------------------------------------------------------------------
# Pallas kernels (one output row of one image per grid step)
# ---------------------------------------------------------------------------
def _acc_taps_s2(w_ref, rows, wo):
    """3x3 / stride-2 conv taps -> f32 accumulator.

    w_ref: (9, Cout, Cin) bf16, tap index = kh*3 + kw.
    rows:  (e0, o0, e1, o1, e2, o2) refs of shape (Cin, Wo+1);
           e_kh / o_kh = even / odd padded columns of padded input row 2*i+kh.
    """
    acc = None
    for kh in range(3):
        e = rows[2 * kh][...]
        o = rows[2 * kh + 1][...]
        taps = (e[:, 0:wo], o[:, 0:wo], e[:, 1:wo + 1])      # kw = 0, 1, 2
        for kw in range(3):
            part = jnp.dot(w_ref[kh * 3 + kw], taps[kw],
                           preferred_element_type=jnp.float32)
            acc = part if acc is None else acc + part
    return acc


def _conv3x3s2_kernel(w_ref, s_ref, b_ref, e0, o0, e1, o1, e2, o2, o_ref):
    # 3x3 / stride-2 / pad-1 conv + folded BN + ReLU (one output row).
    wo = o_ref.shape[-1]
    acc = _acc_taps_s2(w_ref, (e0, o0, e1, o1, e2, o2), wo)
    o_ref[...] = jnp.maximum(acc * s_ref[...] + b_ref[...], 0.0).astype(o_ref.dtype)


def _conv1_branch_kernel(w1_ref, s1_ref, b1_ref, w2_ref, s2_ref, b2_ref,
                         e0, o0, e1, o1, e2, o2, net_ref, br_ref):
    # conv1 (3x3/s2 + BN + ReLU) with branch1's 1x1 conv + BN + ReLU fused on
    # the VMEM-resident row (no HBM round-trip of the conv1 activation).
    wo = net_ref.shape[-1]
    acc = _acc_taps_s2(w1_ref, (e0, o0, e1, o1, e2, o2), wo)
    net = jnp.maximum(acc * s1_ref[...] + b1_ref[...], 0.0)
    net_bf = net.astype(jnp.bfloat16)                 # cast once: store + dot
    net_ref[...] = net_bf
    acc2 = jnp.dot(w2_ref[...], net_bf, preferred_element_type=jnp.float32)
    br_ref[...] = jnp.maximum(acc2 * s2_ref[...] + b2_ref[...],
                              0.0).astype(br_ref.dtype)


def _maxpool3x3s2_kernel(e0, o0, e1, o1, e2, o2, o_ref):
    # 3x3 / stride-2 / pad-1 max pool: running VPU max over the 9 taps.
    wo = o_ref.shape[-1]
    rows = (e0, o0, e1, o1, e2, o2)
    res = None
    for kh in range(3):
        e = rows[2 * kh][...]
        o = rows[2 * kh + 1][...]
        for tap in (e[:, 0:wo], o[:, 0:wo], e[:, 1:wo + 1]):
            res = tap if res is None else jnp.maximum(res, tap)
    o_ref[...] = res


def _fusion3x3s1_kernel(wa_ref, wb_ref, s_ref, b_ref,
                        a0, a1, a2, c0, c1, c2, o_ref):
    # 3x3 / stride-1 / pad-1 conv over the *virtual* concat [branch1, branch2]:
    # two accumulating dots per tap, so the concat never touches HBM.
    wo = o_ref.shape[-1]
    acc = None
    for kh in range(3):
        a = (a0, a1, a2)[kh][...]
        c = (c0, c1, c2)[kh][...]
        for kw in range(3):
            t = kh * 3 + kw
            part = jnp.dot(wa_ref[t], a[:, kw:kw + wo],
                           preferred_element_type=jnp.float32)
            part = part + jnp.dot(wb_ref[t], c[:, kw:kw + wo],
                                  preferred_element_type=jnp.float32)
            acc = part if acc is None else acc + part
    o_ref[...] = jnp.maximum(acc * s_ref[...] + b_ref[...], 0.0).astype(o_ref.dtype)


# ---------------------------------------------------------------------------
# Glue: BN folding, weight/tap layout, BlockSpec helpers
# ---------------------------------------------------------------------------
def _fold_bn(conv_b, gamma, beta, mean, var, eps):
    scale = gamma * jax.lax.rsqrt(var + eps)
    bias = (conv_b - mean) * scale + beta
    c = scale.shape[0]
    return (scale.astype(jnp.float32).reshape(c, 1),
            bias.astype(jnp.float32).reshape(c, 1))


def _w_taps(w):
    """(Cout, Cin, 3, 3) -> (9, Cout, Cin) bf16, tap index = kh*3 + kw."""
    co, ci, kh, kw = w.shape
    return jnp.transpose(w, (2, 3, 0, 1)).reshape(kh * kw, co, ci).astype(jnp.bfloat16)


def _pad_split_even_odd(x_nhcw, pad_val=0.0):
    """Pad H/W by 1 and split the lane (W) axis into even/odd columns.

    Returns (xe, xo), each (N, H+2, C, W//2+1): together exactly one padded
    copy of the activation (vs. the 9x im2col patch matrix this replaces).
    The parity split turns the stride-2 column taps into contiguous lane
    slices inside the kernel.
    """
    xp = jnp.pad(x_nhcw, ((0, 0), (1, 1), (0, 0), (1, 1)),
                 constant_values=pad_val)
    return xp[..., 0::2], xp[..., 1::2]


def _resident(shape):
    # Operand kept resident in VMEM for all grid steps (weights, BN scale/bias).
    return pl.BlockSpec(shape, lambda n, i, _s=len(shape): (0,) * _s)


def _s2_row_specs(c, wsplit):
    """Six row BlockSpecs (even/odd columns for kh = 0, 1, 2).

    The padded-row axis has block size 1, so index_map returns the element row
    2*i + kh directly -- the 3x3/s2 row taps come straight from HBM with no
    patch expansion (consecutive steps merely re-read one shared row).
    """
    specs = []
    for kh in range(3):
        imap = lambda n, i, kh=kh: (n, 2 * i + kh, 0, 0)
        specs.append(pl.BlockSpec((None, None, c, wsplit), imap))   # even cols
        specs.append(pl.BlockSpec((None, None, c, wsplit), imap))   # odd  cols
    return specs


# ---------------------------------------------------------------------------
# Layer wrappers (activations kept in (N, H, C, W) layout: W on lanes)
# ---------------------------------------------------------------------------
def conv1_with_branch(x_nhcw, p1, p2, *, eps=1e-5):
    """conv1 (3x3/s2 + BN + ReLU) with branch1's 1x1 conv fused in the epilogue."""
    w1, cb1, g1, bt1, m1, v1 = p1
    w2, cb2, g2, bt2, m2, v2 = p2
    c1, cin = w1.shape[0], w1.shape[1]
    c2 = w2.shape[0]
    n, h, c, wd = x_nhcw.shape
    assert c == cin and h % 2 == 0 and wd % 2 == 0
    ho, wo = h // 2, wd // 2
    xe, xo = _pad_split_even_odd(x_nhcw.astype(jnp.bfloat16))
    wsplit = xe.shape[-1]
    w1t = _w_taps(w1)
    w2m = w2.reshape(c2, c1).astype(jnp.bfloat16)
    s1, b1 = _fold_bn(cb1, g1, bt1, m1, v1, eps)
    s2, b2 = _fold_bn(cb2, g2, bt2, m2, v2, eps)
    net, br = pl.pallas_call(
        _conv1_branch_kernel,
        out_shape=(jax.ShapeDtypeStruct((n, ho, c1, wo), jnp.bfloat16),
                   # c2 = out_ch//2 = 8 rows exactly fill an f32 (8,128) tile.
                   jax.ShapeDtypeStruct((n, ho, c2, wo), jnp.float32)),
        grid=(n, ho),
        in_specs=[_resident((9, c1, cin)), _resident((c1, 1)), _resident((c1, 1)),
                  _resident((c2, c1)), _resident((c2, 1)), _resident((c2, 1)),
                  *_s2_row_specs(cin, wsplit)],
        out_specs=(pl.BlockSpec((None, None, c1, wo), lambda n_, i: (n_, i, 0, 0)),
                   pl.BlockSpec((None, None, c2, wo), lambda n_, i: (n_, i, 0, 0))),
        compiler_params=_PARALLEL2,
    )(w1t, s1, b1, w2m, s2, b2, xe, xo, xe, xo, xe, xo)
    return net, br


def conv3x3_s2_bn_relu(x_nhcw, p, *, out_dtype=jnp.bfloat16, eps=1e-5):
    w, cb, g, bt, mu, var = p
    cout, cin = w.shape[0], w.shape[1]
    n, h, c, wd = x_nhcw.shape
    assert c == cin and h % 2 == 0 and wd % 2 == 0
    ho, wo = h // 2, wd // 2
    xe, xo = _pad_split_even_odd(x_nhcw.astype(jnp.bfloat16))
    wsplit = xe.shape[-1]
    wt = _w_taps(w)
    s, b = _fold_bn(cb, g, bt, mu, var, eps)
    return pl.pallas_call(
        _conv3x3s2_kernel,
        out_shape=jax.ShapeDtypeStruct((n, ho, cout, wo), out_dtype),
        grid=(n, ho),
        in_specs=[_resident((9, cout, cin)), _resident((cout, 1)),
                  _resident((cout, 1)), *_s2_row_specs(cin, wsplit)],
        out_specs=pl.BlockSpec((None, None, cout, wo), lambda n_, i: (n_, i, 0, 0)),
        compiler_params=_PARALLEL2,
    )(wt, s, b, xe, xo, xe, xo, xe, xo)


def maxpool3x3_s2(x_nhcw):
    n, h, c, wd = x_nhcw.shape
    assert h % 2 == 0 and wd % 2 == 0
    ho, wo = h // 2, wd // 2
    # Post-ReLU activations are >= 0, so zero padding is equivalent to the
    # implicit -inf padding of nn.MaxPool2d(3, 2, 1) here.
    xe, xo = _pad_split_even_odd(x_nhcw, pad_val=0.0)
    wsplit = xe.shape[-1]
    return pl.pallas_call(
        _maxpool3x3s2_kernel,
        out_shape=jax.ShapeDtypeStruct((n, ho, c, wo), x_nhcw.dtype),
        grid=(n, ho),
        in_specs=list(_s2_row_specs(c, wsplit)),
        out_specs=pl.BlockSpec((None, None, c, wo), lambda n_, i: (n_, i, 0, 0)),
        compiler_params=_PARALLEL2,
    )(xe, xo, xe, xo, xe, xo)


def fusion3x3_s1_bn_relu(b1_nhcw, b2_nhcw, p, *, eps=1e-5, out_dtype=jnp.float32):
    w, cb, g, bt, mu, var = p
    cout = w.shape[0]
    n, h, c, wd = b1_nhcw.shape
    assert b2_nhcw.shape == b1_nhcw.shape and w.shape[1] == 2 * c
    wa = _w_taps(w[:, :c])            # weight half applied to branch1
    wb = _w_taps(w[:, c:])            # weight half applied to branch2 (pool)
    s, b = _fold_bn(cb, g, bt, mu, var, eps)
    ap = jnp.pad(b1_nhcw.astype(jnp.bfloat16), ((0, 0), (1, 1), (0, 0), (1, 1)))
    cp = jnp.pad(b2_nhcw.astype(jnp.bfloat16), ((0, 0), (1, 1), (0, 0), (1, 1)))
    wpad = wd + 2

    def row_spec(kh):
        return pl.BlockSpec((None, None, c, wpad),
                            lambda n_, i, kh=kh: (n_, i + kh, 0, 0))

    row_specs = [row_spec(kh) for kh in range(3)]
    return pl.pallas_call(
        _fusion3x3s1_kernel,
        out_shape=jax.ShapeDtypeStruct((n, h, cout, wd), out_dtype),
        grid=(n, h),
        in_specs=[_resident((9, cout, c)), _resident((9, cout, c)),
                  _resident((cout, 1)), _resident((cout, 1)),
                  *row_specs, *row_specs],
        out_specs=pl.BlockSpec((None, None, cout, wd), lambda n_, i: (n_, i, 0, 0)),
        compiler_params=_PARALLEL2,
    )(wa, wb, s, b, ap, ap, ap, cp, cp, cp)


# ---------------------------------------------------------------------------
# StemBlock forward (NCHW in / NCHW out, like the PyTorch module)
# ---------------------------------------------------------------------------
def stem_block(x_nchw, params):
    x = jnp.transpose(x_nchw, (0, 2, 1, 3))           # NCHW -> (N, H, C, W)
    net, br = conv1_with_branch(x, params["conv1"], params["branch1_0"])
    b1 = conv3x3_s2_bn_relu(br, params["branch1_1"])  # (N, H/4, C, W/4)
    b2 = maxpool3x3_s2(net)                           # (N, H/4, C, W/4)
    out = fusion3x3_s1_bn_relu(b1, b2, params["fusion"], out_dtype=jnp.float32)
    return jnp.transpose(out, (0, 2, 1, 3))           # (N, H, C, W) -> NCHW


# ---------------------------------------------------------------------------
# Deterministic parameter construction
# ---------------------------------------------------------------------------
def _make_conv_bn(key, cin, cout, k):
    kw_, kb_, kg, kbt, km, kv = jax.random.split(key, 6)
    w = 0.1 * jax.random.normal(kw_, (cout, cin, k, k), jnp.float32)
    b = 0.05 * jax.random.normal(kb_, (cout,), jnp.float32)
    gamma = 1.0 + 0.1 * jax.random.normal(kg, (cout,), jnp.float32)
    beta = 0.1 * jax.random.normal(kbt, (cout,), jnp.float32)
    mean = 0.1 * jax.random.normal(km, (cout,), jnp.float32)
    var = jax.random.uniform(kv, (cout,), jnp.float32, 0.5, 1.5)
    return (w, b, gamma, beta, mean, var)


def make_params(key, in_ch, out_ch):
    k1, k2, k3, k4 = jax.random.split(key, 4)
    return {
        "conv1":     _make_conv_bn(k1, in_ch, out_ch, 3),
        "branch1_0": _make_conv_bn(k2, out_ch, out_ch // 2, 1),
        "branch1_1": _make_conv_bn(k3, out_ch // 2, out_ch, 3),
        "fusion":    _make_conv_bn(k4, out_ch * 2, out_ch, 3),
    }


if __name__ == "__main__":
    key = jax.random.PRNGKey(0)
    kx, kp = jax.random.split(key)
    N, IN_CH, OUT_CH, H, W = 2, 4, 16, 16, 16
    x = jax.random.normal(kx, (N, IN_CH, H, W), jnp.float32)   # NCHW, like PyTorch
    params = make_params(kp, IN_CH, OUT_CH)

    out = jax.jit(stem_block)(x, params)
    out = jax.block_until_ready(out)
    assert out.shape == (N, OUT_CH, H // 4, W // 4), out.shape
    assert bool(jnp.all(out >= 0.0))   # final ReLU
    print("KERNEL_OK")
</pallas_src>

<mosaic_0001>
module attributes {stable_mosaic.version = 11 : i64} {
  func.func @_conv1_branch_kernel(%arg0: i32, %arg1: i32, %arg2: memref<9x16x4xbf16, #tpu.memory_space<vmem>>, %arg3: memref<16x1xf32, #tpu.memory_space<vmem>>, %arg4: memref<16x1xf32, #tpu.memory_space<vmem>>, %arg5: memref<8x16xbf16, #tpu.memory_space<vmem>>, %arg6: memref<8x1xf32, #tpu.memory_space<vmem>>, %arg7: memref<8x1xf32, #tpu.memory_space<vmem>>, %arg8: memref<1x1x4x9xbf16, #tpu.memory_space<vmem>>, %arg9: memref<1x1x4x9xbf16, #tpu.memory_space<vmem>>, %arg10: memref<1x1x4x9xbf16, #tpu.memory_space<vmem>>, %arg11: memref<1x1x4x9xbf16, #tpu.memory_space<vmem>>, %arg12: memref<1x1x4x9xbf16, #tpu.memory_space<vmem>>, %arg13: memref<1x1x4x9xbf16, #tpu.memory_space<vmem>>, %arg14: memref<1x1x16x8xbf16, #tpu.memory_space<vmem>>, %arg15: memref<1x1x8x8xf32, #tpu.memory_space<vmem>>) attributes {dimension_semantics = [#tpu.dimension_semantics<parallel>, #tpu.dimension_semantics<parallel>], iteration_bounds = array<i64: 2, 8>, scalar_prefetch = 0 : i64, scratch_operands = 0 : i64, tpu.core_type = #tpu.core_type<tc>, window_params = [{pipeline_mode = #tpu.pipeline_mode<synchronous>, transform_indices = @transform_0, window_bounds = array<i64: 9, 16, 4>}, {pipeline_mode = #tpu.pipeline_mode<synchronous>, transform_indices = @transform_1, window_bounds = array<i64: 16, 1>}, {pipeline_mode = #tpu.pipeline_mode<synchronous>, transform_indices = @transform_2, window_bounds = array<i64: 16, 1>}, {pipeline_mode = #tpu.pipeline_mode<synchronous>, transform_indices = @transform_3, window_bounds = array<i64: 8, 16>}, {pipeline_mode = #tpu.pipeline_mode<synchronous>, transform_indices = @transform_4, window_bounds = array<i64: 8, 1>}, {pipeline_mode = #tpu.pipeline_mode<synchronous>, transform_indices = @transform_5, window_bounds = array<i64: 8, 1>}, {transform_indices = @transform_6, window_bounds = array<i64: 1, 1, 4, 9>}, {transform_indices = @transform_7, window_bounds = array<i64: 1, 1, 4, 9>}, {transform_indices = @transform_8, window_bounds = array<i64: 1, 1, 4, 9>}, {transform_indices = @transform_9, window_bounds = array<i64: 1, 1, 4, 9>}, {transform_indices = @transform_10, window_bounds = array<i64: 1, 1, 4, 9>}, {transform_indices = @transform_11, window_bounds = array<i64: 1, 1, 4, 9>}, {transform_indices = @transform_12, window_bounds = array<i64: 1, 1, 16, 8>}, {transform_indices = @transform_13, window_bounds = array<i64: 1, 1, 8, 8>}]} {
    %c0 = arith.constant 0 : index
    %c0_0 = arith.constant 0 : index
    %c0_1 = arith.constant 0 : index
    %c0_2 = arith.constant 0 : index
    %0 = vector.load %arg8[%c0, %c0_0, %c0_1, %c0_2] : memref<1x1x4x9xbf16, #tpu.memory_space<vmem>>, vector<1x1x4x9xbf16>
    %1 = vector.shape_cast %0 : vector<1x1x4x9xbf16> to vector<4x9xbf16>
    %c0_3 = arith.constant 0 : index
    %c0_4 = arith.constant 0 : index
    %c0_5 = arith.constant 0 : index
    %c0_6 = arith.constant 0 : index
    %2 = vector.load %arg9[%c0_3, %c0_4, %c0_5, %c0_6] : memref<1x1x4x9xbf16, #tpu.memory_space<vmem>>, vector<1x1x4x9xbf16>
    %3 = vector.shape_cast %2 : vector<1x1x4x9xbf16> to vector<4x9xbf16>
    %4 = vector.extract_strided_slice %1 {offsets = [0, 0], sizes = [4, 8], strides = [1, 1]} : vector<4x9xbf16> to vector<4x8xbf16>
    %5 = vector.extract_strided_slice %3 {offsets = [0, 0], sizes = [4, 8], strides = [1, 1]} : vector<4x9xbf16> to vector<4x8xbf16>
    %6 = vector.extract_strided_slice %1 {offsets = [0, 1], sizes = [4, 8], strides = [1, 1]} : vector<4x9xbf16> to vector<4x8xbf16>
    %c0_7 = arith.constant 0 : index
    %c0_8 = arith.constant 0 : index
    %c0_9 = arith.constant 0 : index
    %7 = vector.load %arg2[%c0_7, %c0_8, %c0_9] : memref<9x16x4xbf16, #tpu.memory_space<vmem>>, vector<1x16x4xbf16>
    %8 = vector.shape_cast %7 : vector<1x16x4xbf16> to vector<16x4xbf16>
    %cst = arith.constant dense<0.000000e+00> : vector<16x8xf32>
    %9 = tpu.matmul %8, %4, %cst {dimension_numbers = #tpu.dot_dimension_numbers<[1], [0], [0], [1], [0, 0, 1, 1], [], []>} : vector<16x4xbf16>, vector<4x8xbf16>, vector<16x8xf32> -> vector<16x8xf32>
    %c1 = arith.constant 1 : index
    %c0_10 = arith.constant 0 : index
    %c0_11 = arith.constant 0 : index
    %10 = vector.load %arg2[%c1, %c0_10, %c0_11] : memref<9x16x4xbf16, #tpu.memory_space<vmem>>, vector<1x16x4xbf16>
    %11 = vector.shape_cast %10 : vector<1x16x4xbf16> to vector<16x4xbf16>
    %cst_12 = arith.constant dense<0.000000e+00> : vector<16x8xf32>
    %12 = tpu.matmul %11, %5, %cst_12 {dimension_numbers = #tpu.dot_dimension_numbers<[1], [0], [0], [1], [0, 0, 1, 1], [], []>} : vector<16x4xbf16>, vector<4x8xbf16>, vector<16x8xf32> -> vector<16x8xf32>
    %13 = arith.addf %9, %12 : vector<16x8xf32>
    %c2 = arith.constant 2 : index
    %c0_13 = arith.constant 0 : index
    %c0_14 = arith.constant 0 : index
    %14 = vector.load %arg2[%c2, %c0_13, %c0_14] : memref<9x16x4xbf16, #tpu.memory_space<vmem>>, vector<1x16x4xbf16>
    %15 = vector.shape_cast %14 : vector<1x16x4xbf16> to vector<16x4xbf16>
    %cst_15 = arith.constant dense<0.000000e+00> : vector<16x8xf32>
    %16 = tpu.matmul %15, %6, %cst_15 {dimension_numbers = #tpu.dot_dimension_numbers<[1], [0], [0], [1], [0, 0, 1, 1], [], []>} : vector<16x4xbf16>, vector<4x8xbf16>, vector<16x8xf32> -> vector<16x8xf32>
    %17 = arith.addf %13, %16 : vector<16x8xf32>
    %c0_16 = arith.constant 0 : index
    %c0_17 = arith.constant 0 : index
    %c0_18 = arith.constant 0 : index
    %c0_19 = arith.constant 0 : index
    %18 = vector.load %arg10[%c0_16, %c0_17, %c0_18, %c0_19] : memref<1x1x4x9xbf16, #tpu.memory_space<vmem>>, vector<1x1x4x9xbf16>
    %19 = vector.shape_cast %18 : vector<1x1x4x9xbf16> to vector<4x9xbf16>
    %c0_20 = arith.constant 0 : index
    %c0_21 = arith.constant 0 : index
    %c0_22 = arith.constant 0 : index
    %c0_23 = arith.constant 0 : index
    %20 = vector.load %arg11[%c0_20, %c0_21, %c0_22, %c0_23] : memref<1x1x4x9xbf16, #tpu.memory_space<vmem>>, vector<1x1x4x9xbf16>
    %21 = vector.shape_cast %20 : vector<1x1x4x9xbf16> to vector<4x9xbf16>
    %22 = vector.extract_strided_slice %19 {offsets = [0, 0], sizes = [4, 8], strides = [1, 1]} : vector<4x9xbf16> to vector<4x8xbf16>
    %23 = vector.extract_strided_slice %21 {offsets = [0, 0], sizes = [4, 8], strides = [1, 1]} : vector<4x9xbf16> to vector<4x8xbf16>
    %24 = vector.extract_strided_slice %19 {offsets = [0, 1], sizes = [4, 8], strides = [1, 1]} : vector<4x9xbf16> to vector<4x8xbf16>
    %c3 = arith.constant 3 : index
    %c0_24 = arith.constant 0 : index
    %c0_25 = arith.constant 0 : index
    %25 = vector.load %arg2[%c3, %c0_24, %c0_25] : memref<9x16x4xbf16, #tpu.memory_space<vmem>>, vector<1x16x4xbf16>
    %26 = vector.shape_cast %25 : vector<1x16x4xbf16> to vector<16x4xbf16>
    %cst_26 = arith.constant dense<0.000000e+00> : vector<16x8xf32>
    %27 = tpu.matmul %26, %22, %cst_26 {dimension_numbers = #tpu.dot_dimension_numbers<[1], [0], [0], [1], [0, 0, 1, 1], [], []>} : vector<16x4xbf16>, vector<4x8xbf16>, vector<16x8xf32> -> vector<16x8xf32>
    %28 = arith.addf %17, %27 : vector<16x8xf32>
    %c4 = arith.constant 4 : index
    %c0_27 = arith.constant 0 : index
    %c0_28 = arith.constant 0 : index
    %29 = vector.load %arg2[%c4, %c0_27, %c0_28] : memref<9x16x4xbf16, #tpu.memory_space<vmem>>, vector<1x16x4xbf16>
    %30 = vector.shape_cast %29 : vector<1x16x4xbf16> to vector<16x4xbf16>
    %cst_29 = arith.constant dense<0.000000e+00> : vector<16x8xf32>
    %31 = tpu.matmul %30, %23, %cst_29 {dimension_numbers = #tpu.dot_dimension_numbers<[1], [0], [0], [1], [0, 0, 1, 1], [], []>} : vector<16x4xbf16>, vector<4x8xbf16>, vector<16x8xf32> -> vector<16x8xf32>
    %32 = arith.addf %28, %31 : vector<16x8xf32>
    %c5 = arith.constant 5 : index
    %c0_30 = arith.constant 0 : index
    %c0_31 = arith.constant 0 : index
    %33 = vector.load %arg2[%c5, %c0_30, %c0_31] : memref<9x16x4xbf16, #tpu.memory_space<vmem>>, vector<1x16x4xbf16>
    %34 = vector.shape_cast %33 : vector<1x16x4xbf16> to vector<16x4xbf16>
    %cst_32 = arith.constant dense<0.000000e+00> : vector<16x8xf32>
    %35 = tpu.matmul %34, %24, %cst_32 {dimension_numbers = #tpu.dot_dimension_numbers<[1], [0], [0], [1], [0, 0, 1, 1], [], []>} : vector<16x4xbf16>, vector<4x8xbf16>, vector<16x8xf32> -> vector<16x8xf32>
    %36 = arith.addf %32, %35 : vector<16x8xf32>
    %c0_33 = arith.constant 0 : index
    %c0_34 = arith.constant 0 : index
    %c0_35 = arith.constant 0 : index
    %c0_36 = arith.constant 0 : index
    %37 = vector.load %arg12[%c0_33, %c0_34, %c0_35, %c0_36] : memref<1x1x4x9xbf16, #tpu.memory_space<vmem>>, vector<1x1x4x9xbf16>
    %38 = vector.shape_cast %37 : vector<1x1x4x9xbf16> to vector<4x9xbf16>
    %c0_37 = arith.constant 0 : index
    %c0_38 = arith.constant 0 : index
    %c0_39 = arith.constant 0 : index
    %c0_40 = arith.constant 0 : index
    %39 = vector.load %arg13[%c0_37, %c0_38, %c0_39, %c0_40] : memref<1x1x4x9xbf16, #tpu.memory_space<vmem>>, vector<1x1x4x9xbf16>
    %40 = vector.shape_cast %39 : vector<1x1x4x9xbf16> to vector<4x9xbf16>
    %41 = vector.extract_strided_slice %38 {offsets = [0, 0], sizes = [4, 8], strides = [1, 1]} : vector<4x9xbf16> to vector<4x8xbf16>
    %42 = vector.extract_strided_slice %40 {offsets = [0, 0], sizes = [4, 8], strides = [1, 1]} : vector<4x9xbf16> to vector<4x8xbf16>
    %43 = vector.extract_strided_slice %38 {offsets = [0, 1], sizes = [4, 8], strides = [1, 1]} : vector<4x9xbf16> to vector<4x8xbf16>
    %c6 = arith.constant 6 : index
    %c0_41 = arith.constant 0 : index
    %c0_42 = arith.constant 0 : index
    %44 = vector.load %arg2[%c6, %c0_41, %c0_42] : memref<9x16x4xbf16, #tpu.memory_space<vmem>>, vector<1x16x4xbf16>
    %45 = vector.shape_cast %44 : vector<1x16x4xbf16> to vector<16x4xbf16>
    %cst_43 = arith.constant dense<0.000000e+00> : vector<16x8xf32>
    %46 = tpu.matmul %45, %41, %cst_43 {dimension_numbers = #tpu.dot_dimension_numbers<[1], [0], [0], [1], [0, 0, 1, 1], [], []>} : vector<16x4xbf16>, vector<4x8xbf16>, vector<16x8xf32> -> vector<16x8xf32>
    %47 = arith.addf %36, %46 : vector<16x8xf32>
    %c7 = arith.constant 7 : index
    %c0_44 = arith.constant 0 : index
    %c0_45 = arith.constant 0 : index
    %48 = vector.load %arg2[%c7, %c0_44, %c0_45] : memref<9x16x4xbf16, #tpu.memory_space<vmem>>, vector<1x16x4xbf16>
    %49 = vector.shape_cast %48 : vector<1x16x4xbf16> to vector<16x4xbf16>
    %cst_46 = arith.constant dense<0.000000e+00> : vector<16x8xf32>
    %50 = tpu.matmul %49, %42, %cst_46 {dimension_numbers = #tpu.dot_dimension_numbers<[1], [0], [0], [1], [0, 0, 1, 1], [], []>} : vector<16x4xbf16>, vector<4x8xbf16>, vector<16x8xf32> -> vector<16x8xf32>
    %51 = arith.addf %47, %50 : vector<16x8xf32>
    %c8 = arith.constant 8 : index
    %c0_47 = arith.constant 0 : index
    %c0_48 = arith.constant 0 : index
    %52 = vector.load %arg2[%c8, %c0_47, %c0_48] : memref<9x16x4xbf16, #tpu.memory_space<vmem>>, vector<1x16x4xbf16>
    %53 = vector.shape_cast %52 : vector<1x16x4xbf16> to vector<16x4xbf16>
    %cst_49 = arith.constant dense<0.000000e+00> : vector<16x8xf32>
    %54 = tpu.matmul %53, %43, %cst_49 {dimension_numbers = #tpu.dot_dimension_numbers<[1], [0], [0], [1], [0, 0, 1, 1], [], []>} : vector<16x4xbf16>, vector<4x8xbf16>, vector<16x8xf32> -> vector<16x8xf32>
    %55 = arith.addf %51, %54 : vector<16x8xf32>
    %c0_50 = arith.constant 0 : index
    %c0_51 = arith.constant 0 : index
    %56 = vector.load %arg3[%c0_50, %c0_51] : memref<16x1xf32, #tpu.memory_space<vmem>>, vector<16x1xf32>
    %57 = vector.broadcast %56 : vector<16x1xf32> to vector<16x8xf32>
    %58 = arith.mulf %55, %57 : vector<16x8xf32>
    %c0_52 = arith.constant 0 : index
    %c0_53 = arith.constant 0 : index
    %59 = vector.load %arg4[%c0_52, %c0_53] : memref<16x1xf32, #tpu.memory_space<vmem>>, vector<16x1xf32>
    %60 = vector.broadcast %59 : vector<16x1xf32> to vector<16x8xf32>
    %61 = arith.addf %58, %60 : vector<16x8xf32>
    %cst_54 = arith.constant 0.000000e+00 : f32
    %62 = vector.broadcast %cst_54 : f32 to vector<16x8xf32>
    %63 = arith.maximumf %61, %62 : vector<16x8xf32>
    %64 = arith.truncf %63 : vector<16x8xf32> to vector<16x8xbf16>
    %c0_55 = arith.constant 0 : index
    %c0_56 = arith.constant 0 : index
    %c0_57 = arith.constant 0 : index
    %c0_58 = arith.constant 0 : index
    %65 = vector.load %arg14[%c0_55, %c0_56, %c0_57, %c0_58] : memref<1x1x16x8xbf16, #tpu.memory_space<vmem>>, vector<1x1x16x8xbf16>
    %66 = vector.shape_cast %65 : vector<1x1x16x8xbf16> to vector<16x8xbf16>
    %67 = vector.shape_cast %64 : vector<16x8xbf16> to vector<1x1x16x8xbf16>
    tpu.vector_store %arg14[%c0_55, %c0_56, %c0_57, %c0_58], %67 {strides = array<i32>} : memref<1x1x16x8xbf16, #tpu.memory_space<vmem>>, vector<1x1x16x8xbf16>,
    %c0_59 = arith.constant 0 : index
    %c0_60 = arith.constant 0 : index
    %68 = vector.load %arg5[%c0_59, %c0_60] : memref<8x16xbf16, #tpu.memory_space<vmem>>, vector<8x16xbf16>
    %cst_61 = arith.constant dense<0.000000e+00> : vector<8x8xf32>
    %69 = tpu.matmul %68, %64, %cst_61 {dimension_numbers = #tpu.dot_dimension_numbers<[1], [0], [0], [1], [0, 0, 1, 1], [], []>} : vector<8x16xbf16>, vector<16x8xbf16>, vector<8x8xf32> -> vector<8x8xf32>
    %c0_62 = arith.constant 0 : index
    %c0_63 = arith.constant 0 : index
    %70 = vector.load %arg6[%c0_62, %c0_63] : memref<8x1xf32, #tpu.memory_space<vmem>>, vector<8x1xf32>
    %71 = vector.broadcast %70 : vector<8x1xf32> to vector<8x8xf32>
    %72 = arith.mulf %69, %71 : vector<8x8xf32>
    %c0_64 = arith.constant 0 : index
    %c0_65 = arith.constant 0 : index
    %73 = vector.load %arg7[%c0_64, %c0_65] : memref<8x1xf32, #tpu.memory_space<vmem>>, vector<8x1xf32>
    %74 = vector.broadcast %73 : vector<8x1xf32> to vector<8x8xf32>
    %75 = arith.addf %72, %74 : vector<8x8xf32>
    %cst_66 = arith.constant 0.000000e+00 : f32
    %76 = vector.broadcast %cst_66 : f32 to vector<8x8xf32>
    %77 = arith.maximumf %75, %76 : vector<8x8xf32>
    %c0_67 = arith.constant 0 : index
    %c0_68 = arith.constant 0 : index
    %c0_69 = arith.constant 0 : index
    %c0_70 = arith.constant 0 : index
    %78 = vector.load %arg15[%c0_67, %c0_68, %c0_69, %c0_70] : memref<1x1x8x8xf32, #tpu.memory_space<vmem>>, vector<1x1x8x8xf32>
    %79 = vector.shape_cast %78 : vector<1x1x8x8xf32> to vector<8x8xf32>
    %80 = vector.shape_cast %77 : vector<8x8xf32> to vector<1x1x8x8xf32>
    tpu.vector_store %arg15[%c0_67, %c0_68, %c0_69, %c0_70], %80 {strides = array<i32>} : memref<1x1x8x8xf32, #tpu.memory_space<vmem>>, vector<1x1x8x8xf32>,
    return
  }
  func.func @transform_0(%arg0: i32, %arg1: i32) -> (i32, i32, i32) {
    %c0_i32 = arith.constant 0 : i32
    %c0_i32_0 = arith.constant 0 : i32
    %c0_i32_1 = arith.constant 0 : i32
    %c0_i32_2 = arith.constant 0 : i32
    return %c0_i32, %c0_i32_0, %c0_i32_1 : i32, i32, i32
  }
  func.func @transform_1(%arg0: i32, %arg1: i32) -> (i32, i32) {
    %c0_i32 = arith.constant 0 : i32
    %c0_i32_0 = arith.constant 0 : i32
    %c0_i32_1 = arith.constant 0 : i32
    return %c0_i32, %c0_i32_0 : i32, i32
  }
  func.func @transform_2(%arg0: i32, %arg1: i32) -> (i32, i32) {
    %c0_i32 = arith.constant 0 : i32
    %c0_i32_0 = arith.constant 0 : i32
    %c0_i32_1 = arith.constant 0 : i32
    return %c0_i32, %c0_i32_0 : i32, i32
  }
  func.func @transform_3(%arg0: i32, %arg1: i32) -> (i32, i32) {
    %c0_i32 = arith.constant 0 : i32
    %c0_i32_0 = arith.constant 0 : i32
    %c0_i32_1 = arith.constant 0 : i32
    return %c0_i32, %c0_i32_0 : i32, i32
  }
  func.func @transform_4(%arg0: i32, %arg1: i32) -> (i32, i32) {
    %c0_i32 = arith.constant 0 : i32
    %c0_i32_0 = arith.constant 0 : i32
    %c0_i32_1 = arith.constant 0 : i32
    return %c0_i32, %c0_i32_0 : i32, i32
  }
  func.func @transform_5(%arg0: i32, %arg1: i32) -> (i32, i32) {
    %c0_i32 = arith.constant 0 : i32
    %c0_i32_0 = arith.constant 0 : i32
    %c0_i32_1 = arith.constant 0 : i32
    return %c0_i32, %c0_i32_0 : i32, i32
  }
  func.func @transform_6(%arg0: i32, %arg1: i32) -> (i32, i32, i32, i32) {
    %c2_i32 = arith.constant 2 : i32
    %0 = arith.muli %c2_i32, %arg1 : i32
    %c0_i32 = arith.constant 0 : i32
    %1 = arith.addi %0, %c0_i32 : i32
    %c0_i32_0 = arith.constant 0 : i32
    %c0_i32_1 = arith.constant 0 : i32
    %c0_i32_2 = arith.constant 0 : i32
    return %arg0, %1, %c0_i32_0, %c0_i32_1 : i32, i32, i32, i32
  }
  func.func @transform_7(%arg0: i32, %arg1: i32) -> (i32, i32, i32, i32) {
    %c2_i32 = arith.constant 2 : i32
    %0 = arith.muli %c2_i32, %arg1 : i32
    %c0_i32 = arith.constant 0 : i32
    %1 = arith.addi %0, %c0_i32 : i32
    %c0_i32_0 = arith.constant 0 : i32
    %c0_i32_1 = arith.constant 0 : i32
    %c0_i32_2 = arith.constant 0 : i32
    return %arg0, %1, %c0_i32_0, %c0_i32_1 : i32, i32, i32, i32
  }
  func.func @transform_8(%arg0: i32, %arg1: i32) -> (i32, i32, i32, i32) {
    %c2_i32 = arith.constant 2 : i32
    %0 = arith.muli %c2_i32, %arg1 : i32
    %c1_i32 = arith.constant 1 : i32
    %1 = arith.addi %0, %c1_i32 : i32
    %c0_i32 = arith.constant 0 : i32
    %c0_i32_0 = arith.constant 0 : i32
    %c0_i32_1 = arith.constant 0 : i32
    return %arg0, %1, %c0_i32, %c0_i32_0 : i32, i32, i32, i32
  }
  func.func @transform_9(%arg0: i32, %arg1: i32) -> (i32, i32, i32, i32) {
    %c2_i32 = arith.constant 2 : i32
    %0 = arith.muli %c2_i32, %arg1 : i32
    %c1_i32 = arith.constant 1 : i32
    %1 = arith.addi %0, %c1_i32 : i32
    %c0_i32 = arith.constant 0 : i32
    %c0_i32_0 = arith.constant 0 : i32
    %c0_i32_1 = arith.constant 0 : i32
    return %arg0, %1, %c0_i32, %c0_i32_0 : i32, i32, i32, i32
  }
  func.func @transform_10(%arg0: i32, %arg1: i32) -> (i32, i32, i32, i32) {
    %c2_i32 = arith.constant 2 : i32
    %0 = arith.muli %c2_i32, %arg1 : i32
    %c2_i32_0 = arith.constant 2 : i32
    %1 = arith.addi %0, %c2_i32_0 : i32
    %c0_i32 = arith.constant 0 : i32
    %c0_i32_1 = arith.constant 0 : i32
    %c0_i32_2 = arith.constant 0 : i32
    return %arg0, %1, %c0_i32, %c0_i32_1 : i32, i32, i32, i32
  }
  func.func @transform_11(%arg0: i32, %arg1: i32) -> (i32, i32, i32, i32) {
    %c2_i32 = arith.constant 2 : i32
    %0 = arith.muli %c2_i32, %arg1 : i32
    %c2_i32_0 = arith.constant 2 : i32
    %1 = arith.addi %0, %c2_i32_0 : i32
    %c0_i32 = arith.constant 0 : i32
    %c0_i32_1 = arith.constant 0 : i32
    %c0_i32_2 = arith.constant 0 : i32
    return %arg0, %1, %c0_i32, %c0_i32_1 : i32, i32, i32, i32
  }
  func.func @transform_12(%arg0: i32, %arg1: i32) -> (i32, i32, i32, i32) {
    %c0_i32 = arith.constant 0 : i32
    %c0_i32_0 = arith.constant 0 : i32
    %c0_i32_1 = arith.constant 0 : i32
    return %arg0, %arg1, %c0_i32, %c0_i32_0 : i32, i32, i32, i32
  }
  func.func @transform_13(%arg0: i32, %arg1: i32) -> (i32, i32, i32, i32) {
    %c0_i32 = arith.constant 0 : i32
    %c0_i32_0 = arith.constant 0 : i32
    %c0_i32_1 = arith.constant 0 : i32
    return %arg0, %arg1, %c0_i32, %c0_i32_0 : i32, i32, i32, i32
  }
}

module attributes {stable_mosaic.version = 11 : i64} {
  func.func @_conv3x3s2_kernel(%arg0: i32, %arg1: i32, %arg2: memref<9x16x8xbf16, #tpu.memory_space<vmem>>, %arg3: memref<16x1xf32, #tpu.memory_space<vmem>>, %arg4: memref<16x1xf32, #tpu.memory_space<vmem>>, %arg5: memref<1x1x8x5xbf16, #tpu.memory_space<vmem>>, %arg6: memref<1x1x8x5xbf16, #tpu.memory_space<vmem>>, %arg7: memref<1x1x8x5xbf16, #tpu.memory_space<vmem>>, %arg8: memref<1x1x8x5xbf16, #tpu.memory_space<vmem>>, %arg9: memref<1x1x8x5xbf16, #tpu.memory_space<vmem>>, %arg10: memref<1x1x8x5xbf16, #tpu.memory_space<vmem>>, %arg11: memref<1x1x16x4xbf16, #tpu.memory_space<vmem>>) attributes {dimension_semantics = [#tpu.dimension_semantics<parallel>, #tpu.dimension_semantics<parallel>], iteration_bounds = array<i64: 2, 4>, scalar_prefetch = 0 : i64, scratch_operands = 0 : i64, tpu.core_type = #tpu.core_type<tc>, window_params = [{pipeline_mode = #tpu.pipeline_mode<synchronous>, transform_indices = @transform_0, window_bounds = array<i64: 9, 16, 8>}, {pipeline_mode = #tpu.pipeline_mode<synchronous>, transform_indices = @transform_1, window_bounds = array<i64: 16, 1>}, {pipeline_mode = #tpu.pipeline_mode<synchronous>, transform_indices = @transform_2, window_bounds = array<i64: 16, 1>}, {transform_indices = @transform_3, window_bounds = array<i64: 1, 1, 8, 5>}, {transform_indices = @transform_4, window_bounds = array<i64: 1, 1, 8, 5>}, {transform_indices = @transform_5, window_bounds = array<i64: 1, 1, 8, 5>}, {transform_indices = @transform_6, window_bounds = array<i64: 1, 1, 8, 5>}, {transform_indices = @transform_7, window_bounds = array<i64: 1, 1, 8, 5>}, {transform_indices = @transform_8, window_bounds = array<i64: 1, 1, 8, 5>}, {transform_indices = @transform_9, window_bounds = array<i64: 1, 1, 16, 4>}]} {
    %c0 = arith.constant 0 : index
    %c0_0 = arith.constant 0 : index
    %c0_1 = arith.constant 0 : index
    %c0_2 = arith.constant 0 : index
    %0 = vector.load %arg5[%c0, %c0_0, %c0_1, %c0_2] : memref<1x1x8x5xbf16, #tpu.memory_space<vmem>>, vector<1x1x8x5xbf16>
    %1 = vector.shape_cast %0 : vector<1x1x8x5xbf16> to vector<8x5xbf16>
    %c0_3 = arith.constant 0 : index
    %c0_4 = arith.constant 0 : index
    %c0_5 = arith.constant 0 : index
    %c0_6 = arith.constant 0 : index
    %2 = vector.load %arg6[%c0_3, %c0_4, %c0_5, %c0_6] : memref<1x1x8x5xbf16, #tpu.memory_space<vmem>>, vector<1x1x8x5xbf16>
    %3 = vector.shape_cast %2 : vector<1x1x8x5xbf16> to vector<8x5xbf16>
    %4 = vector.extract_strided_slice %1 {offsets = [0, 0], sizes = [8, 4], strides = [1, 1]} : vector<8x5xbf16> to vector<8x4xbf16>
    %5 = vector.extract_strided_slice %3 {offsets = [0, 0], sizes = [8, 4], strides = [1, 1]} : vector<8x5xbf16> to vector<8x4xbf16>
    %6 = vector.extract_strided_slice %1 {offsets = [0, 1], sizes = [8, 4], strides = [1, 1]} : vector<8x5xbf16> to vector<8x4xbf16>
    %c0_7 = arith.constant 0 : index
    %c0_8 = arith.constant 0 : index
    %c0_9 = arith.constant 0 : index
    %7 = vector.load %arg2[%c0_7, %c0_8, %c0_9] : memref<9x16x8xbf16, #tpu.memory_space<vmem>>, vector<1x16x8xbf16>
    %8 = vector.shape_cast %7 : vector<1x16x8xbf16> to vector<16x8xbf16>
    %cst = arith.constant dense<0.000000e+00> : vector<16x4xf32>
    %9 = tpu.matmul %8, %4, %cst {dimension_numbers = #tpu.dot_dimension_numbers<[1], [0], [0], [1], [0, 0, 1, 1], [], []>} : vector<16x8xbf16>, vector<8x4xbf16>, vector<16x4xf32> -> vector<16x4xf32>
    %c1 = arith.constant 1 : index
    %c0_10 = arith.constant 0 : index
    %c0_11 = arith.constant 0 : index
    %10 = vector.load %arg2[%c1, %c0_10, %c0_11] : memref<9x16x8xbf16, #tpu.memory_space<vmem>>, vector<1x16x8xbf16>
    %11 = vector.shape_cast %10 : vector<1x16x8xbf16> to vector<16x8xbf16>
    %cst_12 = arith.constant dense<0.000000e+00> : vector<16x4xf32>
    %12 = tpu.matmul %11, %5, %cst_12 {dimension_numbers = #tpu.dot_dimension_numbers<[1], [0], [0], [1], [0, 0, 1, 1], [], []>} : vector<16x8xbf16>, vector<8x4xbf16>, vector<16x4xf32> -> vector<16x4xf32>
    %13 = arith.addf %9, %12 : vector<16x4xf32>
    %c2 = arith.constant 2 : index
    %c0_13 = arith.constant 0 : index
    %c0_14 = arith.constant 0 : index
    %14 = vector.load %arg2[%c2, %c0_13, %c0_14] : memref<9x16x8xbf16, #tpu.memory_space<vmem>>, vector<1x16x8xbf16>
    %15 = vector.shape_cast %14 : vector<1x16x8xbf16> to vector<16x8xbf16>
    %cst_15 = arith.constant dense<0.000000e+00> : vector<16x4xf32>
    %16 = tpu.matmul %15, %6, %cst_15 {dimension_numbers = #tpu.dot_dimension_numbers<[1], [0], [0], [1], [0, 0, 1, 1], [], []>} : vector<16x8xbf16>, vector<8x4xbf16>, vector<16x4xf32> -> vector<16x4xf32>
    %17 = arith.addf %13, %16 : vector<16x4xf32>
    %c0_16 = arith.constant 0 : index
    %c0_17 = arith.constant 0 : index
    %c0_18 = arith.constant 0 : index
    %c0_19 = arith.constant 0 : index
    %18 = vector.load %arg7[%c0_16, %c0_17, %c0_18, %c0_19] : memref<1x1x8x5xbf16, #tpu.memory_space<vmem>>, vector<1x1x8x5xbf16>
    %19 = vector.shape_cast %18 : vector<1x1x8x5xbf16> to vector<8x5xbf16>
    %c0_20 = arith.constant 0 : index
    %c0_21 = arith.constant 0 : index
    %c0_22 = arith.constant 0 : index
    %c0_23 = arith.constant 0 : index
    %20 = vector.load %arg8[%c0_20, %c0_21, %c0_22, %c0_23] : memref<1x1x8x5xbf16, #tpu.memory_space<vmem>>, vector<1x1x8x5xbf16>
    %21 = vector.shape_cast %20 : vector<1x1x8x5xbf16> to vector<8x5xbf16>
    %22 = vector.extract_strided_slice %19 {offsets = [0, 0], sizes = [8, 4], strides = [1, 1]} : vector<8x5xbf16> to vector<8x4xbf16>
    %23 = vector.extract_strided_slice %21 {offsets = [0, 0], sizes = [8, 4], strides = [1, 1]} : vector<8x5xbf16> to vector<8x4xbf16>
    %24 = vector.extract_strided_slice %19 {offsets = [0, 1], sizes = [8, 4], strides = [1, 1]} : vector<8x5xbf16> to vector<8x4xbf16>
    %c3 = arith.constant 3 : index
    %c0_24 = arith.constant 0 : index
    %c0_25 = arith.constant 0 : index
    %25 = vector.load %arg2[%c3, %c0_24, %c0_25] : memref<9x16x8xbf16, #tpu.memory_space<vmem>>, vector<1x16x8xbf16>
    %26 = vector.shape_cast %25 : vector<1x16x8xbf16> to vector<16x8xbf16>
    %cst_26 = arith.constant dense<0.000000e+00> : vector<16x4xf32>
    %27 = tpu.matmul %26, %22, %cst_26 {dimension_numbers = #tpu.dot_dimension_numbers<[1], [0], [0], [1], [0, 0, 1, 1], [], []>} : vector<16x8xbf16>, vector<8x4xbf16>, vector<16x4xf32> -> vector<16x4xf32>
    %28 = arith.addf %17, %27 : vector<16x4xf32>
    %c4 = arith.constant 4 : index
    %c0_27 = arith.constant 0 : index
    %c0_28 = arith.constant 0 : index
    %29 = vector.load %arg2[%c4, %c0_27, %c0_28] : memref<9x16x8xbf16, #tpu.memory_space<vmem>>, vector<1x16x8xbf16>
    %30 = vector.shape_cast %29 : vector<1x16x8xbf16> to vector<16x8xbf16>
    %cst_29 = arith.constant dense<0.000000e+00> : vector<16x4xf32>
    %31 = tpu.matmul %30, %23, %cst_29 {dimension_numbers = #tpu.dot_dimension_numbers<[1], [0], [0], [1], [0, 0, 1, 1], [], []>} : vector<16x8xbf16>, vector<8x4xbf16>, vector<16x4xf32> -> vector<16x4xf32>
    %32 = arith.addf %28, %31 : vector<16x4xf32>
    %c5 = arith.constant 5 : index
    %c0_30 = arith.constant 0 : index
    %c0_31 = arith.constant 0 : index
    %33 = vector.load %arg2[%c5, %c0_30, %c0_31] : memref<9x16x8xbf16, #tpu.memory_space<vmem>>, vector<1x16x8xbf16>
    %34 = vector.shape_cast %33 : vector<1x16x8xbf16> to vector<16x8xbf16>
    %cst_32 = arith.constant dense<0.000000e+00> : vector<16x4xf32>
    %35 = tpu.matmul %34, %24, %cst_32 {dimension_numbers = #tpu.dot_dimension_numbers<[1], [0], [0], [1], [0, 0, 1, 1], [], []>} : vector<16x8xbf16>, vector<8x4xbf16>, vector<16x4xf32> -> vector<16x4xf32>
    %36 = arith.addf %32, %35 : vector<16x4xf32>
    %c0_33 = arith.constant 0 : index
    %c0_34 = arith.constant 0 : index
    %c0_35 = arith.constant 0 : index
    %c0_36 = arith.constant 0 : index
    %37 = vector.load %arg9[%c0_33, %c0_34, %c0_35, %c0_36] : memref<1x1x8x5xbf16, #tpu.memory_space<vmem>>, vector<1x1x8x5xbf16>
    %38 = vector.shape_cast %37 : vector<1x1x8x5xbf16> to vector<8x5xbf16>
    %c0_37 = arith.constant 0 : index
    %c0_38 = arith.constant 0 : index
    %c0_39 = arith.constant 0 : index
    %c0_40 = arith.constant 0 : index
    %39 = vector.load %arg10[%c0_37, %c0_38, %c0_39, %c0_40] : memref<1x1x8x5xbf16, #tpu.memory_space<vmem>>, vector<1x1x8x5xbf16>
    %40 = vector.shape_cast %39 : vector<1x1x8x5xbf16> to vector<8x5xbf16>
    %41 = vector.extract_strided_slice %38 {offsets = [0, 0], sizes = [8, 4], strides = [1, 1]} : vector<8x5xbf16> to vector<8x4xbf16>
    %42 = vector.extract_strided_slice %40 {offsets = [0, 0], sizes = [8, 4], strides = [1, 1]} : vector<8x5xbf16> to vector<8x4xbf16>
    %43 = vector.extract_strided_slice %38 {offsets = [0, 1], sizes = [8, 4], strides = [1, 1]} : vector<8x5xbf16> to vector<8x4xbf16>
    %c6 = arith.constant 6 : index
    %c0_41 = arith.constant 0 : index
    %c0_42 = arith.constant 0 : index
    %44 = vector.load %arg2[%c6, %c0_41, %c0_42] : memref<9x16x8xbf16, #tpu.memory_space<vmem>>, vector<1x16x8xbf16>
    %45 = vector.shape_cast %44 : vector<1x16x8xbf16> to vector<16x8xbf16>
    %cst_43 = arith.constant dense<0.000000e+00> : vector<16x4xf32>
    %46 = tpu.matmul %45, %41, %cst_43 {dimension_numbers = #tpu.dot_dimension_numbers<[1], [0], [0], [1], [0, 0, 1, 1], [], []>} : vector<16x8xbf16>, vector<8x4xbf16>, vector<16x4xf32> -> vector<16x4xf32>
    %47 = arith.addf %36, %46 : vector<16x4xf32>
    %c7 = arith.constant 7 : index
    %c0_44 = arith.constant 0 : index
    %c0_45 = arith.constant 0 : index
    %48 = vector.load %arg2[%c7, %c0_44, %c0_45] : memref<9x16x8xbf16, #tpu.memory_space<vmem>>, vector<1x16x8xbf16>
    %49 = vector.shape_cast %48 : vector<1x16x8xbf16> to vector<16x8xbf16>
    %cst_46 = arith.constant dense<0.000000e+00> : vector<16x4xf32>
    %50 = tpu.matmul %49, %42, %cst_46 {dimension_numbers = #tpu.dot_dimension_numbers<[1], [0], [0], [1], [0, 0, 1, 1], [], []>} : vector<16x8xbf16>, vector<8x4xbf16>, vector<16x4xf32> -> vector<16x4xf32>
    %51 = arith.addf %47, %50 : vector<16x4xf32>
    %c8 = arith.constant 8 : index
    %c0_47 = arith.constant 0 : index
    %c0_48 = arith.constant 0 : index
    %52 = vector.load %arg2[%c8, %c0_47, %c0_48] : memref<9x16x8xbf16, #tpu.memory_space<vmem>>, vector<1x16x8xbf16>
    %53 = vector.shape_cast %52 : vector<1x16x8xbf16> to vector<16x8xbf16>
    %cst_49 = arith.constant dense<0.000000e+00> : vector<16x4xf32>
    %54 = tpu.matmul %53, %43, %cst_49 {dimension_numbers = #tpu.dot_dimension_numbers<[1], [0], [0], [1], [0, 0, 1, 1], [], []>} : vector<16x8xbf16>, vector<8x4xbf16>, vector<16x4xf32> -> vector<16x4xf32>
    %55 = arith.addf %51, %54 : vector<16x4xf32>
    %c0_50 = arith.constant 0 : index
    %c0_51 = arith.constant 0 : index
    %56 = vector.load %arg3[%c0_50, %c0_51] : memref<16x1xf32, #tpu.memory_space<vmem>>, vector<16x1xf32>
    %57 = vector.broadcast %56 : vector<16x1xf32> to vector<16x4xf32>
    %58 = arith.mulf %55, %57 : vector<16x4xf32>
    %c0_52 = arith.constant 0 : index
    %c0_53 = arith.constant 0 : index
    %59 = vector.load %arg4[%c0_52, %c0_53] : memref<16x1xf32, #tpu.memory_space<vmem>>, vector<16x1xf32>
    %60 = vector.broadcast %59 : vector<16x1xf32> to vector<16x4xf32>
    %61 = arith.addf %58, %60 : vector<16x4xf32>
    %cst_54 = arith.constant 0.000000e+00 : f32
    %62 = vector.broadcast %cst_54 : f32 to vector<16x4xf32>
    %63 = arith.maximumf %61, %62 : vector<16x4xf32>
    %64 = arith.truncf %63 : vector<16x4xf32> to vector<16x4xbf16>
    %c0_55 = arith.constant 0 : index
    %c0_56 = arith.constant 0 : index
    %c0_57 = arith.constant 0 : index
    %c0_58 = arith.constant 0 : index
    %65 = vector.load %arg11[%c0_55, %c0_56, %c0_57, %c0_58] : memref<1x1x16x4xbf16, #tpu.memory_space<vmem>>, vector<1x1x16x4xbf16>
    %66 = vector.shape_cast %65 : vector<1x1x16x4xbf16> to vector<16x4xbf16>
    %67 = vector.shape_cast %64 : vector<16x4xbf16> to vector<1x1x16x4xbf16>
    tpu.vector_store %arg11[%c0_55, %c0_56, %c0_57, %c0_58], %67 {strides = array<i32>} : memref<1x1x16x4xbf16, #tpu.memory_space<vmem>>, vector<1x1x16x4xbf16>,
    return
  }
  func.func @transform_0(%arg0: i32, %arg1: i32) -> (i32, i32, i32) {
    %c0_i32 = arith.constant 0 : i32
    %c0_i32_0 = arith.constant 0 : i32
    %c0_i32_1 = arith.constant 0 : i32
    %c0_i32_2 = arith.constant 0 : i32
    return %c0_i32, %c0_i32_0, %c0_i32_1 : i32, i32, i32
  }
  func.func @transform_1(%arg0: i32, %arg1: i32) -> (i32, i32) {
    %c0_i32 = arith.constant 0 : i32
    %c0_i32_0 = arith.constant 0 : i32
    %c0_i32_1 = arith.constant 0 : i32
    return %c0_i32, %c0_i32_0 : i32, i32
  }
  func.func @transform_2(%arg0: i32, %arg1: i32) -> (i32, i32) {
    %c0_i32 = arith.constant 0 : i32
    %c0_i32_0 = arith.constant 0 : i32
    %c0_i32_1 = arith.constant 0 : i32
    return %c0_i32, %c0_i32_0 : i32, i32
  }
  func.func @transform_3(%arg0: i32, %arg1: i32) -> (i32, i32, i32, i32) {
    %c2_i32 = arith.constant 2 : i32
    %0 = arith.muli %c2_i32, %arg1 : i32
    %c0_i32 = arith.constant 0 : i32
    %1 = arith.addi %0, %c0_i32 : i32
    %c0_i32_0 = arith.constant 0 : i32
    %c0_i32_1 = arith.constant 0 : i32
    %c0_i32_2 = arith.constant 0 : i32
    return %arg0, %1, %c0_i32_0, %c0_i32_1 : i32, i32, i32, i32
  }
  func.func @transform_4(%arg0: i32, %arg1: i32) -> (i32, i32, i32, i32) {
    %c2_i32 = arith.constant 2 : i32
    %0 = arith.muli %c2_i32, %arg1 : i32
    %c0_i32 = arith.constant 0 : i32
    %1 = arith.addi %0, %c0_i32 : i32
    %c0_i32_0 = arith.constant 0 : i32
    %c0_i32_1 = arith.constant 0 : i32
    %c0_i32_2 = arith.constant 0 : i32
    return %arg0, %1, %c0_i32_0, %c0_i32_1 : i32, i32, i32, i32
  }
  func.func @transform_5(%arg0: i32, %arg1: i32) -> (i32, i32, i32, i32) {
    %c2_i32 = arith.constant 2 : i32
    %0 = arith.muli %c2_i32, %arg1 : i32
    %c1_i32 = arith.constant 1 : i32
    %1 = arith.addi %0, %c1_i32 : i32
    %c0_i32 = arith.constant 0 : i32
    %c0_i32_0 = arith.constant 0 : i32
    %c0_i32_1 = arith.constant 0 : i32
    return %arg0, %1, %c0_i32, %c0_i32_0 : i32, i32, i32, i32
  }
  func.func @transform_6(%arg0: i32, %arg1: i32) -> (i32, i32, i32, i32) {
    %c2_i32 = arith.constant 2 : i32
    %0 = arith.muli %c2_i32, %arg1 : i32
    %c1_i32 = arith.constant 1 : i32
    %1 = arith.addi %0, %c1_i32 : i32
    %c0_i32 = arith.constant 0 : i32
    %c0_i32_0 = arith.constant 0 : i32
    %c0_i32_1 = arith.constant 0 : i32
    return %arg0, %1, %c0_i32, %c0_i32_0 : i32, i32, i32, i32
  }
  func.func @transform_7(%arg0: i32, %arg1: i32) -> (i32, i32, i32, i32) {
    %c2_i32 = arith.constant 2 : i32
    %0 = arith.muli %c2_i32, %arg1 : i32
    %c2_i32_0 = arith.constant 2 : i32
    %1 = arith.addi %0, %c2_i32_0 : i32
    %c0_i32 = arith.constant 0 : i32
    %c0_i32_1 = arith.constant 0 : i32
    %c0_i32_2 = arith.constant 0 : i32
    return %arg0, %1, %c0_i32, %c0_i32_1 : i32, i32, i32, i32
  }
  func.func @transform_8(%arg0: i32, %arg1: i32) -> (i32, i32, i32, i32) {
    %c2_i32 = arith.constant 2 : i32
    %0 = arith.muli %c2_i32, %arg1 : i32
    %c2_i32_0 = arith.constant 2 : i32
    %1 = arith.addi %0, %c2_i32_0 : i32
    %c0_i32 = arith.constant 0 : i32
    %c0_i32_1 = arith.constant 0 : i32
    %c0_i32_2 = arith.constant 0 : i32
    return %arg0, %1, %c0_i32, %c0_i32_1 : i32, i32, i32, i32
  }
  func.func @transform_9(%arg0: i32, %arg1: i32) -> (i32, i32, i32, i32) {
    %c0_i32 = arith.constant 0 : i32
    %c0_i32_0 = arith.constant 0 : i32
    %c0_i32_1 = arith.constant 0 : i32
    return %arg0, %arg1, %c0_i32, %c0_i32_0 : i32, i32, i32, i32
  }
}

module attributes {stable_mosaic.version = 11 : i64} {
  func.func @_maxpool3x3s2_kernel(%arg0: i32, %arg1: i32, %arg2: memref<1x1x16x5xbf16, #tpu.memory_space<vmem>>, %arg3: memref<1x1x16x5xbf16, #tpu.memory_space<vmem>>, %arg4: memref<1x1x16x5xbf16, #tpu.memory_space<vmem>>, %arg5: memref<1x1x16x5xbf16, #tpu.memory_space<vmem>>, %arg6: memref<1x1x16x5xbf16, #tpu.memory_space<vmem>>, %arg7: memref<1x1x16x5xbf16, #tpu.memory_space<vmem>>, %arg8: memref<1x1x16x4xbf16, #tpu.memory_space<vmem>>) attributes {dimension_semantics = [#tpu.dimension_semantics<parallel>, #tpu.dimension_semantics<parallel>], iteration_bounds = array<i64: 2, 4>, scalar_prefetch = 0 : i64, scratch_operands = 0 : i64, tpu.core_type = #tpu.core_type<tc>, window_params = [{transform_indices = @transform_0, window_bounds = array<i64: 1, 1, 16, 5>}, {transform_indices = @transform_1, window_bounds = array<i64: 1, 1, 16, 5>}, {transform_indices = @transform_2, window_bounds = array<i64: 1, 1, 16, 5>}, {transform_indices = @transform_3, window_bounds = array<i64: 1, 1, 16, 5>}, {transform_indices = @transform_4, window_bounds = array<i64: 1, 1, 16, 5>}, {transform_indices = @transform_5, window_bounds = array<i64: 1, 1, 16, 5>}, {transform_indices = @transform_6, window_bounds = array<i64: 1, 1, 16, 4>}]} {
    %c0 = arith.constant 0 : index
    %c0_0 = arith.constant 0 : index
    %c0_1 = arith.constant 0 : index
    %c0_2 = arith.constant 0 : index
    %0 = vector.load %arg2[%c0, %c0_0, %c0_1, %c0_2] : memref<1x1x16x5xbf16, #tpu.memory_space<vmem>>, vector<1x1x16x5xbf16>
    %1 = vector.shape_cast %0 : vector<1x1x16x5xbf16> to vector<16x5xbf16>
    %c0_3 = arith.constant 0 : index
    %c0_4 = arith.constant 0 : index
    %c0_5 = arith.constant 0 : index
    %c0_6 = arith.constant 0 : index
    %2 = vector.load %arg3[%c0_3, %c0_4, %c0_5, %c0_6] : memref<1x1x16x5xbf16, #tpu.memory_space<vmem>>, vector<1x1x16x5xbf16>
    %3 = vector.shape_cast %2 : vector<1x1x16x5xbf16> to vector<16x5xbf16>
    %4 = vector.extract_strided_slice %1 {offsets = [0, 0], sizes = [16, 4], strides = [1, 1]} : vector<16x5xbf16> to vector<16x4xbf16>
    %5 = vector.extract_strided_slice %3 {offsets = [0, 0], sizes = [16, 4], strides = [1, 1]} : vector<16x5xbf16> to vector<16x4xbf16>
    %6 = vector.extract_strided_slice %1 {offsets = [0, 1], sizes = [16, 4], strides = [1, 1]} : vector<16x5xbf16> to vector<16x4xbf16>
    %7 = arith.maximumf %4, %5 : vector<16x4xbf16>
    %8 = arith.maximumf %7, %6 : vector<16x4xbf16>
    %c0_7 = arith.constant 0 : index
    %c0_8 = arith.constant 0 : index
    %c0_9 = arith.constant 0 : index
    %c0_10 = arith.constant 0 : index
    %9 = vector.load %arg4[%c0_7, %c0_8, %c0_9, %c0_10] : memref<1x1x16x5xbf16, #tpu.memory_space<vmem>>, vector<1x1x16x5xbf16>
    %10 = vector.shape_cast %9 : vector<1x1x16x5xbf16> to vector<16x5xbf16>
    %c0_11 = arith.constant 0 : index
    %c0_12 = arith.constant 0 : index
    %c0_13 = arith.constant 0 : index
    %c0_14 = arith.constant 0 : index
    %11 = vector.load %arg5[%c0_11, %c0_12, %c0_13, %c0_14] : memref<1x1x16x5xbf16, #tpu.memory_space<vmem>>, vector<1x1x16x5xbf16>
    %12 = vector.shape_cast %11 : vector<1x1x16x5xbf16> to vector<16x5xbf16>
    %13 = vector.extract_strided_slice %10 {offsets = [0, 0], sizes = [16, 4], strides = [1, 1]} : vector<16x5xbf16> to vector<16x4xbf16>
    %14 = vector.extract_strided_slice %12 {offsets = [0, 0], sizes = [16, 4], strides = [1, 1]} : vector<16x5xbf16> to vector<16x4xbf16>
    %15 = vector.extract_strided_slice %10 {offsets = [0, 1], sizes = [16, 4], strides = [1, 1]} : vector<16x5xbf16> to vector<16x4xbf16>
    %16 = arith.maximumf %8, %13 : vector<16x4xbf16>
    %17 = arith.maximumf %16, %14 : vector<16x4xbf16>
    %18 = arith.maximumf %17, %15 : vector<16x4xbf16>
    %c0_15 = arith.constant 0 : index
    %c0_16 = arith.constant 0 : index
    %c0_17 = arith.constant 0 : index
    %c0_18 = arith.constant 0 : index
    %19 = vector.load %arg6[%c0_15, %c0_16, %c0_17, %c0_18] : memref<1x1x16x5xbf16, #tpu.memory_space<vmem>>, vector<1x1x16x5xbf16>
    %20 = vector.shape_cast %19 : vector<1x1x16x5xbf16> to vector<16x5xbf16>
    %c0_19 = arith.constant 0 : index
    %c0_20 = arith.constant 0 : index
    %c0_21 = arith.constant 0 : index
    %c0_22 = arith.constant 0 : index
    %21 = vector.load %arg7[%c0_19, %c0_20, %c0_21, %c0_22] : memref<1x1x16x5xbf16, #tpu.memory_space<vmem>>, vector<1x1x16x5xbf16>
    %22 = vector.shape_cast %21 : vector<1x1x16x5xbf16> to vector<16x5xbf16>
    %23 = vector.extract_strided_slice %20 {offsets = [0, 0], sizes = [16, 4], strides = [1, 1]} : vector<16x5xbf16> to vector<16x4xbf16>
    %24 = vector.extract_strided_slice %22 {offsets = [0, 0], sizes = [16, 4], strides = [1, 1]} : vector<16x5xbf16> to vector<16x4xbf16>
    %25 = vector.extract_strided_slice %20 {offsets = [0, 1], sizes = [16, 4], strides = [1, 1]} : vector<16x5xbf16> to vector<16x4xbf16>
    %26 = arith.maximumf %18, %23 : vector<16x4xbf16>
    %27 = arith.maximumf %26, %24 : vector<16x4xbf16>
    %28 = arith.maximumf %27, %25 : vector<16x4xbf16>
    %c0_23 = arith.constant 0 : index
    %c0_24 = arith.constant 0 : index
    %c0_25 = arith.constant 0 : index
    %c0_26 = arith.constant 0 : index
    %29 = vector.load %arg8[%c0_23, %c0_24, %c0_25, %c0_26] : memref<1x1x16x4xbf16, #tpu.memory_space<vmem>>, vector<1x1x16x4xbf16>
    %30 = vector.shape_cast %29 : vector<1x1x16x4xbf16> to vector<16x4xbf16>
    %31 = vector.shape_cast %28 : vector<16x4xbf16> to vector<1x1x16x4xbf16>
    tpu.vector_store %arg8[%c0_23, %c0_24, %c0_25, %c0_26], %31 {strides = array<i32>} : memref<1x1x16x4xbf16, #tpu.memory_space<vmem>>, vector<1x1x16x4xbf16>,
    return
  }
  func.func @transform_0(%arg0: i32, %arg1: i32) -> (i32, i32, i32, i32) {
    %c2_i32 = arith.constant 2 : i32
    %0 = arith.muli %c2_i32, %arg1 : i32
    %c0_i32 = arith.constant 0 : i32
    %1 = arith.addi %0, %c0_i32 : i32
    %c0_i32_0 = arith.constant 0 : i32
    %c0_i32_1 = arith.constant 0 : i32
    %c0_i32_2 = arith.constant 0 : i32
    return %arg0, %1, %c0_i32_0, %c0_i32_1 : i32, i32, i32, i32
  }
  func.func @transform_1(%arg0: i32, %arg1: i32) -> (i32, i32, i32, i32) {
    %c2_i32 = arith.constant 2 : i32
    %0 = arith.muli %c2_i32, %arg1 : i32
    %c0_i32 = arith.constant 0 : i32
    %1 = arith.addi %0, %c0_i32 : i32
    %c0_i32_0 = arith.constant 0 : i32
    %c0_i32_1 = arith.constant 0 : i32
    %c0_i32_2 = arith.constant 0 : i32
    return %arg0, %1, %c0_i32_0, %c0_i32_1 : i32, i32, i32, i32
  }
  func.func @transform_2(%arg0: i32, %arg1: i32) -> (i32, i32, i32, i32) {
    %c2_i32 = arith.constant 2 : i32
    %0 = arith.muli %c2_i32, %arg1 : i32
    %c1_i32 = arith.constant 1 : i32
    %1 = arith.addi %0, %c1_i32 : i32
    %c0_i32 = arith.constant 0 : i32
    %c0_i32_0 = arith.constant 0 : i32
    %c0_i32_1 = arith.constant 0 : i32
    return %arg0, %1, %c0_i32, %c0_i32_0 : i32, i32, i32, i32
  }
  func.func @transform_3(%arg0: i32, %arg1: i32) -> (i32, i32, i32, i32) {
    %c2_i32 = arith.constant 2 : i32
    %0 = arith.muli %c2_i32, %arg1 : i32
    %c1_i32 = arith.constant 1 : i32
    %1 = arith.addi %0, %c1_i32 : i32
    %c0_i32 = arith.constant 0 : i32
    %c0_i32_0 = arith.constant 0 : i32
    %c0_i32_1 = arith.constant 0 : i32
    return %arg0, %1, %c0_i32, %c0_i32_0 : i32, i32, i32, i32
  }
  func.func @transform_4(%arg0: i32, %arg1: i32) -> (i32, i32, i32, i32) {
    %c2_i32 = arith.constant 2 : i32
    %0 = arith.muli %c2_i32, %arg1 : i32
    %c2_i32_0 = arith.constant 2 : i32
    %1 = arith.addi %0, %c2_i32_0 : i32
    %c0_i32 = arith.constant 0 : i32
    %c0_i32_1 = arith.constant 0 : i32
    %c0_i32_2 = arith.constant 0 : i32
    return %arg0, %1, %c0_i32, %c0_i32_1 : i32, i32, i32, i32
  }
  func.func @transform_5(%arg0: i32, %arg1: i32) -> (i32, i32, i32, i32) {
    %c2_i32 = arith.constant 2 : i32
    %0 = arith.muli %c2_i32, %arg1 : i32
    %c2_i32_0 = arith.constant 2 : i32
    %1 = arith.addi %0, %c2_i32_0 : i32
    %c0_i32 = arith.constant 0 : i32
    %c0_i32_1 = arith.constant 0 : i32
    %c0_i32_2 = arith.constant 0 : i32
    return %arg0, %1, %c0_i32, %c0_i32_1 : i32, i32, i32, i32
  }
  func.func @transform_6(%arg0: i32, %arg1: i32) -> (i32, i32, i32, i32) {
    %c0_i32 = arith.constant 0 : i32
    %c0_i32_0 = arith.constant 0 : i32
    %c0_i32_1 = arith.constant 0 : i32
    return %arg0, %arg1, %c0_i32, %c0_i32_0 : i32, i32, i32, i32
  }
}

module attributes {stable_mosaic.version = 11 : i64} {
  func.func @_fusion3x3s1_kernel(%arg0: i32, %arg1: i32, %arg2: memref<9x16x16xbf16, #tpu.memory_space<vmem>>, %arg3: memref<9x16x16xbf16, #tpu.memory_space<vmem>>, %arg4: memref<16x1xf32, #tpu.memory_space<vmem>>, %arg5: memref<16x1xf32, #tpu.memory_space<vmem>>, %arg6: memref<1x1x16x6xbf16, #tpu.memory_space<vmem>>, %arg7: memref<1x1x16x6xbf16, #tpu.memory_space<vmem>>, %arg8: memref<1x1x16x6xbf16, #tpu.memory_space<vmem>>, %arg9: memref<1x1x16x6xbf16, #tpu.memory_space<vmem>>, %arg10: memref<1x1x16x6xbf16, #tpu.memory_space<vmem>>, %arg11: memref<1x1x16x6xbf16, #tpu.memory_space<vmem>>, %arg12: memref<1x1x16x4xf32, #tpu.memory_space<vmem>>) attributes {dimension_semantics = [#tpu.dimension_semantics<parallel>, #tpu.dimension_semantics<parallel>], iteration_bounds = array<i64: 2, 4>, scalar_prefetch = 0 : i64, scratch_operands = 0 : i64, tpu.core_type = #tpu.core_type<tc>, window_params = [{pipeline_mode = #tpu.pipeline_mode<synchronous>, transform_indices = @transform_0, window_bounds = array<i64: 9, 16, 16>}, {pipeline_mode = #tpu.pipeline_mode<synchronous>, transform_indices = @transform_1, window_bounds = array<i64: 9, 16, 16>}, {pipeline_mode = #tpu.pipeline_mode<synchronous>, transform_indices = @transform_2, window_bounds = array<i64: 16, 1>}, {pipeline_mode = #tpu.pipeline_mode<synchronous>, transform_indices = @transform_3, window_bounds = array<i64: 16, 1>}, {transform_indices = @transform_4, window_bounds = array<i64: 1, 1, 16, 6>}, {transform_indices = @transform_5, window_bounds = array<i64: 1, 1, 16, 6>}, {transform_indices = @transform_6, window_bounds = array<i64: 1, 1, 16, 6>}, {transform_indices = @transform_7, window_bounds = array<i64: 1, 1, 16, 6>}, {transform_indices = @transform_8, window_bounds = array<i64: 1, 1, 16, 6>}, {transform_indices = @transform_9, window_bounds = array<i64: 1, 1, 16, 6>}, {transform_indices = @transform_10, window_bounds = array<i64: 1, 1, 16, 4>}]} {
    %c0 = arith.constant 0 : index
    %c0_0 = arith.constant 0 : index
    %c0_1 = arith.constant 0 : index
    %c0_2 = arith.constant 0 : index
    %0 = vector.load %arg6[%c0, %c0_0, %c0_1, %c0_2] : memref<1x1x16x6xbf16, #tpu.memory_space<vmem>>, vector<1x1x16x6xbf16>
    %1 = vector.shape_cast %0 : vector<1x1x16x6xbf16> to vector<16x6xbf16>
    %c0_3 = arith.constant 0 : index
    %c0_4 = arith.constant 0 : index
    %c0_5 = arith.constant 0 : index
    %c0_6 = arith.constant 0 : index
    %2 = vector.load %arg9[%c0_3, %c0_4, %c0_5, %c0_6] : memref<1x1x16x6xbf16, #tpu.memory_space<vmem>>, vector<1x1x16x6xbf16>
    %3 = vector.shape_cast %2 : vector<1x1x16x6xbf16> to vector<16x6xbf16>
    %c0_7 = arith.constant 0 : index
    %c0_8 = arith.constant 0 : index
    %c0_9 = arith.constant 0 : index
    %4 = vector.load %arg2[%c0_7, %c0_8, %c0_9] : memref<9x16x16xbf16, #tpu.memory_space<vmem>>, vector<1x16x16xbf16>
    %5 = vector.shape_cast %4 : vector<1x16x16xbf16> to vector<16x16xbf16>
    %6 = vector.extract_strided_slice %1 {offsets = [0, 0], sizes = [16, 4], strides = [1, 1]} : vector<16x6xbf16> to vector<16x4xbf16>
    %cst = arith.constant dense<0.000000e+00> : vector<16x4xf32>
    %7 = tpu.matmul %5, %6, %cst {dimension_numbers = #tpu.dot_dimension_numbers<[1], [0], [0], [1], [0, 0, 1, 1], [], []>} : vector<16x16xbf16>, vector<16x4xbf16>, vector<16x4xf32> -> vector<16x4xf32>
    %c0_10 = arith.constant 0 : index
    %c0_11 = arith.constant 0 : index
    %c0_12 = arith.constant 0 : index
    %8 = vector.load %arg3[%c0_10, %c0_11, %c0_12] : memref<9x16x16xbf16, #tpu.memory_space<vmem>>, vector<1x16x16xbf16>
    %9 = vector.shape_cast %8 : vector<1x16x16xbf16> to vector<16x16xbf16>
    %10 = vector.extract_strided_slice %3 {offsets = [0, 0], sizes = [16, 4], strides = [1, 1]} : vector<16x6xbf16> to vector<16x4xbf16>
    %cst_13 = arith.constant dense<0.000000e+00> : vector<16x4xf32>
    %11 = tpu.matmul %9, %10, %cst_13 {dimension_numbers = #tpu.dot_dimension_numbers<[1], [0], [0], [1], [0, 0, 1, 1], [], []>} : vector<16x16xbf16>, vector<16x4xbf16>, vector<16x4xf32> -> vector<16x4xf32>
    %12 = arith.addf %7, %11 : vector<16x4xf32>
    %c1 = arith.constant 1 : index
    %c0_14 = arith.constant 0 : index
    %c0_15 = arith.constant 0 : index
    %13 = vector.load %arg2[%c1, %c0_14, %c0_15] : memref<9x16x16xbf16, #tpu.memory_space<vmem>>, vector<1x16x16xbf16>
    %14 = vector.shape_cast %13 : vector<1x16x16xbf16> to vector<16x16xbf16>
    %15 = vector.extract_strided_slice %1 {offsets = [0, 1], sizes = [16, 4], strides = [1, 1]} : vector<16x6xbf16> to vector<16x4xbf16>
    %cst_16 = arith.constant dense<0.000000e+00> : vector<16x4xf32>
    %16 = tpu.matmul %14, %15, %cst_16 {dimension_numbers = #tpu.dot_dimension_numbers<[1], [0], [0], [1], [0, 0, 1, 1], [], []>} : vector<16x16xbf16>, vector<16x4xbf16>, vector<16x4xf32> -> vector<16x4xf32>
    %c1_17 = arith.constant 1 : index
    %c0_18 = arith.constant 0 : index
    %c0_19 = arith.constant 0 : index
    %17 = vector.load %arg3[%c1_17, %c0_18, %c0_19] : memref<9x16x16xbf16, #tpu.memory_space<vmem>>, vector<1x16x16xbf16>
    %18 = vector.shape_cast %17 : vector<1x16x16xbf16> to vector<16x16xbf16>
    %19 = vector.extract_strided_slice %3 {offsets = [0, 1], sizes = [16, 4], strides = [1, 1]} : vector<16x6xbf16> to vector<16x4xbf16>
    %cst_20 = arith.constant dense<0.000000e+00> : vector<16x4xf32>
    %20 = tpu.matmul %18, %19, %cst_20 {dimension_numbers = #tpu.dot_dimension_numbers<[1], [0], [0], [1], [0, 0, 1, 1], [], []>} : vector<16x16xbf16>, vector<16x4xbf16>, vector<16x4xf32> -> vector<16x4xf32>
    %21 = arith.addf %16, %20 : vector<16x4xf32>
    %22 = arith.addf %12, %21 : vector<16x4xf32>
    %c2 = arith.constant 2 : index
    %c0_21 = arith.constant 0 : index
    %c0_22 = arith.constant 0 : index
    %23 = vector.load %arg2[%c2, %c0_21, %c0_22] : memref<9x16x16xbf16, #tpu.memory_space<vmem>>, vector<1x16x16xbf16>
    %24 = vector.shape_cast %23 : vector<1x16x16xbf16> to vector<16x16xbf16>
    %25 = vector.extract_strided_slice %1 {offsets = [0, 2], sizes = [16, 4], strides = [1, 1]} : vector<16x6xbf16> to vector<16x4xbf16>
    %cst_23 = arith.constant dense<0.000000e+00> : vector<16x4xf32>
    %26 = tpu.matmul %24, %25, %cst_23 {dimension_numbers = #tpu.dot_dimension_numbers<[1], [0], [0], [1], [0, 0, 1, 1], [], []>} : vector<16x16xbf16>, vector<16x4xbf16>, vector<16x4xf32> -> vector<16x4xf32>
    %c2_24 = arith.constant 2 : index
    %c0_25 = arith.constant 0 : index
    %c0_26 = arith.constant 0 : index
    %27 = vector.load %arg3[%c2_24, %c0_25, %c0_26] : memref<9x16x16xbf16, #tpu.memory_space<vmem>>, vector<1x16x16xbf16>
    %28 = vector.shape_cast %27 : vector<1x16x16xbf16> to vector<16x16xbf16>
    %29 = vector.extract_strided_slice %3 {offsets = [0, 2], sizes = [16, 4], strides = [1, 1]} : vector<16x6xbf16> to vector<16x4xbf16>
    %cst_27 = arith.constant dense<0.000000e+00> : vector<16x4xf32>
    %30 = tpu.matmul %28, %29, %cst_27 {dimension_numbers = #tpu.dot_dimension_numbers<[1], [0], [0], [1], [0, 0, 1, 1], [], []>} : vector<16x16xbf16>, vector<16x4xbf16>, vector<16x4xf32> -> vector<16x4xf32>
    %31 = arith.addf %26, %30 : vector<16x4xf32>
    %32 = arith.addf %22, %31 : vector<16x4xf32>
    %c0_28 = arith.constant 0 : index
    %c0_29 = arith.constant 0 : index
    %c0_30 = arith.constant 0 : index
    %c0_31 = arith.constant 0 : index
    %33 = vector.load %arg7[%c0_28, %c0_29, %c0_30, %c0_31] : memref<1x1x16x6xbf16, #tpu.memory_space<vmem>>, vector<1x1x16x6xbf16>
    %34 = vector.shape_cast %33 : vector<1x1x16x6xbf16> to vector<16x6xbf16>
    %c0_32 = arith.constant 0 : index
    %c0_33 = arith.constant 0 : index
    %c0_34 = arith.constant 0 : index
    %c0_35 = arith.constant 0 : index
    %35 = vector.load %arg10[%c0_32, %c0_33, %c0_34, %c0_35] : memref<1x1x16x6xbf16, #tpu.memory_space<vmem>>, vector<1x1x16x6xbf16>
    %36 = vector.shape_cast %35 : vector<1x1x16x6xbf16> to vector<16x6xbf16>
    %c3 = arith.constant 3 : index
    %c0_36 = arith.constant 0 : index
    %c0_37 = arith.constant 0 : index
    %37 = vector.load %arg2[%c3, %c0_36, %c0_37] : memref<9x16x16xbf16, #tpu.memory_space<vmem>>, vector<1x16x16xbf16>
    %38 = vector.shape_cast %37 : vector<1x16x16xbf16> to vector<16x16xbf16>
    %39 = vector.extract_strided_slice %34 {offsets = [0, 0], sizes = [16, 4], strides = [1, 1]} : vector<16x6xbf16> to vector<16x4xbf16>
    %cst_38 = arith.constant dense<0.000000e+00> : vector<16x4xf32>
    %40 = tpu.matmul %38, %39, %cst_38 {dimension_numbers = #tpu.dot_dimension_numbers<[1], [0], [0], [1], [0, 0, 1, 1], [], []>} : vector<16x16xbf16>, vector<16x4xbf16>, vector<16x4xf32> -> vector<16x4xf32>
    %c3_39 = arith.constant 3 : index
    %c0_40 = arith.constant 0 : index
    %c0_41 = arith.constant 0 : index
    %41 = vector.load %arg3[%c3_39, %c0_40, %c0_41] : memref<9x16x16xbf16, #tpu.memory_space<vmem>>, vector<1x16x16xbf16>
    %42 = vector.shape_cast %41 : vector<1x16x16xbf16> to vector<16x16xbf16>
    %43 = vector.extract_strided_slice %36 {offsets = [0, 0], sizes = [16, 4], strides = [1, 1]} : vector<16x6xbf16> to vector<16x4xbf16>
    %cst_42 = arith.constant dense<0.000000e+00> : vector<16x4xf32>
    %44 = tpu.matmul %42, %43, %cst_42 {dimension_numbers = #tpu.dot_dimension_numbers<[1], [0], [0], [1], [0, 0, 1, 1], [], []>} : vector<16x16xbf16>, vector<16x4xbf16>, vector<16x4xf32> -> vector<16x4xf32>
    %45 = arith.addf %40, %44 : vector<16x4xf32>
    %46 = arith.addf %32, %45 : vector<16x4xf32>
    %c4 = arith.constant 4 : index
    %c0_43 = arith.constant 0 : index
    %c0_44 = arith.constant 0 : index
    %47 = vector.load %arg2[%c4, %c0_43, %c0_44] : memref<9x16x16xbf16, #tpu.memory_space<vmem>>, vector<1x16x16xbf16>
    %48 = vector.shape_cast %47 : vector<1x16x16xbf16> to vector<16x16xbf16>
    %49 = vector.extract_strided_slice %34 {offsets = [0, 1], sizes = [16, 4], strides = [1, 1]} : vector<16x6xbf16> to vector<16x4xbf16>
    %cst_45 = arith.constant dense<0.000000e+00> : vector<16x4xf32>
    %50 = tpu.matmul %48, %49, %cst_45 {dimension_numbers = #tpu.dot_dimension_numbers<[1], [0], [0], [1], [0, 0, 1, 1], [], []>} : vector<16x16xbf16>, vector<16x4xbf16>, vector<16x4xf32> -> vector<16x4xf32>
    %c4_46 = arith.constant 4 : index
    %c0_47 = arith.constant 0 : index
    %c0_48 = arith.constant 0 : index
    %51 = vector.load %arg3[%c4_46, %c0_47, %c0_48] : memref<9x16x16xbf16, #tpu.memory_space<vmem>>, vector<1x16x16xbf16>
    %52 = vector.shape_cast %51 : vector<1x16x16xbf16> to vector<16x16xbf16>
    %53 = vector.extract_strided_slice %36 {offsets = [0, 1], sizes = [16, 4], strides = [1, 1]} : vector<16x6xbf16> to vector<16x4xbf16>
    %cst_49 = arith.constant dense<0.000000e+00> : vector<16x4xf32>
    %54 = tpu.matmul %52, %53, %cst_49 {dimension_numbers = #tpu.dot_dimension_numbers<[1], [0], [0], [1], [0, 0, 1, 1], [], []>} : vector<16x16xbf16>, vector<16x4xbf16>, vector<16x4xf32> -> vector<16x4xf32>
    %55 = arith.addf %50, %54 : vector<16x4xf32>
    %56 = arith.addf %46, %55 : vector<16x4xf32>
    %c5 = arith.constant 5 : index
    %c0_50 = arith.constant 0 : index
    %c0_51 = arith.constant 0 : index
    %57 = vector.load %arg2[%c5, %c0_50, %c0_51] : memref<9x16x16xbf16, #tpu.memory_space<vmem>>, vector<1x16x16xbf16>
    %58 = vector.shape_cast %57 : vector<1x16x16xbf16> to vector<16x16xbf16>
    %59 = vector.extract_strided_slice %34 {offsets = [0, 2], sizes = [16, 4], strides = [1, 1]} : vector<16x6xbf16> to vector<16x4xbf16>
    %cst_52 = arith.constant dense<0.000000e+00> : vector<16x4xf32>
    %60 = tpu.matmul %58, %59, %cst_52 {dimension_numbers = #tpu.dot_dimension_numbers<[1], [0], [0], [1], [0, 0, 1, 1], [], []>} : vector<16x16xbf16>, vector<16x4xbf16>, vector<16x4xf32> -> vector<16x4xf32>
    %c5_53 = arith.constant 5 : index
    %c0_54 = arith.constant 0 : index
    %c0_55 = arith.constant 0 : index
    %61 = vector.load %arg3[%c5_53, %c0_54, %c0_55] : memref<9x16x16xbf16, #tpu.memory_space<vmem>>, vector<1x16x16xbf16>
    %62 = vector.shape_cast %61 : vector<1x16x16xbf16> to vector<16x16xbf16>
    %63 = vector.extract_strided_slice %36 {offsets = [0, 2], sizes = [16, 4], strides = [1, 1]} : vector<16x6xbf16> to vector<16x4xbf16>
    %cst_56 = arith.constant dense<0.000000e+00> : vector<16x4xf32>
    %64 = tpu.matmul %62, %63, %cst_56 {dimension_numbers = #tpu.dot_dimension_numbers<[1], [0], [0], [1], [0, 0, 1, 1], [], []>} : vector<16x16xbf16>, vector<16x4xbf16>, vector<16x4xf32> -> vector<16x4xf32>
    %65 = arith.addf %60, %64 : vector<16x4xf32>
    %66 = arith.addf %56, %65 : vector<16x4xf32>
    %c0_57 = arith.constant 0 : index
    %c0_58 = arith.constant 0 : index
    %c0_59 = arith.constant 0 : index
    %c0_60 = arith.constant 0 : index
    %67 = vector.load %arg8[%c0_57, %c0_58, %c0_59, %c0_60] : memref<1x1x16x6xbf16, #tpu.memory_space<vmem>>, vector<1x1x16x6xbf16>
    %68 = vector.shape_cast %67 : vector<1x1x16x6xbf16> to vector<16x6xbf16>
    %c0_61 = arith.constant 0 : index
    %c0_62 = arith.constant 0 : index
    %c0_63 = arith.constant 0 : index
    %c0_64 = arith.constant 0 : index
    %69 = vector.load %arg11[%c0_61, %c0_62, %c0_63, %c0_64] : memref<1x1x16x6xbf16, #tpu.memory_space<vmem>>, vector<1x1x16x6xbf16>
    %70 = vector.shape_cast %69 : vector<1x1x16x6xbf16> to vector<16x6xbf16>
    %c6 = arith.constant 6 : index
    %c0_65 = arith.constant 0 : index
    %c0_66 = arith.constant 0 : index
    %71 = vector.load %arg2[%c6, %c0_65, %c0_66] : memref<9x16x16xbf16, #tpu.memory_space<vmem>>, vector<1x16x16xbf16>
    %72 = vector.shape_cast %71 : vector<1x16x16xbf16> to vector<16x16xbf16>
    %73 = vector.extract_strided_slice %68 {offsets = [0, 0], sizes = [16, 4], strides = [1, 1]} : vector<16x6xbf16> to vector<16x4xbf16>
    %cst_67 = arith.constant dense<0.000000e+00> : vector<16x4xf32>
    %74 = tpu.matmul %72, %73, %cst_67 {dimension_numbers = #tpu.dot_dimension_numbers<[1], [0], [0], [1], [0, 0, 1, 1], [], []>} : vector<16x16xbf16>, vector<16x4xbf16>, vector<16x4xf32> -> vector<16x4xf32>
    %c6_68 = arith.constant 6 : index
    %c0_69 = arith.constant 0 : index
    %c0_70 = arith.constant 0 : index
    %75 = vector.load %arg3[%c6_68, %c0_69, %c0_70] : memref<9x16x16xbf16, #tpu.memory_space<vmem>>, vector<1x16x16xbf16>
    %76 = vector.shape_cast %75 : vector<1x16x16xbf16> to vector<16x16xbf16>
    %77 = vector.extract_strided_slice %70 {offsets = [0, 0], sizes = [16, 4], strides = [1, 1]} : vector<16x6xbf16> to vector<16x4xbf16>
    %cst_71 = arith.constant dense<0.000000e+00> : vector<16x4xf32>
    %78 = tpu.matmul %76, %77, %cst_71 {dimension_numbers = #tpu.dot_dimension_numbers<[1], [0], [0], [1], [0, 0, 1, 1], [], []>} : vector<16x16xbf16>, vector<16x4xbf16>, vector<16x4xf32> -> vector<16x4xf32>
    %79 = arith.addf %74, %78 : vector<16x4xf32>
    %80 = arith.addf %66, %79 : vector<16x4xf32>
    %c7 = arith.constant 7 : index
    %c0_72 = arith.constant 0 : index
    %c0_73 = arith.constant 0 : index
    %81 = vector.load %arg2[%c7, %c0_72, %c0_73] : memref<9x16x16xbf16, #tpu.memory_space<vmem>>, vector<1x16x16xbf16>
    %82 = vector.shape_cast %81 : vector<1x16x16xbf16> to vector<16x16xbf16>
    %83 = vector.extract_strided_slice %68 {offsets = [0, 1], sizes = [16, 4], strides = [1, 1]} : vector<16x6xbf16> to vector<16x4xbf16>
    %cst_74 = arith.constant dense<0.000000e+00> : vector<16x4xf32>
    %84 = tpu.matmul %82, %83, %cst_74 {dimension_numbers = #tpu.dot_dimension_numbers<[1], [0], [0], [1], [0, 0, 1, 1], [], []>} : vector<16x16xbf16>, vector<16x4xbf16>, vector<16x4xf32> -> vector<16x4xf32>
    %c7_75 = arith.constant 7 : index
    %c0_76 = arith.constant 0 : index
    %c0_77 = arith.constant 0 : index
    %85 = vector.load %arg3[%c7_75, %c0_76, %c0_77] : memref<9x16x16xbf16, #tpu.memory_space<vmem>>, vector<1x16x16xbf16>
    %86 = vector.shape_cast %85 : vector<1x16x16xbf16> to vector<16x16xbf16>
    %87 = vector.extract_strided_slice %70 {offsets = [0, 1], sizes = [16, 4], strides = [1, 1]} : vector<16x6xbf16> to vector<16x4xbf16>
    %cst_78 = arith.constant dense<0.000000e+00> : vector<16x4xf32>
    %88 = tpu.matmul %86, %87, %cst_78 {dimension_numbers = #tpu.dot_dimension_numbers<[1], [0], [0], [1], [0, 0, 1, 1], [], []>} : vector<16x16xbf16>, vector<16x4xbf16>, vector<16x4xf32> -> vector<16x4xf32>
    %89 = arith.addf %84, %88 : vector<16x4xf32>
    %90 = arith.addf %80, %89 : vector<16x4xf32>
    %c8 = arith.constant 8 : index
    %c0_79 = arith.constant 0 : index
    %c0_80 = arith.constant 0 : index
    %91 = vector.load %arg2[%c8, %c0_79, %c0_80] : memref<9x16x16xbf16, #tpu.memory_space<vmem>>, vector<1x16x16xbf16>
    %92 = vector.shape_cast %91 : vector<1x16x16xbf16> to vector<16x16xbf16>
    %93 = vector.extract_strided_slice %68 {offsets = [0, 2], sizes = [16, 4], strides = [1, 1]} : vector<16x6xbf16> to vector<16x4xbf16>
    %cst_81 = arith.constant dense<0.000000e+00> : vector<16x4xf32>
    %94 = tpu.matmul %92, %93, %cst_81 {dimension_numbers = #tpu.dot_dimension_numbers<[1], [0], [0], [1], [0, 0, 1, 1], [], []>} : vector<16x16xbf16>, vector<16x4xbf16>, vector<16x4xf32> -> vector<16x4xf32>
    %c8_82 = arith.constant 8 : index
    %c0_83 = arith.constant 0 : index
    %c0_84 = arith.constant 0 : index
    %95 = vector.load %arg3[%c8_82, %c0_83, %c0_84] : memref<9x16x16xbf16, #tpu.memory_space<vmem>>, vector<1x16x16xbf16>
    %96 = vector.shape_cast %95 : vector<1x16x16xbf16> to vector<16x16xbf16>
    %97 = vector.extract_strided_slice %70 {offsets = [0, 2], sizes = [16, 4], strides = [1, 1]} : vector<16x6xbf16> to vector<16x4xbf16>
    %cst_85 = arith.constant dense<0.000000e+00> : vector<16x4xf32>
    %98 = tpu.matmul %96, %97, %cst_85 {dimension_numbers = #tpu.dot_dimension_numbers<[1], [0], [0], [1], [0, 0, 1, 1], [], []>} : vector<16x16xbf16>, vector<16x4xbf16>, vector<16x4xf32> -> vector<16x4xf32>
    %99 = arith.addf %94, %98 : vector<16x4xf32>
    %100 = arith.addf %90, %99 : vector<16x4xf32>
    %c0_86 = arith.constant 0 : index
    %c0_87 = arith.constant 0 : index
    %101 = vector.load %arg4[%c0_86, %c0_87] : memref<16x1xf32, #tpu.memory_space<vmem>>, vector<16x1xf32>
    %102 = vector.broadcast %101 : vector<16x1xf32> to vector<16x4xf32>
    %103 = arith.mulf %100, %102 : vector<16x4xf32>
    %c0_88 = arith.constant 0 : index
    %c0_89 = arith.constant 0 : index
    %104 = vector.load %arg5[%c0_88, %c0_89] : memref<16x1xf32, #tpu.memory_space<vmem>>, vector<16x1xf32>
    %105 = vector.broadcast %104 : vector<16x1xf32> to vector<16x4xf32>
    %106 = arith.addf %103, %105 : vector<16x4xf32>
    %cst_90 = arith.constant 0.000000e+00 : f32
    %107 = vector.broadcast %cst_90 : f32 to vector<16x4xf32>
    %108 = arith.maximumf %106, %107 : vector<16x4xf32>
    %c0_91 = arith.constant 0 : index
    %c0_92 = arith.constant 0 : index
    %c0_93 = arith.constant 0 : index
    %c0_94 = arith.constant 0 : index
    %109 = vector.load %arg12[%c0_91, %c0_92, %c0_93, %c0_94] : memref<1x1x16x4xf32, #tpu.memory_space<vmem>>, vector<1x1x16x4xf32>
    %110 = vector.shape_cast %109 : vector<1x1x16x4xf32> to vector<16x4xf32>
    %111 = vector.shape_cast %108 : vector<16x4xf32> to vector<1x1x16x4xf32>
    tpu.vector_store %arg12[%c0_91, %c0_92, %c0_93, %c0_94], %111 {strides = array<i32>} : memref<1x1x16x4xf32, #tpu.memory_space<vmem>>, vector<1x1x16x4xf32>,
    return
  }
  func.func @transform_0(%arg0: i32, %arg1: i32) -> (i32, i32, i32) {
    %c0_i32 = arith.constant 0 : i32
    %c0_i32_0 = arith.constant 0 : i32
    %c0_i32_1 = arith.constant 0 : i32
    %c0_i32_2 = arith.constant 0 : i32
    return %c0_i32, %c0_i32_0, %c0_i32_1 : i32, i32, i32
  }
  func.func @transform_1(%arg0: i32, %arg1: i32) -> (i32, i32, i32) {
    %c0_i32 = arith.constant 0 : i32
    %c0_i32_0 = arith.constant 0 : i32
    %c0_i32_1 = arith.constant 0 : i32
    %c0_i32_2 = arith.constant 0 : i32
    return %c0_i32, %c0_i32_0, %c0_i32_1 : i32, i32, i32
  }
  func.func @transform_2(%arg0: i32, %arg1: i32) -> (i32, i32) {
    %c0_i32 = arith.constant 0 : i32
    %c0_i32_0 = arith.constant 0 : i32
    %c0_i32_1 = arith.constant 0 : i32
    return %c0_i32, %c0_i32_0 : i32, i32
  }
  func.func @transform_3(%arg0: i32, %arg1: i32) -> (i32, i32) {
    %c0_i32 = arith.constant 0 : i32
    %c0_i32_0 = arith.constant 0 : i32
    %c0_i32_1 = arith.constant 0 : i32
    return %c0_i32, %c0_i32_0 : i32, i32
  }
  func.func @transform_4(%arg0: i32, %arg1: i32) -> (i32, i32, i32, i32) {
    %c0_i32 = arith.constant 0 : i32
    %0 = arith.addi %arg1, %c0_i32 : i32
    %c0_i32_0 = arith.constant 0 : i32
    %c0_i32_1 = arith.constant 0 : i32
    %c0_i32_2 = arith.constant 0 : i32
    return %arg0, %0, %c0_i32_0, %c0_i32_1 : i32, i32, i32, i32
  }
  func.func @transform_5(%arg0: i32, %arg1: i32) -> (i32, i32, i32, i32) {
    %c1_i32 = arith.constant 1 : i32
    %0 = arith.addi %arg1, %c1_i32 : i32
    %c0_i32 = arith.constant 0 : i32
    %c0_i32_0 = arith.constant 0 : i32
    %c0_i32_1 = arith.constant 0 : i32
    return %arg0, %0, %c0_i32, %c0_i32_0 : i32, i32, i32, i32
  }
  func.func @transform_6(%arg0: i32, %arg1: i32) -> (i32, i32, i32, i32) {
    %c2_i32 = arith.constant 2 : i32
    %0 = arith.addi %arg1, %c2_i32 : i32
    %c0_i32 = arith.constant 0 : i32
    %c0_i32_0 = arith.constant 0 : i32
    %c0_i32_1 = arith.constant 0 : i32
    return %arg0, %0, %c0_i32, %c0_i32_0 : i32, i32, i32, i32
  }
  func.func @transform_7(%arg0: i32, %arg1: i32) -> (i32, i32, i32, i32) {
    %c0_i32 = arith.constant 0 : i32
    %0 = arith.addi %arg1, %c0_i32 : i32
    %c0_i32_0 = arith.constant 0 : i32
    %c0_i32_1 = arith.constant 0 : i32
    %c0_i32_2 = arith.constant 0 : i32
    return %arg0, %0, %c0_i32_0, %c0_i32_1 : i32, i32, i32, i32
  }
  func.func @transform_8(%arg0: i32, %arg1: i32) -> (i32, i32, i32, i32) {
    %c1_i32 = arith.constant 1 : i32
    %0 = arith.addi %arg1, %c1_i32 : i32
    %c0_i32 = arith.constant 0 : i32
    %c0_i32_0 = arith.constant 0 : i32
    %c0_i32_1 = arith.constant 0 : i32
    return %arg0, %0, %c0_i32, %c0_i32_0 : i32, i32, i32, i32
  }
  func.func @transform_9(%arg0: i32, %arg1: i32) -> (i32, i32, i32, i32) {
    %c2_i32 = arith.constant 2 : i32
    %0 = arith.addi %arg1, %c2_i32 : i32
    %c0_i32 = arith.constant 0 : i32
    %c0_i32_0 = arith.constant 0 : i32
    %c0_i32_1 = arith.constant 0 : i32
    return %arg0, %0, %c0_i32, %c0_i32_0 : i32, i32, i32, i32
  }
  func.func @transform_10(%arg0: i32, %arg1: i32) -> (i32, i32, i32, i32) {
    %c0_i32 = arith.constant 0 : i32
    %c0_i32_0 = arith.constant 0 : i32
    %c0_i32_1 = arith.constant 0 : i32
    return %arg0, %arg1, %c0_i32, %c0_i32_0 : i32, i32, i32, i32
  }
}

</mosaic_0001>

<llo_original>
// kernel: stem_block.5
$region0: #{stem_block.5}
  #allocation0 [shape = 'u32[]', space=smem, size = 0x4, offset = 0x4, fixed_abs, tag = 'smem constant byte address 0x4 - core index']
  #allocation1 [shape = 'u32[144,128]{1,0:T(1,128)}', space=vmem, size = 0x12000, scoped, tag = 'internal scratch']
  %s0 = inlined_call_operand.vmem [shape: bf16[9,16,8], index: 0, kind: input, shape index: {}]
  %s1 = inlined_call_operand.vmem [shape: f32[16,1], index: 1, kind: input, shape index: {}]
  %s2 = inlined_call_operand.vmem [shape: f32[16,1], index: 2, kind: input, shape index: {}]
  %s3 = inlined_call_operand.vmem [shape: bf16[2,10,8,5], index: 3, kind: input, shape index: {}, may-alias: {3,5,7}]
  %s4 = inlined_call_operand.vmem [shape: bf16[2,10,8,5], index: 4, kind: input, shape index: {}, may-alias: {4,6,8}]
  %s5 = inlined_call_operand.vmem [shape: bf16[2,10,8,5], index: 5, kind: input, shape index: {}, may-alias: {3,5,7}]
  %s6 = inlined_call_operand.vmem [shape: bf16[2,10,8,5], index: 6, kind: input, shape index: {}, may-alias: {4,6,8}]
  %s7 = inlined_call_operand.vmem [shape: bf16[2,10,8,5], index: 7, kind: input, shape index: {}, may-alias: {3,5,7}]
  %s8 = inlined_call_operand.vmem [shape: bf16[2,10,8,5], index: 8, kind: input, shape index: {}, may-alias: {4,6,8}]
  %s9 = inlined_call_operand.vmem [shape: bf16[2,4,16,4], index: 9, kind: output, shape index: {}]
  %s10 = sld [smem:[#allocation0]]
  $region69: #{stem_block.5} parent=0
    _
  %s12 = ssub.s32 1, %s10
  %s13 = scalar_select 0, %s12, %s10
  loop: start=0, step=1, limit=10
  $region2: #{stem_block.5} parent=0 // loop_pre_header
    _
  $region3: #{stem_block.5} parent=0 // loop_header
    %s15 = sphi 0, %s19
    %p16 = scmp.ge.s32.totalorder %s15, 10
    %s22 = sphi 0, %s34
    %s23 = sphi 0, %s30
    %s24 = sphi 0, %s22
    %s25 = sphi 0, %s23
    %s26 = sphi 0, %s24
    %s27 = sphi 0, %s25
    %s35 = sphi 0, %s35
    %s37 = sphi 0, %s35
    %s38 = sphi 0, %s37
    %s52 = sphi 0, %s38
    %s56 = sphi 0, %s56
    %s58 = sphi 0, %s56
    %s59 = sphi 0, %s58
    %s73 = sphi 0, %s59
    %s77 = sphi 0, %s77
    %s79 = sphi 0, %s77
    %s80 = sphi 0, %s79
    %s94 = sphi 0, %s80
    %s104 = sphi 0, %s106
    %s107 = sphi 0, %s104
    %s108 = sphi 0, %s107
    %s124 = sphi 0, %s108
    %s134 = sphi 0, %s136
    %s137 = sphi 0, %s134
    %s138 = sphi 0, %s137
    %s154 = sphi 0, %s138
    %s166 = sphi 0, %s168
    %s169 = sphi 0, %s166
    %s170 = sphi 0, %s169
    %s186 = sphi 0, %s170
    %s198 = sphi 0, %s200
    %s201 = sphi 0, %s198
    %s202 = sphi 0, %s201
    %s218 = sphi 0, %s202
    %s230 = sphi 0, %s232
    %s233 = sphi 0, %s230
    %s234 = sphi 0, %s233
    %s250 = sphi 0, %s234
    %s262 = sphi 0, %s264
    %s265 = sphi 0, %s262
    %s266 = sphi 0, %s265
    %s282 = sphi 0, %s266
    %s290 = sphi 0, %s292
    %s293 = sphi 0, %s290
    %s294 = sphi 0, %s293
    %s310 = sphi 0, %s294
  $region4: #{stem_block.5} parent=0 // loop_header_branch
    %18 = sbr.rel (%p16) target = $region8
  $region5: #{stem_block.5} parent=0 // loop_body
    %s20 = ssub.s32 %s15, 1
    %s21 = ssub.s32 %s15, 2
    %s28 = sadd.s32 1, %s23
    %p29 = scmp.ge.s32.totalorder %s28, 4
    %s30 = scalar_select %p29, 0, %s28
    %s31 = sadd.s32 1, %s22
    %s32 = scalar_select %p29, %s31, %s22
    %p33 = scmp.ge.s32.totalorder %s32, 2
    %s34 = scalar_select %p33, 0, %s32
    %s36 = sadd.s32 %s35, 1
    %p39 = scmp.eq.s32.totalorder %s15, 7
    %p40 = scmp.ne.s32.totalorder %s35, %s37
    %p41 = scmp.eq.s32.totalorder %s15, 0
    %p42 = por %p40, %p41
    %p43 = scmp.ne.s32.totalorder %s35, %s37
    %p44 = scmp.eq.s32.totalorder %s20, 7
    %p45 = por %p43, %p44
    %p46 = scmp.ne.s32.totalorder %s37, %s38
    %p47 = scmp.eq.s32.totalorder %s20, 0
    %p48 = por %p46, %p47
    %p49 = scmp.ne.s32.totalorder %s37, %s38
    %p50 = scmp.eq.s32.totalorder %s21, 7
    %p51 = por %p49, %p50
    %p53 = scmp.ne.s32.totalorder %s38, %s52
    %p54 = scmp.eq.s32.totalorder %s21, 0
    %p55 = por %p53, %p54
    %s57 = sadd.s32 %s56, 1
    %p60 = scmp.eq.s32.totalorder %s15, 7
    %p61 = scmp.ne.s32.totalorder %s56, %s58
    %p62 = scmp.eq.s32.totalorder %s15, 0
    %p63 = por %p61, %p62
    %p64 = scmp.ne.s32.totalorder %s56, %s58
    %p65 = scmp.eq.s32.totalorder %s20, 7
    %p66 = por %p64, %p65
    %p67 = scmp.ne.s32.totalorder %s58, %s59
    %p68 = scmp.eq.s32.totalorder %s20, 0
    %p69 = por %p67, %p68
    %p70 = scmp.ne.s32.totalorder %s58, %s59
    %p71 = scmp.eq.s32.totalorder %s21, 7
    %p72 = por %p70, %p71
    %p74 = scmp.ne.s32.totalorder %s59, %s73
    %p75 = scmp.eq.s32.totalorder %s21, 0
    %p76 = por %p74, %p75
    %s78 = sadd.s32 %s77, 1
    %p81 = scmp.eq.s32.totalorder %s15, 7
    %p82 = scmp.ne.s32.totalorder %s77, %s79
    %p83 = scmp.eq.s32.totalorder %s15, 0
    %p84 = por %p82, %p83
    %p85 = scmp.ne.s32.totalorder %s77, %s79
    %p86 = scmp.eq.s32.totalorder %s20, 7
    %p87 = por %p85, %p86
    %p88 = scmp.ne.s32.totalorder %s79, %s80
    %p89 = scmp.eq.s32.totalorder %s20, 0
    %p90 = por %p88, %p89
    %p91 = scmp.ne.s32.totalorder %s79, %s80
    %p92 = scmp.eq.s32.totalorder %s21, 7
    %p93 = por %p91, %p92
    %p95 = scmp.ne.s32.totalorder %s80, %s94
    %p96 = scmp.eq.s32.totalorder %s21, 0
    %p97 = por %p95, %p96
    %s98 = smul.u32 %s23, 2
    %s99 = smul.u32 %s30, 2
    %s100 = ssub.s32 %s22, %s34
    %s101 = ssub.s32 %s98, %s99
    %s102 = sor.u32 %s100, %s101
    %p103 = scmp.eq.s32.totalorder %s102, 0
    %s105 = sadd.s32 %s104, 1
    %s106 = scalar_select %p103, %s104, %s105
    %p109 = pneg %p103
    %p110 = scmp.eq.s32.totalorder %s15, 7
    %p111 = por %p109, %p110
    %p112 = scmp.ne.s32.totalorder %s104, %s107
    %p113 = scmp.eq.s32.totalorder %s15, 0
    %p114 = por %p112, %p113
    %p115 = scmp.ne.s32.totalorder %s104, %s107
    %p116 = scmp.eq.s32.totalorder %s20, 7
    %p117 = por %p115, %p116
    %p118 = scmp.ne.s32.totalorder %s107, %s108
    %p119 = scmp.eq.s32.totalorder %s20, 0
    %p120 = por %p118, %p119
    %p121 = scmp.ne.s32.totalorder %s107, %s108
    %p122 = scmp.eq.s32.totalorder %s21, 7
    %p123 = por %p121, %p122
    %p125 = scmp.ne.s32.totalorder %s108, %s124
    %p126 = scmp.eq.s32.totalorder %s21, 0
    %p127 = por %p125, %p126
    %s128 = smul.u32 %s23, 2
    %s129 = smul.u32 %s30, 2
    %s130 = ssub.s32 %s22, %s34
    %s131 = ssub.s32 %s128, %s129
    %s132 = sor.u32 %s130, %s131
    %p133 = scmp.eq.s32.totalorder %s132, 0
    %s135 = sadd.s32 %s134, 1
    %s136 = scalar_select %p133, %s134, %s135
    %p139 = pneg %p133
    %p140 = scmp.eq.s32.totalorder %s15, 7
    %p141 = por %p139, %p140
    %p142 = scmp.ne.s32.totalorder %s134, %s137
    %p143 = scmp.eq.s32.totalorder %s15, 0
    %p144 = por %p142, %p143
    %p145 = scmp.ne.s32.totalorder %s134, %s137
    %p146 = scmp.eq.s32.totalorder %s20, 7
    %p147 = por %p145, %p146
    %p148 = scmp.ne.s32.totalorder %s137, %s138
    %p149 = scmp.eq.s32.totalorder %s20, 0
    %p150 = por %p148, %p149
    %p151 = scmp.ne.s32.totalorder %s137, %s138
    %p152 = scmp.eq.s32.totalorder %s21, 7
    %p153 = por %p151, %p152
    %p155 = scmp.ne.s32.totalorder %s138, %s154
    %p156 = scmp.eq.s32.totalorder %s21, 0
    %p157 = por %p155, %p156
    %s158 = smul.u32 %s23, 2
    %s159 = sadd.s32 %s158, 1
    %s160 = smul.u32 %s30, 2
    %s161 = sadd.s32 %s160, 1
    %s162 = ssub.s32 %s22, %s34
    %s163 = ssub.s32 %s159, %s161
    %s164 = sor.u32 %s162, %s163
    %p165 = scmp.eq.s32.totalorder %s164, 0
    %s167 = sadd.s32 %s166, 1
    %s168 = scalar_select %p165, %s166, %s167
    %p171 = pneg %p165
    %p172 = scmp.eq.s32.totalorder %s15, 7
    %p173 = por %p171, %p172
    %p174 = scmp.ne.s32.totalorder %s166, %s169
    %p175 = scmp.eq.s32.totalorder %s15, 0
    %p176 = por %p174, %p175
    %p177 = scmp.ne.s32.totalorder %s166, %s169
    %p178 = scmp.eq.s32.totalorder %s20, 7
    %p179 = por %p177, %p178
    %p180 = scmp.ne.s32.totalorder %s169, %s170
    %p181 = scmp.eq.s32.totalorder %s20, 0
    %p182 = por %p180, %p181
    %p183 = scmp.ne.s32.totalorder %s169, %s170
    %p184 = scmp.eq.s32.totalorder %s21, 7
    %p185 = por %p183, %p184
    %p187 = scmp.ne.s32.totalorder %s170, %s186
    %p188 = scmp.eq.s32.totalorder %s21, 0
    %p189 = por %p187, %p188
    %s190 = smul.u32 %s23, 2
    %s191 = sadd.s32 %s190, 1
    %s192 = smul.u32 %s30, 2
    %s193 = sadd.s32 %s192, 1
    %s194 = ssub.s32 %s22, %s34
    %s195 = ssub.s32 %s191, %s193
    %s196 = sor.u32 %s194, %s195
    %p197 = scmp.eq.s32.totalorder %s196, 0
    %s199 = sadd.s32 %s198, 1
    %s200 = scalar_select %p197, %s198, %s199
    %p203 = pneg %p197
    %p204 = scmp.eq.s32.totalorder %s15, 7
    %p205 = por %p203, %p204
    %p206 = scmp.ne.s32.totalorder %s198, %s201
    %p207 = scmp.eq.s32.totalorder %s15, 0
    %p208 = por %p206, %p207
    %p209 = scmp.ne.s32.totalorder %s198, %s201
    %p210 = scmp.eq.s32.totalorder %s20, 7
    %p211 = por %p209, %p210
    %p212 = scmp.ne.s32.totalorder %s201, %s202
    %p213 = scmp.eq.s32.totalorder %s20, 0
    %p214 = por %p212, %p213
    %p215 = scmp.ne.s32.totalorder %s201, %s202
    %p216 = scmp.eq.s32.totalorder %s21, 7
    %p217 = por %p215, %p216
    %p219 = scmp.ne.s32.totalorder %s202, %s218
    %p220 = scmp.eq.s32.totalorder %s21, 0
    %p221 = por %p219, %p220
    %s222 = smul.u32 %s23, 2
    %s223 = sadd.s32 %s222, 2
    %s224 = smul.u32 %s30, 2
    %s225 = sadd.s32 %s224, 2
    %s226 = ssub.s32 %s22, %s34
    %s227 = ssub.s32 %s223, %s225
    %s228 = sor.u32 %s226, %s227
    %p229 = scmp.eq.s32.totalorder %s228, 0
    %s231 = sadd.s32 %s230, 1
    %s232 = scalar_select %p229, %s230, %s231
    %p235 = pneg %p229
    %p236 = scmp.eq.s32.totalorder %s15, 7
    %p237 = por %p235, %p236
    %p238 = scmp.ne.s32.totalorder %s230, %s233
    %p239 = scmp.eq.s32.totalorder %s15, 0
    %p240 = por %p238, %p239
    %p241 = scmp.ne.s32.totalorder %s230, %s233
    %p242 = scmp.eq.s32.totalorder %s20, 7
    %p243 = por %p241, %p242
    %p244 = scmp.ne.s32.totalorder %s233, %s234
    %p245 = scmp.eq.s32.totalorder %s20, 0
    %p246 = por %p244, %p245
    %p247 = scmp.ne.s32.totalorder %s233, %s234
    %p248 = scmp.eq.s32.totalorder %s21, 7
    %p249 = por %p247, %p248
    %p251 = scmp.ne.s32.totalorder %s234, %s250
    %p252 = scmp.eq.s32.totalorder %s21, 0
    %p253 = por %p251, %p252
    %s254 = smul.u32 %s23, 2
    %s255 = sadd.s32 %s254, 2
    %s256 = smul.u32 %s30, 2
    %s257 = sadd.s32 %s256, 2
    %s258 = ssub.s32 %s22, %s34
    %s259 = ssub.s32 %s255, %s257
    %s260 = sor.u32 %s258, %s259
    %p261 = scmp.eq.s32.totalorder %s260, 0
    %s263 = sadd.s32 %s262, 1
    %s264 = scalar_select %p261, %s262, %s263
    %p267 = pneg %p261
    %p268 = scmp.eq.s32.totalorder %s15, 7
    %p269 = por %p267, %p268
    %p270 = scmp.ne.s32.totalorder %s262, %s265
    %p271 = scmp.eq.s32.totalorder %s15, 0
    %p272 = por %p270, %p271
    %p273 = scmp.ne.s32.totalorder %s262, %s265
    %p274 = scmp.eq.s32.totalorder %s20, 7
    %p275 = por %p273, %p274
    %p276 = scmp.ne.s32.totalorder %s265, %s266
    %p277 = scmp.eq.s32.totalorder %s20, 0
    %p278 = por %p276, %p277
    %p279 = scmp.ne.s32.totalorder %s265, %s266
    %p280 = scmp.eq.s32.totalorder %s21, 7
    %p281 = por %p279, %p280
    %p283 = scmp.ne.s32.totalorder %s266, %s282
    %p284 = scmp.eq.s32.totalorder %s21, 0
    %p285 = por %p283, %p284
    %s286 = ssub.s32 %s22, %s34
    %s287 = ssub.s32 %s23, %s30
    %s288 = sor.u32 %s286, %s287
    %p289 = scmp.eq.s32.totalorder %s288, 0
    %s291 = sadd.s32 %s290, 1
    %s292 = scalar_select %p289, %s290, %s291
    %p295 = pneg %p289
    %p296 = scmp.eq.s32.totalorder %s15, 7
    %p297 = por %p295, %p296
    %p298 = scmp.ne.s32.totalorder %s290, %s293
    %p299 = scmp.eq.s32.totalorder %s15, 0
    %p300 = por %p298, %p299
    %p301 = scmp.ne.s32.totalorder %s290, %s293
    %p302 = scmp.eq.s32.totalorder %s20, 7
    %p303 = por %p301, %p302
    %p304 = scmp.ne.s32.totalorder %s293, %s294
    %p305 = scmp.eq.s32.totalorder %s20, 0
    %p306 = por %p304, %p305
    %p307 = scmp.ne.s32.totalorder %s293, %s294
    %p308 = scmp.eq.s32.totalorder %s21, 7
    %p309 = por %p307, %p308
    %p311 = scmp.ne.s32.totalorder %s294, %s310
    %p312 = scmp.eq.s32.totalorder %s21, 0
    %p313 = por %p311, %p312
    %p314 = scmp.le.s32.totalorder 1, %s15
    %p315 = scmp.lt.s32.totalorder %s15, 9
    %p316 = pnand %p314, %p315
    %p317 = pneg %p316
    // Predicated region
    $region9: #{stem_block.5} parent=5 // pred_check
      _
    $region10: #{stem_block.5} parent=5 // pred_check_branch
      %319 = sbr.rel (%p316) target = $region12
    $region11: #{stem_block.5} parent=5 // pred_region
      %s320 = ssub.s32 %s15, 1
      // Predicated region
      $region13: #{stem_block.5} parent=11 // pred_check
        %p321 = pneg %p48
      $region14: #{stem_block.5} parent=11 // pred_check_branch
        %323 = sbr.rel (%p321) target = $region16
      $region15: #{stem_block.5} parent=11 // pred_region
        _
      $region16: #{stem_block.5} parent=11 // pred_fallthru
        _
      // Predicated region
      $region17: #{stem_block.5} parent=11 // pred_check
        %p324 = pneg %p69
      $region18: #{stem_block.5} parent=11 // pred_check_branch
        %326 = sbr.rel (%p324) target = $region20
      $region19: #{stem_block.5} parent=11 // pred_region
        _
      $region20: #{stem_block.5} parent=11 // pred_fallthru
        _
      // Predicated region
      $region21: #{stem_block.5} parent=11 // pred_check
        %p327 = pneg %p90
      $region22: #{stem_block.5} parent=11 // pred_check_branch
        %329 = sbr.rel (%p327) target = $region24
      $region23: #{stem_block.5} parent=11 // pred_region
        _
      $region24: #{stem_block.5} parent=11 // pred_fallthru
        _
    $region12: #{stem_block.5} parent=5 // pred_fallthru
      _
    %p330 = scmp.lt.s32.totalorder %s15, 8
    // Predicated region
    $region25: #{stem_block.5} parent=5 // pred_check
      %p331 = pneg %p330
    $region26: #{stem_block.5} parent=5 // pred_check_branch
      %333 = sbr.rel (%p331) target = $region28
    $region27: #{stem_block.5} parent=5 // pred_region
      // Predicated region
      $region29: #{stem_block.5} parent=27 // pred_check
        %p334 = pneg %p114
      $region30: #{stem_block.5} parent=27 // pred_check_branch
        %336 = sbr.rel (%p334) target = $region32
      $region31: #{stem_block.5} parent=27 // pred_region
        %s337 = smul.u32 %s23, 2
        %p338 = scmp.lt.s32.totalorder %s22, 1
        %s339 = scalar_select %p338, %s22, 1
        %p340 = scmp.lt.s32.totalorder %s337, 9
        %s341 = scalar_select %p340, %s337, 9
        %s342 = smul.addr %s339, 10
        %s343 = sadd.s32 %s341, %s342
        %s344 = smul.addr %s343, 4
        %s345 = scalar_lea.vmem %s3, %s344
        %s346 = smul.u32 %s23, 2
      $region32: #{stem_block.5} parent=27 // pred_fallthru
        _
      // Predicated region
      $region33: #{stem_block.5} parent=27 // pred_check
        %p347 = pneg %p144
      $region34: #{stem_block.5} parent=27 // pred_check_branch
        %349 = sbr.rel (%p347) target = $region36
      $region35: #{stem_block.5} parent=27 // pred_region
        %s350 = smul.u32 %s23, 2
        %p351 = scmp.lt.s32.totalorder %s22, 1
        %s352 = scalar_select %p351, %s22, 1
        %p353 = scmp.lt.s32.totalorder %s350, 9
        %s354 = scalar_select %p353, %s350, 9
        %s355 = smul.addr %s352, 10
        %s356 = sadd.s32 %s354, %s355
        %s357 = smul.addr %s356, 4
        %s358 = scalar_lea.vmem %s4, %s357
        %s359 = smul.u32 %s23, 2
      $region36: #{stem_block.5} parent=27 // pred_fallthru
        _
      // Predicated region
      $region37: #{stem_block.5} parent=27 // pred_check
        %p360 = pneg %p176
      $region38: #{stem_block.5} parent=27 // pred_check_branch
        %362 = sbr.rel (%p360) target = $region40
      $region39: #{stem_block.5} parent=27 // pred_region
        %s363 = smul.u32 %s23, 2
        %s364 = sadd.s32 %s363, 1
        %p365 = scmp.lt.s32.totalorder %s22, 1
        %s366 = scalar_select %p365, %s22, 1
        %p367 = scmp.lt.s32.totalorder %s364, 9
        %s368 = scalar_select %p367, %s364, 9
        %s369 = smul.addr %s366, 10
        %s370 = sadd.s32 %s368, %s369
        %s371 = smul.addr %s370, 4
        %s372 = scalar_lea.vmem %s5, %s371
        %s373 = smul.u32 %s23, 2
        %s374 = sadd.s32 %s373, 1
      $region40: #{stem_block.5} parent=27 // pred_fallthru
        _
      // Predicated region
      $region41: #{stem_block.5} parent=27 // pred_check
        %p375 = pneg %p208
      $region42: #{stem_block.5} parent=27 // pred_check_branch
        %377 = sbr.rel (%p375) target = $region44
      $region43: #{stem_block.5} parent=27 // pred_region
        %s378 = smul.u32 %s23, 2
        %s379 = sadd.s32 %s378, 1
        %p380 = scmp.lt.s32.totalorder %s22, 1
        %s381 = scalar_select %p380, %s22, 1
        %p382 = scmp.lt.s32.totalorder %s379, 9
        %s383 = scalar_select %p382, %s379, 9
        %s384 = smul.addr %s381, 10
        %s385 = sadd.s32 %s383, %s384
        %s386 = smul.addr %s385, 4
        %s387 = scalar_lea.vmem %s6, %s386
        %s388 = smul.u32 %s23, 2
        %s389 = sadd.s32 %s388, 1
      $region44: #{stem_block.5} parent=27 // pred_fallthru
        _
      // Predicated region
      $region45: #{stem_block.5} parent=27 // pred_check
        %p390 = pneg %p240
      $region46: #{stem_block.5} parent=27 // pred_check_branch
        %392 = sbr.rel (%p390) target = $region48
      $region47: #{stem_block.5} parent=27 // pred_region
        %s393 = smul.u32 %s23, 2
        %s394 = sadd.s32 %s393, 2
        %p395 = scmp.lt.s32.totalorder %s22, 1
        %s396 = scalar_select %p395, %s22, 1
        %p397 = scmp.lt.s32.totalorder %s394, 9
        %s398 = scalar_select %p397, %s394, 9
        %s399 = smul.addr %s396, 10
        %s400 = sadd.s32 %s398, %s399
        %s401 = smul.addr %s400, 4
        %s402 = scalar_lea.vmem %s7, %s401
        %s403 = smul.u32 %s23, 2
        %s404 = sadd.s32 %s403, 2
      $region48: #{stem_block.5} parent=27 // pred_fallthru
        _
      // Predicated region
      $region49: #{stem_block.5} parent=27 // pred_check
        %p405 = pneg %p272
      $region50: #{stem_block.5} parent=27 // pred_check_branch
        %407 = sbr.rel (%p405) target = $region52
      $region51: #{stem_block.5} parent=27 // pred_region
        %s408 = smul.u32 %s23, 2
        %s409 = sadd.s32 %s408, 2
        %p410 = scmp.lt.s32.totalorder %s22, 1
        %s411 = scalar_select %p410, %s22, 1
        %p412 = scmp.lt.s32.totalorder %s409, 9
        %s413 = scalar_select %p412, %s409, 9
        %s414 = smul.addr %s411, 10
        %s415 = sadd.s32 %s413, %s414
        %s416 = smul.addr %s415, 4
        %s417 = scalar_lea.vmem %s8, %s416
        %s418 = smul.u32 %s23, 2
        %s419 = sadd.s32 %s418, 2
      $region52: #{stem_block.5} parent=27 // pred_fallthru
        _
    $region28: #{stem_block.5} parent=5 // pred_fallthru
      _
    %p420 = scmp.le.s32.totalorder 1, %s15
    %p421 = scmp.lt.s32.totalorder %s15, 9
    %p422 = pnand %p420, %p421
    %p423 = pneg %p422
    // Predicated region
    $region53: #{stem_block.5} parent=5 // pred_check
      _
    $region54: #{stem_block.5} parent=5 // pred_check_branch
      %425 = sbr.rel (%p422) target = $region56
    $region55: #{stem_block.5} parent=5 // pred_region
      %s426 = ssub.s32 %s15, 1
      %p427 = pneg %p48
      %p428 = pneg %p45
      %p429 = pneg %p69
      %p430 = pneg %p66
      %p431 = pneg %p90
      %p432 = pneg %p87
      %s433 = smul.u32 %s25, 2
      %p434 = scmp.lt.s32.totalorder %s24, 1
      %s435 = scalar_select %p434, %s24, 1
      %p436 = scmp.lt.s32.totalorder %s433, 9
      %s437 = scalar_select %p436, %s433, 9
      %s438 = smul.addr %s435, 10
      %s439 = sadd.s32 %s437, %s438
      %s440 = smul.addr %s439, 4
      %s441 = scalar_lea.vmem %s3, %s440
      %p442 = pneg %p120
      %p443 = pneg %p117
      %s444 = smul.u32 %s25, 2
      %p445 = scmp.lt.s32.totalorder %s24, 1
      %s446 = scalar_select %p445, %s24, 1
      %p447 = scmp.lt.s32.totalorder %s444, 9
      %s448 = scalar_select %p447, %s444, 9
      %s449 = smul.addr %s446, 10
      %s450 = sadd.s32 %s448, %s449
      %s451 = smul.addr %s450, 4
      %s452 = scalar_lea.vmem %s4, %s451
      %p453 = pneg %p150
      %p454 = pneg %p147
      %s455 = smul.u32 %s25, 2
      %s456 = sadd.s32 %s455, 1
      %p457 = scmp.lt.s32.totalorder %s24, 1
      %s458 = scalar_select %p457, %s24, 1
      %p459 = scmp.lt.s32.totalorder %s456, 9
      %s460 = scalar_select %p459, %s456, 9
      %s461 = smul.addr %s458, 10
      %s462 = sadd.s32 %s460, %s461
      %s463 = smul.addr %s462, 4
      %s464 = scalar_lea.vmem %s5, %s463
      %p465 = pneg %p182
      %p466 = pneg %p179
      %s467 = smul.u32 %s25, 2
      %s468 = sadd.s32 %s467, 1
      %p469 = scmp.lt.s32.totalorder %s24, 1
      %s470 = scalar_select %p469, %s24, 1
      %p471 = scmp.lt.s32.totalorder %s468, 9
      %s472 = scalar_select %p471, %s468, 9
      %s473 = smul.addr %s470, 10
      %s474 = sadd.s32 %s472, %s473
      %s475 = smul.addr %s474, 4
      %s476 = scalar_lea.vmem %s6, %s475
      %p477 = pneg %p214
      %p478 = pneg %p211
      %s479 = smul.u32 %s25, 2
      %s480 = sadd.s32 %s479, 2
      %p481 = scmp.lt.s32.totalorder %s24, 1
      %s482 = scalar_select %p481, %s24, 1
      %p483 = scmp.lt.s32.totalorder %s480, 9
      %s484 = scalar_select %p483, %s480, 9
      %s485 = smul.addr %s482, 10
      %s486 = sadd.s32 %s484, %s485
      %s487 = smul.addr %s486, 4
      %s488 = scalar_lea.vmem %s7, %s487
      %p489 = pneg %p246
      %p490 = pneg %p243
      %s491 = smul.u32 %s25, 2
      %s492 = sadd.s32 %s491, 2
      %p493 = scmp.lt.s32.totalorder %s24, 1
      %s494 = scalar_select %p493, %s24, 1
      %p495 = scmp.lt.s32.totalorder %s492, 9
      %s496 = scalar_select %p495, %s492, 9
      %s497 = smul.addr %s494, 10
      %s498 = sadd.s32 %s496, %s497
      %s499 = smul.addr %s498, 4
      %s500 = scalar_lea.vmem %s8, %s499
      %p501 = pneg %p278
      %p502 = pneg %p275
      %p503 = pneg %p306
      %p504 = pneg %p303
      %p505 = scmp.lt.s32.totalorder %s24, 1
      %s506 = scalar_select %p505, %s24, 1
      %p507 = scmp.lt.s32.totalorder %s25, 3
      %s508 = scalar_select %p507, %s25, 3
      %s509 = smul.addr %s508, 2
      %s510 = smul.addr %s506, 8
      %s511 = sadd.s32 %s509, %s510
      %s512 = smul.addr %s511, 4
      %s513 = scalar_lea.vmem %s9, %s512
      %s514 = smul.u32 %s25, 2
      %p515 = scmp.lt.s32.totalorder %s24, 1
      %s516 = scalar_select %p515, %s24, 1
      %p517 = scmp.lt.s32.totalorder %s514, 9
      %s518 = scalar_select %p517, %s514, 9
      %s519 = smul.addr %s516, 10
      %s520 = sadd.s32 %s518, %s519
      %s521 = smul.addr %s520, 4
      %s522 = scalar_lea.vmem %s3, %s521
      %s523 = smul.u32 %s25, 2
      %s524 = smul.u32 %s25, 2
      %p525 = scmp.lt.s32.totalorder %s24, 1
      %s526 = scalar_select %p525, %s24, 1
      %p527 = scmp.lt.s32.totalorder %s524, 9
      %s528 = scalar_select %p527, %s524, 9
      %s529 = smul.addr %s526, 10
      %s530 = sadd.s32 %s528, %s529
      %s531 = smul.addr %s530, 4
      %s532 = scalar_lea.vmem %s4, %s531
      %s533 = smul.u32 %s25, 2
      %s534 = smul.u32 %s25, 2
      %s535 = sadd.s32 %s534, 1
      %p536 = scmp.lt.s32.totalorder %s24, 1
      %s537 = scalar_select %p536, %s24, 1
      %p538 = scmp.lt.s32.totalorder %s535, 9
      %s539 = scalar_select %p538, %s535, 9
      %s540 = smul.addr %s537, 10
      %s541 = sadd.s32 %s539, %s540
      %s542 = smul.addr %s541, 4
      %s543 = scalar_lea.vmem %s5, %s542
      %s544 = smul.u32 %s25, 2
      %s545 = sadd.s32 %s544, 1
      %s546 = smul.u32 %s25, 2
      %s547 = sadd.s32 %s546, 1
      %p548 = scmp.lt.s32.totalorder %s24, 1
      %s549 = scalar_select %p548, %s24, 1
      %p550 = scmp.lt.s32.totalorder %s547, 9
      %s551 = scalar_select %p550, %s547, 9
      %s552 = smul.addr %s549, 10
      %s553 = sadd.s32 %s551, %s552
      %s554 = smul.addr %s553, 4
      %s555 = scalar_lea.vmem %s6, %s554
      %s556 = smul.u32 %s25, 2
      %s557 = sadd.s32 %s556, 1
      %s558 = smul.u32 %s25, 2
      %s559 = sadd.s32 %s558, 2
      %p560 = scmp.lt.s32.totalorder %s24, 1
      %s561 = scalar_select %p560, %s24, 1
      %p562 = scmp.lt.s32.totalorder %s559, 9
      %s563 = scalar_select %p562, %s559, 9
      %s564 = smul.addr %s561, 10
      %s565 = sadd.s32 %s563, %s564
      %s566 = smul.addr %s565, 4
      %s567 = scalar_lea.vmem %s7, %s566
      %s568 = smul.u32 %s25, 2
      %s569 = sadd.s32 %s568, 2
      %s570 = smul.u32 %s25, 2
      %s571 = sadd.s32 %s570, 2
      %p572 = scmp.lt.s32.totalorder %s24, 1
      %s573 = scalar_select %p572, %s24, 1
      %p574 = scmp.lt.s32.totalorder %s571, 9
      %s575 = scalar_select %p574, %s571, 9
      %s576 = smul.addr %s573, 10
      %s577 = sadd.s32 %s575, %s576
      %s578 = smul.addr %s577, 4
      %s579 = scalar_lea.vmem %s8, %s578
      %s580 = smul.u32 %s25, 2
      %s581 = sadd.s32 %s580, 2
      %p582 = scmp.lt.s32.totalorder %s24, 1
      %s583 = scalar_select %p582, %s24, 1
      %p584 = scmp.lt.s32.totalorder %s25, 3
      %s585 = scalar_select %p584, %s25, 3
      %s586 = smul.addr %s585, 2
      %s587 = smul.addr %s583, 8
      %s588 = sadd.s32 %s586, %s587
      %s589 = smul.addr %s588, 4
      %s590 = scalar_lea.vmem %s9, %s589
      %v592 = vld [vmem:[%s522] sm:$0xf]
      %v593 = vld [vmem:[%s532] sm:$0xf]
      %v594 = vld [vmem:[%s0] sm:$0xf]
      %v595 = vld [vmem:[%s0 + $0x4] sm:$0xf]
      %s596 = scalar_lea.vmem %s0, 8
      %v597 = vld [vmem:[%s596] sm:$0xf]
      %v598 = vld [vmem:[%s596 + $0x4] sm:$0xf]
      %v601 = vunpack.c.l.b16 %v597
      %v602 = vunpack.c.l.b16 %v598
      %v603 = vpack.c.b16 %v602, %v601
      %vm604 = vcmask 64512
      %v606 = vsel %vm604, %v603, 0
      %vm608 = vcmask 1043456
      %v610 = vsel %vm608, %v593, 0
      %612 = vmatprep.subr.bf16.mxu0 0
      %613 = vmatpush1.bf16.msra.mxu0 0
      %614 = vmatprep.subr.bf16.mxu0 0
      %615 = vmatpush1.bf16.msra.mxu0 0
      %616 = vmatprep.subr.bf16.mxu0 0
      %617 = vmatpush1.bf16.msra.mxu0 0
      %618 = vmatprep.subr.bf16.mxu0 0
      %619 = vmatpush1.bf16.msra.mxu0 0
      %620 = vmatprep.subr.bf16.mxu0 0
      %621 = vmatpush1.bf16.msra.mxu0 0
      %622 = vmatprep.subr.bf16.mxu0 0
      %623 = vmatpush1.bf16.msra.mxu0 0
      %624 = vmatprep.subr.bf16.mxu0 0
      %625 = vmatpush1.bf16.msra.mxu0 0
      %626 = vmatprep.subr.bf16.mxu0 0
      %627 = vmatpush1.bf16.msra.mxu0 %v610
      %628 = vmatprep.subr.bf16.mxu0 0
      %629 = vmatpush2.bf16.msra.mxu0 0
      %630 = vmatprep.subr.bf16.mxu0 0
      %631 = vmatpush2.bf16.msra.mxu0 0
      %632 = vmatprep.subr.bf16.mxu0 0
      %633 = vmatpush2.bf16.msra.mxu0 0
      %634 = vmatprep.subr.bf16.mxu0 0
      %635 = vmatpush2.bf16.msra.mxu0 0
      %636 = vmatprep.subr.bf16.mxu0 0
      %637 = vmatpush2.bf16.msra.mxu0 0
      %638 = vmatprep.subr.bf16.mxu0 0
      %639 = vmatpush2.bf16.msra.mxu0 0
      %640 = vmatprep.subr.bf16.mxu0 0
      %641 = vmatpush2.bf16.msra.mxu0 0
      %642 = vmatprep.subr.bf16.mxu0 0
      %643 = vmatpush2.bf16.msra.mxu0 0
      %644 = vmatprep.mubr.bf16.mxu0 0
      %645 = vmatmul.mubr.bf16.gmra.mxu0 %v606
      %v646 = vpop.f32.mrf.mxu0
      %v647 = vadd.f32 0.0, %v646
      %v648 = vpop.f32.mrf.mxu0
      %v649 = vpop.f32.mrf.mxu0
      %v650 = vadd.f32 0.0, %v649
      %v651 = vpop.f32.mrf.mxu0
      %652 = vdwg.mxu0
      %v655 = vunpack.c.l.b16 %v594
      %v656 = vunpack.c.l.b16 %v595
      %v657 = vpack.c.b16 %v656, %v655
      %v659 = vsel %vm604, %v657, 0
      %v662 = vsel %vm608, %v592, 0
      %664 = vmatprep.subr.bf16.mxu0 0
      %665 = vmatpush1.bf16.msra.mxu0 0
      %666 = vmatprep.subr.bf16.mxu0 0
      %667 = vmatpush1.bf16.msra.mxu0 0
      %668 = vmatprep.subr.bf16.mxu0 0
      %669 = vmatpush1.bf16.msra.mxu0 0
      %670 = vmatprep.subr.bf16.mxu0 0
      %671 = vmatpush1.bf16.msra.mxu0 0
      %672 = vmatprep.subr.bf16.mxu0 0
      %673 = vmatpush1.bf16.msra.mxu0 0
      %674 = vmatprep.subr.bf16.mxu0 0
      %675 = vmatpush1.bf16.msra.mxu0 0
      %676 = vmatprep.subr.bf16.mxu0 0
      %677 = vmatpush1.bf16.msra.mxu0 0
      %678 = vmatprep.subr.bf16.mxu0 0
      %679 = vmatpush1.bf16.msra.mxu0 %v662
      %680 = vmatprep.subr.bf16.mxu0 0
      %681 = vmatpush2.bf16.msra.mxu0 0
      %682 = vmatprep.subr.bf16.mxu0 0
      %683 = vmatpush2.bf16.msra.mxu0 0
      %684 = vmatprep.subr.bf16.mxu0 0
      %685 = vmatpush2.bf16.msra.mxu0 0
      %686 = vmatprep.subr.bf16.mxu0 0
      %687 = vmatpush2.bf16.msra.mxu0 0
      %688 = vmatprep.subr.bf16.mxu0 0
      %689 = vmatpush2.bf16.msra.mxu0 0
      %690 = vmatprep.subr.bf16.mxu0 0
      %691 = vmatpush2.bf16.msra.mxu0 0
      %692 = vmatprep.subr.bf16.mxu0 0
      %693 = vmatpush2.bf16.msra.mxu0 0
      %694 = vmatprep.subr.bf16.mxu0 0
      %695 = vmatpush2.bf16.msra.mxu0 0
      %696 = vmatprep.mubr.bf16.mxu0 0
      %697 = vmatmul.mubr.bf16.gmra.mxu0 %v659
      %v698 = vpop.f32.mrf.mxu0
      %v699 = vadd.f32 %v647, %v698
      %v700 = vpop.f32.mrf.mxu0
      %v701 = vpop.f32.mrf.mxu0
      %v702 = vadd.f32 %v650, %v701
      %v703 = vpop.f32.mrf.mxu0
      %704 = vdwg.mxu0
      %s705 = scalar_lea.vmem %s0, 16
      %v706 = vld [vmem:[%s705] sm:$0xf]
      %v707 = vld [vmem:[%s705 + $0x4] sm:$0xf]
      %v710 = vunpack.c.l.b16 %v706
      %v711 = vunpack.c.l.b16 %v707
      %v712 = vpack.c.b16 %v711, %v710
      %v714 = vunpack.c.l.b16 %v592
      %v715 = vpack.c.b16 %v714, %v714
      %716 = vrot.lane.b32.xlu0 %v715, 127
      %v717 = vpop.permute.xlu0 %716
      %v719 = vsel %vm604, %v712, 0
      %v722 = vsel %vm608, %v717, 0
      %724 = vmatprep.subr.bf16.mxu0 0
      %725 = vmatpush1.bf16.msra.mxu0 0
      %726 = vmatprep.subr.bf16.mxu0 0
      %727 = vmatpush1.bf16.msra.mxu0 0
      %728 = vmatprep.subr.bf16.mxu0 0
      %729 = vmatpush1.bf16.msra.mxu0 0
      %730 = vmatprep.subr.bf16.mxu0 0
      %731 = vmatpush1.bf16.msra.mxu0 0
      %732 = vmatprep.subr.bf16.mxu0 0
      %733 = vmatpush1.bf16.msra.mxu0 0
      %734 = vmatprep.subr.bf16.mxu0 0
      %735 = vmatpush1.bf16.msra.mxu0 0
      %736 = vmatprep.subr.bf16.mxu0 0
      %737 = vmatpush1.bf16.msra.mxu0 0
      %738 = vmatprep.subr.bf16.mxu0 0
      %739 = vmatpush1.bf16.msra.mxu0 %v722
      %740 = vmatprep.subr.bf16.mxu0 0
      %741 = vmatpush2.bf16.msra.mxu0 0
      %742 = vmatprep.subr.bf16.mxu0 0
      %743 = vmatpush2.bf16.msra.mxu0 0
      %744 = vmatprep.subr.bf16.mxu0 0
      %745 = vmatpush2.bf16.msra.mxu0 0
      %746 = vmatprep.subr.bf16.mxu0 0
      %747 = vmatpush2.bf16.msra.mxu0 0
      %748 = vmatprep.subr.bf16.mxu0 0
      %749 = vmatpush2.bf16.msra.mxu0 0
      %750 = vmatprep.subr.bf16.mxu0 0
      %751 = vmatpush2.bf16.msra.mxu0 0
      %752 = vmatprep.subr.bf16.mxu0 0
      %753 = vmatpush2.bf16.msra.mxu0 0
      %754 = vmatprep.subr.bf16.mxu0 0
      %755 = vmatpush2.bf16.msra.mxu0 0
      %756 = vmatprep.mubr.bf16.mxu0 0
      %757 = vmatmul.mubr.bf16.gmra.mxu0 %v719
      %v758 = vpop.f32.mrf.mxu0
      %v759 = vadd.f32 0.0, %v758
      %v760 = vpop.f32.mrf.mxu0
      %v761 = vpop.f32.mrf.mxu0
      %v762 = vadd.f32 0.0, %v761
      %v763 = vpop.f32.mrf.mxu0
      %764 = vdwg.mxu0
      %v765 = vadd.f32 %v699, %v759
      %v766 = vadd.f32 %v702, %v762
      %v767 = vld [vmem:[%s543] sm:$0xf]
      %v768 = vld [vmem:[%s555] sm:$0xf]
      %s769 = scalar_lea.vmem %s0, 24
      %v770 = vld [vmem:[%s769] sm:$0xf]
      %v771 = vld [vmem:[%s769 + $0x4] sm:$0xf]
      %v774 = vunpack.c.l.b16 %v770
      %v775 = vunpack.c.l.b16 %v771
      %v776 = vpack.c.b16 %v775, %v774
      %v778 = vsel %vm604, %v776, 0
      %v781 = vsel %vm608, %v767, 0
      %783 = vmatprep.subr.bf16.mxu0 0
      %784 = vmatpush1.bf16.msra.mxu0 0
      %785 = vmatprep.subr.bf16.mxu0 0
      %786 = vmatpush1.bf16.msra.mxu0 0
      %787 = vmatprep.subr.bf16.mxu0 0
      %788 = vmatpush1.bf16.msra.mxu0 0
      %789 = vmatprep.subr.bf16.mxu0 0
      %790 = vmatpush1.bf16.msra.mxu0 0
      %791 = vmatprep.subr.bf16.mxu0 0
      %792 = vmatpush1.bf16.msra.mxu0 0
      %793 = vmatprep.subr.bf16.mxu0 0
      %794 = vmatpush1.bf16.msra.mxu0 0
      %795 = vmatprep.subr.bf16.mxu0 0
      %796 = vmatpush1.bf16.msra.mxu0 0
      %797 = vmatprep.subr.bf16.mxu0 0
      %798 = vmatpush1.bf16.msra.mxu0 %v781
      %799 = vmatprep.subr.bf16.mxu0 0
      %800 = vmatpush2.bf16.msra.mxu0 0
      %801 = vmatprep.subr.bf16.mxu0 0
      %802 = vmatpush2.bf16.msra.mxu0 0
      %803 = vmatprep.subr.bf16.mxu0 0
      %804 = vmatpush2.bf16.msra.mxu0 0
      %805 = vmatprep.subr.bf16.mxu0 0
      %806 = vmatpush2.bf16.msra.mxu0 0
      %807 = vmatprep.subr.bf16.mxu0 0
      %808 = vmatpush2.bf16.msra.mxu0 0
      %809 = vmatprep.subr.bf16.mxu0 0
      %810 = vmatpush2.bf16.msra.mxu0 0
      %811 = vmatprep.subr.bf16.mxu0 0
      %812 = vmatpush2.bf16.msra.mxu0 0
      %813 = vmatprep.subr.bf16.mxu0 0
      %814 = vmatpush2.bf16.msra.mxu0 0
      %815 = vmatprep.mubr.bf16.mxu0 0
      %816 = vmatmul.mubr.bf16.gmra.mxu0 %v778
      %v817 = vpop.f32.mrf.mxu0
      %v818 = vadd.f32 0.0, %v817
      %v819 = vpop.f32.mrf.mxu0
      %v820 = vpop.f32.mrf.mxu0
      %v821 = vadd.f32 0.0, %v820
      %v822 = vpop.f32.mrf.mxu0
      %823 = vdwg.mxu0
      %v824 = vadd.f32 %v765, %v818
      %v825 = vadd.f32 %v766, %v821
      %s826 = scalar_lea.vmem %s0, 32
      %v827 = vld [vmem:[%s826] sm:$0xf]
      %v828 = vld [vmem:[%s826 + $0x4] sm:$0xf]
      %v831 = vunpack.c.l.b16 %v827
      %v832 = vunpack.c.l.b16 %v828
      %v833 = vpack.c.b16 %v832, %v831
      %v835 = vsel %vm604, %v833, 0
      %v838 = vsel %vm608, %v768, 0
      %840 = vmatprep.subr.bf16.mxu0 0
      %841 = vmatpush1.bf16.msra.mxu0 0
      %842 = vmatprep.subr.bf16.mxu0 0
      %843 = vmatpush1.bf16.msra.mxu0 0
      %844 = vmatprep.subr.bf16.mxu0 0
      %845 = vmatpush1.bf16.msra.mxu0 0
      %846 = vmatprep.subr.bf16.mxu0 0
      %847 = vmatpush1.bf16.msra.mxu0 0
      %848 = vmatprep.subr.bf16.mxu0 0
      %849 = vmatpush1.bf16.msra.mxu0 0
      %850 = vmatprep.subr.bf16.mxu0 0
      %851 = vmatpush1.bf16.msra.mxu0 0
      %852 = vmatprep.subr.bf16.mxu0 0
      %853 = vmatpush1.bf16.msra.mxu0 0
      %854 = vmatprep.subr.bf16.mxu0 0
      %855 = vmatpush1.bf16.msra.mxu0 %v838
      %856 = vmatprep.subr.bf16.mxu0 0
      %857 = vmatpush2.bf16.msra.mxu0 0
      %858 = vmatprep.subr.bf16.mxu0 0
      %859 = vmatpush2.bf16.msra.mxu0 0
      %860 = vmatprep.subr.bf16.mxu0 0
      %861 = vmatpush2.bf16.msra.mxu0 0
      %862 = vmatprep.subr.bf16.mxu0 0
      %863 = vmatpush2.bf16.msra.mxu0 0
      %864 = vmatprep.subr.bf16.mxu0 0
      %865 = vmatpush2.bf16.msra.mxu0 0
      %866 = vmatprep.subr.bf16.mxu0 0
      %867 = vmatpush2.bf16.msra.mxu0 0
      %868 = vmatprep.subr.bf16.mxu0 0
      %869 = vmatpush2.bf16.msra.mxu0 0
      %870 = vmatprep.subr.bf16.mxu0 0
      %871 = vmatpush2.bf16.msra.mxu0 0
      %872 = vmatprep.mubr.bf16.mxu0 0
      %873 = vmatmul.mubr.bf16.gmra.mxu0 %v835
      %v874 = vpop.f32.mrf.mxu0
      %v875 = vadd.f32 0.0, %v874
      %v876 = vpop.f32.mrf.mxu0
      %v877 = vpop.f32.mrf.mxu0
      %v878 = vadd.f32 0.0, %v877
      %v879 = vpop.f32.mrf.mxu0
      %880 = vdwg.mxu0
      %v881 = vadd.f32 %v824, %v875
      %v882 = vadd.f32 %v825, %v878
      %s883 = scalar_lea.vmem %s0, 40
      %v884 = vld [vmem:[%s883] sm:$0xf]
      %v885 = vld [vmem:[%s883 + $0x4] sm:$0xf]
      %v888 = vunpack.c.l.b16 %v884
      %v889 = vunpack.c.l.b16 %v885
      %v890 = vpack.c.b16 %v889, %v888
      %v892 = vunpack.c.l.b16 %v767
      %v893 = vpack.c.b16 %v892, %v892
      %894 = vrot.lane.b32.xlu0 %v893, 127
      %v895 = vpop.permute.xlu0 %894
      %v897 = vsel %vm604, %v890, 0
      %v900 = vsel %vm608, %v895, 0
      %902 = vmatprep.subr.bf16.mxu0 0
      %903 = vmatpush1.bf16.msra.mxu0 0
      %904 = vmatprep.subr.bf16.mxu0 0
      %905 = vmatpush1.bf16.msra.mxu0 0
      %906 = vmatprep.subr.bf16.mxu0 0
      %907 = vmatpush1.bf16.msra.mxu0 0
      %908 = vmatprep.subr.bf16.mxu0 0
      %909 = vmatpush1.bf16.msra.mxu0 0
      %910 = vmatprep.subr.bf16.mxu0 0
      %911 = vmatpush1.bf16.msra.mxu0 0
      %912 = vmatprep.subr.bf16.mxu0 0
      %913 = vmatpush1.bf16.msra.mxu0 0
      %914 = vmatprep.subr.bf16.mxu0 0
      %915 = vmatpush1.bf16.msra.mxu0 0
      %916 = vmatprep.subr.bf16.mxu0 0
      %917 = vmatpush1.bf16.msra.mxu0 %v900
      %918 = vmatprep.subr.bf16.mxu0 0
      %919 = vmatpush2.bf16.msra.mxu0 0
      %920 = vmatprep.subr.bf16.mxu0 0
      %921 = vmatpush2.bf16.msra.mxu0 0
      %922 = vmatprep.subr.bf16.mxu0 0
      %923 = vmatpush2.bf16.msra.mxu0 0
      %924 = vmatprep.subr.bf16.mxu0 0
      %925 = vmatpush2.bf16.msra.mxu0 0
      %926 = vmatprep.subr.bf16.mxu0 0
      %927 = vmatpush2.bf16.msra.mxu0 0
      %928 = vmatprep.subr.bf16.mxu0 0
      %929 = vmatpush2.bf16.msra.mxu0 0
      %930 = vmatprep.subr.bf16.mxu0 0
      %931 = vmatpush2.bf16.msra.mxu0 0
      %932 = vmatprep.subr.bf16.mxu0 0
      %933 = vmatpush2.bf16.msra.mxu0 0
      %934 = vmatprep.mubr.bf16.mxu0 0
      %935 = vmatmul.mubr.bf16.gmra.mxu0 %v897
      %v936 = vpop.f32.mrf.mxu0
      %v937 = vadd.f32 0.0, %v936
      %v938 = vpop.f32.mrf.mxu0
      %v939 = vpop.f32.mrf.mxu0
      %v940 = vadd.f32 0.0, %v939
      %v941 = vpop.f32.mrf.mxu0
      %942 = vdwg.mxu0
      %v943 = vadd.f32 %v881, %v937
      %v944 = vadd.f32 %v882, %v940
      %v945 = vld [vmem:[%s567] sm:$0xf]
      %v946 = vld [vmem:[%s579] sm:$0xf]
      %s947 = scalar_lea.vmem %s0, 48
      %v948 = vld [vmem:[%s947] sm:$0xf]
      %v949 = vld [vmem:[%s947 + $0x4] sm:$0xf]
      %v952 = vunpack.c.l.b16 %v948
      %v953 = vunpack.c.l.b16 %v949
      %v954 = vpack.c.b16 %v953, %v952
      %v956 = vsel %vm604, %v954, 0
      %v959 = vsel %vm608, %v945, 0
      %961 = vmatprep.subr.bf16.mxu0 0
      %962 = vmatpush1.bf16.msra.mxu0 0
      %963 = vmatprep.subr.bf16.mxu0 0
      %964 = vmatpush1.bf16.msra.mxu0 0
      %965 = vmatprep.subr.bf16.mxu0 0
      %966 = vmatpush1.bf16.msra.mxu0 0
      %967 = vmatprep.subr.bf16.mxu0 0
      %968 = vmatpush1.bf16.msra.mxu0 0
      %969 = vmatprep.subr.bf16.mxu0 0
      %970 = vmatpush1.bf16.msra.mxu0 0
      %971 = vmatprep.subr.bf16.mxu0 0
      %972 = vmatpush1.bf16.msra.mxu0 0
      %973 = vmatprep.subr.bf16.mxu0 0
      %974 = vmatpush1.bf16.msra.mxu0 0
      %975 = vmatprep.subr.bf16.mxu0 0
      %976 = vmatpush1.bf16.msra.mxu0 %v959
      %977 = vmatprep.subr.bf16.mxu0 0
      %978 = vmatpush2.bf16.msra.mxu0 0
      %979 = vmatprep.subr.bf16.mxu0 0
      %980 = vmatpush2.bf16.msra.mxu0 0
      %981 = vmatprep.subr.bf16.mxu0 0
      %982 = vmatpush2.bf16.msra.mxu0 0
      %983 = vmatprep.subr.bf16.mxu0 0
      %984 = vmatpush2.bf16.msra.mxu0 0
      %985 = vmatprep.subr.bf16.mxu0 0
      %986 = vmatpush2.bf16.msra.mxu0 0
      %987 = vmatprep.subr.bf16.mxu0 0
      %988 = vmatpush2.bf16.msra.mxu0 0
      %989 = vmatprep.subr.bf16.mxu0 0
      %990 = vmatpush2.bf16.msra.mxu0 0
      %991 = vmatprep.subr.bf16.mxu0 0
      %992 = vmatpush2.bf16.msra.mxu0 0
      %993 = vmatprep.mubr.bf16.mxu0 0
      %994 = vmatmul.mubr.bf16.gmra.mxu0 %v956
      %v995 = vpop.f32.mrf.mxu0
      %v996 = vadd.f32 0.0, %v995
      %v997 = vpop.f32.mrf.mxu0
      %v998 = vpop.f32.mrf.mxu0
      %v999 = vadd.f32 0.0, %v998
      %v1000 = vpop.f32.mrf.mxu0
      %1001 = vdwg.mxu0
      %v1002 = vadd.f32 %v943, %v996
      %v1003 = vadd.f32 %v944, %v999
      %s1004 = scalar_lea.vmem %s0, 56
      %v1005 = vld [vmem:[%s1004] sm:$0xf]
      %v1006 = vld [vmem:[%s1004 + $0x4] sm:$0xf]
      %v1009 = vunpack.c.l.b16 %v1005
      %v1010 = vunpack.c.l.b16 %v1006
      %v1011 = vpack.c.b16 %v1010, %v1009
      %v1013 = vsel %vm604, %v1011, 0
      %v1016 = vsel %vm608, %v946, 0
      %1018 = vmatprep.subr.bf16.mxu0 0
      %1019 = vmatpush1.bf16.msra.mxu0 0
      %1020 = vmatprep.subr.bf16.mxu0 0
      %1021 = vmatpush1.bf16.msra.mxu0 0
      %1022 = vmatprep.subr.bf16.mxu0 0
      %1023 = vmatpush1.bf16.msra.mxu0 0
      %1024 = vmatprep.subr.bf16.mxu0 0
      %1025 = vmatpush1.bf16.msra.mxu0 0
      %1026 = vmatprep.subr.bf16.mxu0 0
      %1027 = vmatpush1.bf16.msra.mxu0 0
      %1028 = vmatprep.subr.bf16.mxu0 0
      %1029 = vmatpush1.bf16.msra.mxu0 0
      %1030 = vmatprep.subr.bf16.mxu0 0
      %1031 = vmatpush1.bf16.msra.mxu0 0
      %1032 = vmatprep.subr.bf16.mxu0 0
      %1033 = vmatpush1.bf16.msra.mxu0 %v1016
      %1034 = vmatprep.subr.bf16.mxu0 0
      %1035 = vmatpush2.bf16.msra.mxu0 0
      %1036 = vmatprep.subr.bf16.mxu0 0
      %1037 = vmatpush2.bf16.msra.mxu0 0
      %1038 = vmatprep.subr.bf16.mxu0 0
      %1039 = vmatpush2.bf16.msra.mxu0 0
      %1040 = vmatprep.subr.bf16.mxu0 0
      %1041 = vmatpush2.bf16.msra.mxu0 0
      %1042 = vmatprep.subr.bf16.mxu0 0
      %1043 = vmatpush2.bf16.msra.mxu0 0
      %1044 = vmatprep.subr.bf16.mxu0 0
      %1045 = vmatpush2.bf16.msra.mxu0 0
      %1046 = vmatprep.subr.bf16.mxu0 0
      %1047 = vmatpush2.bf16.msra.mxu0 0
      %1048 = vmatprep.subr.bf16.mxu0 0
      %1049 = vmatpush2.bf16.msra.mxu0 0
      %1050 = vmatprep.mubr.bf16.mxu0 0
      %1051 = vmatmul.mubr.bf16.gmra.mxu0 %v1013
      %v1052 = vpop.f32.mrf.mxu0
      %v1053 = vadd.f32 0.0, %v1052
      %v1054 = vpop.f32.mrf.mxu0
      %v1055 = vpop.f32.mrf.mxu0
      %v1056 = vadd.f32 0.0, %v1055
      %v1057 = vpop.f32.mrf.mxu0
      %1058 = vdwg.mxu0
      %v1059 = vadd.f32 %v1002, %v1053
      %v1060 = vadd.f32 %v1003, %v1056
      %s1061 = scalar_lea.vmem %s0, 64
      %v1062 = vld [vmem:[%s1061] sm:$0xf]
      %v1063 = vld [vmem:[%s1061 + $0x4] sm:$0xf]
      %v1066 = vunpack.c.l.b16 %v1062
      %v1067 = vunpack.c.l.b16 %v1063
      %v1068 = vpack.c.b16 %v1067, %v1066
      %v1070 = vunpack.c.l.b16 %v945
      %v1071 = vpack.c.b16 %v1070, %v1070
      %1072 = vrot.lane.b32.xlu0 %v1071, 127
      %v1073 = vpop.permute.xlu0 %1072
      %v1075 = vsel %vm604, %v1068, 0
      %v1078 = vsel %vm608, %v1073, 0
      %1080 = vmatprep.subr.bf16.mxu0 0
      %1081 = vmatpush1.bf16.msra.mxu0 0
      %1082 = vmatprep.subr.bf16.mxu0 0
      %1083 = vmatpush1.bf16.msra.mxu0 0
      %1084 = vmatprep.subr.bf16.mxu0 0
      %1085 = vmatpush1.bf16.msra.mxu0 0
      %1086 = vmatprep.subr.bf16.mxu0 0
      %1087 = vmatpush1.bf16.msra.mxu0 0
      %1088 = vmatprep.subr.bf16.mxu0 0
      %1089 = vmatpush1.bf16.msra.mxu0 0
      %1090 = vmatprep.subr.bf16.mxu0 0
      %1091 = vmatpush1.bf16.msra.mxu0 0
      %1092 = vmatprep.subr.bf16.mxu0 0
      %1093 = vmatpush1.bf16.msra.mxu0 0
      %1094 = vmatprep.subr.bf16.mxu0 0
      %1095 = vmatpush1.bf16.msra.mxu0 %v1078
      %1096 = vmatprep.subr.bf16.mxu0 0
      %1097 = vmatpush2.bf16.msra.mxu0 0
      %1098 = vmatprep.subr.bf16.mxu0 0
      %1099 = vmatpush2.bf16.msra.mxu0 0
      %1100 = vmatprep.subr.bf16.mxu0 0
      %1101 = vmatpush2.bf16.msra.mxu0 0
      %1102 = vmatprep.subr.bf16.mxu0 0
      %1103 = vmatpush2.bf16.msra.mxu0 0
      %1104 = vmatprep.subr.bf16.mxu0 0
      %1105 = vmatpush2.bf16.msra.mxu0 0
      %1106 = vmatprep.subr.bf16.mxu0 0
      %1107 = vmatpush2.bf16.msra.mxu0 0
      %1108 = vmatprep.subr.bf16.mxu0 0
      %1109 = vmatpush2.bf16.msra.mxu0 0
      %1110 = vmatprep.subr.bf16.mxu0 0
      %1111 = vmatpush2.bf16.msra.mxu0 0
      %1112 = vmatprep.mubr.bf16.mxu0 0
      %1113 = vmatmul.mubr.bf16.gmra.mxu0 %v1075
      %v1114 = vpop.f32.mrf.mxu0
      %v1115 = vadd.f32 0.0, %v1114
      %v1116 = vpop.f32.mrf.mxu0
      %v1117 = vpop.f32.mrf.mxu0
      %v1118 = vadd.f32 0.0, %v1117
      %v1119 = vpop.f32.mrf.mxu0
      %1120 = vdwg.mxu0
      %v1121 = vadd.f32 %v1059, %v1115
      %v1122 = vadd.f32 %v1060, %v1118
      %v1123 = vld [vmem:[%s1] sm:$0xff]
      %v1124 = vld [vmem:[%s1 + $0x8] sm:$0xff]
      %1126 = vset.pattern.permute.xlu0 0
      %1127 = vperm.xlu0 %1126, %v1123
      %v1128 = vpop.permute.xlu0 %1127
      %1131 = vset.pattern.permute.xlu0 0
      %1132 = vperm.xlu0 %1131, %v1124
      %v1133 = vpop.permute.xlu0 %1132
      %v1135 = vmul.f32 %v1121, %v1128
      %v1136 = vmul.f32 %v1122, %v1133
      %v1137 = vld [vmem:[%s2] sm:$0xff]
      %v1138 = vld [vmem:[%s2 + $0x8] sm:$0xff]
      %1140 = vset.pattern.permute.xlu0 0
      %1141 = vperm.xlu0 %1140, %v1137
      %v1142 = vpop.permute.xlu0 %1141
      %1145 = vset.pattern.permute.xlu0 0
      %1146 = vperm.xlu0 %1145, %v1138
      %v1147 = vpop.permute.xlu0 %1146
      %v1149 = vadd.f32 %v1135, %v1142
      %v1150 = vadd.f32 %v1136, %v1147
      %v1151 = vmax.f32 %v1149, 0.0
      %v1152 = vmax.f32 %v1150, 0.0
      %v1153 = vpack.c.bf16 %v1152, %v1151
      %v1155 = vunpack.c.l.b16 %v1153
      %v1156 = vunpack.c.h.b16 %v1153
      %v1157 = vpack.c.b16 %v1155, %v1155
      %v1158 = vpack.c.b16 %v1156, %v1156
      %vm1161 = vcmask 27648
      %1162 = vst.msk [vmem:[%s590] sm:$0xf] %vm1161, %v1157
      %1163 = vst.msk [vmem:[%s590 + $0x4] sm:$0xf] %vm1161, %v1158
      %p1164 = scmp.lt.s32.totalorder %s24, 1
      %s1165 = scalar_select %p1164, %s24, 1
      %p1166 = scmp.lt.s32.totalorder %s25, 3
      %s1167 = scalar_select %p1166, %s25, 3
      %s1168 = smul.addr %s1167, 2
      %s1169 = smul.addr %s1165, 8
      %s1170 = sadd.s32 %s1168, %s1169
      %s1171 = smul.addr %s1170, 4
      %s1172 = scalar_lea.vmem %s9, %s1171
      // Predicated region
      $region57: #{stem_block.5} parent=55 // pred_check
        %p1173 = pneg %p303
      $region58: #{stem_block.5} parent=55 // pred_check_branch
        %1175 = sbr.rel (%p1173) target = $region60
      $region59: #{stem_block.5} parent=55 // pred_region
        _
      $region60: #{stem_block.5} parent=55 // pred_fallthru
        _
    $region56: #{stem_block.5} parent=5 // pred_fallthru
      _
    %p1176 = scmp.le.s32.totalorder 2, %s15
    // Predicated region
    $region61: #{stem_block.5} parent=5 // pred_check
      %p1177 = pneg %p1176
    $region62: #{stem_block.5} parent=5 // pred_check_branch
      %1179 = sbr.rel (%p1177) target = $region64
    $region63: #{stem_block.5} parent=5 // pred_region
      %s1180 = ssub.s32 %s15, 2
      // Predicated region
      $region65: #{stem_block.5} parent=63 // pred_check
        %p1181 = pneg %p309
      $region66: #{stem_block.5} parent=63 // pred_check_branch
        %1183 = sbr.rel (%p1181) target = $region68
      $region67: #{stem_block.5} parent=63 // pred_region
        %p1184 = scmp.lt.s32.totalorder %s26, 1
        %s1185 = scalar_select %p1184, %s26, 1
        %p1186 = scmp.lt.s32.totalorder %s27, 3
        %s1187 = scalar_select %p1186, %s27, 3
        %s1188 = smul.addr %s1187, 2
        %s1189 = smul.addr %s1185, 8
        %s1190 = sadd.s32 %s1188, %s1189
        %s1191 = smul.addr %s1190, 4
        %s1192 = scalar_lea.vmem %s9, %s1191
      $region68: #{stem_block.5} parent=63 // pred_fallthru
        _
    $region64: #{stem_block.5} parent=5 // pred_fallthru
      _
  $region6: #{stem_block.5} parent=0 // loop_footer
    %s19 = sadd.s32 1, %s15
  $region7: #{stem_block.5} parent=0 // loop_footer_branch
    %14 = sbr.rel target = $region3
  $region8: #{stem_block.5} parent=0 // loop_exit
    _

// kernel: stem_block.4
$region0: #{stem_block.4}
  #allocation0 [shape = 'u32[]', space=smem, size = 0x4, offset = 0x4, fixed_abs, tag = 'smem constant byte address 0x4 - core index']
  #allocation1 [shape = 'u32[144,128]{1,0:T(1,128)}', space=vmem, size = 0x12000, scoped, tag = 'internal scratch']
  %s0 = inlined_call_operand.vmem [shape: bf16[9,16,4], index: 0, kind: input, shape index: {}]
  %s1 = inlined_call_operand.vmem [shape: f32[16,1], index: 1, kind: input, shape index: {}]
  %s2 = inlined_call_operand.vmem [shape: f32[16,1], index: 2, kind: input, shape index: {}]
  %s3 = inlined_call_operand.vmem [shape: bf16[8,16], index: 3, kind: input, shape index: {}]
  %s4 = inlined_call_operand.vmem [shape: f32[8,1], index: 4, kind: input, shape index: {}]
  %s5 = inlined_call_operand.vmem [shape: f32[8,1], index: 5, kind: input, shape index: {}]
  %s6 = inlined_call_operand.vmem [shape: bf16[2,18,4,9], index: 6, kind: input, shape index: {}, may-alias: {6,8,10}]
  %s7 = inlined_call_operand.vmem [shape: bf16[2,18,4,9], index: 7, kind: input, shape index: {}, may-alias: {7,9,11}]
  %s8 = inlined_call_operand.vmem [shape: bf16[2,18,4,9], index: 8, kind: input, shape index: {}, may-alias: {6,8,10}]
  %s9 = inlined_call_operand.vmem [shape: bf16[2,18,4,9], index: 9, kind: input, shape index: {}, may-alias: {7,9,11}]
  %s10 = inlined_call_operand.vmem [shape: bf16[2,18,4,9], index: 10, kind: input, shape index: {}, may-alias: {6,8,10}]
  %s11 = inlined_call_operand.vmem [shape: bf16[2,18,4,9], index: 11, kind: input, shape index: {}, may-alias: {7,9,11}]
  %s12 = inlined_call_operand.vmem [shape: bf16[2,8,16,8], index: 12, kind: output, shape index: {0}]
  %s13 = inlined_call_operand.vmem [shape: f32[2,8,8,8], index: 13, kind: output, shape index: {1}]
  %14 = xla_tuple %s12, %s13
  %s15 = sld [smem:[#allocation0]]
  $region89: #{stem_block.4} parent=0
    _
  %s17 = ssub.s32 1, %s15
  %s18 = scalar_select 0, %s17, %s15
  loop: start=0, step=1, limit=18
  $region2: #{stem_block.4} parent=0 // loop_pre_header
    _
  $region3: #{stem_block.4} parent=0 // loop_header
    %s20 = sphi 0, %s24
    %p21 = scmp.ge.s32.totalorder %s20, 18
    %s27 = sphi 0, %s39
    %s28 = sphi 0, %s35
    %s29 = sphi 0, %s27
    %s30 = sphi 0, %s28
    %s31 = sphi 0, %s29
    %s32 = sphi 0, %s30
    %s40 = sphi 0, %s40
    %s42 = sphi 0, %s40
    %s43 = sphi 0, %s42
    %s57 = sphi 0, %s43
    %s61 = sphi 0, %s61
    %s63 = sphi 0, %s61
    %s64 = sphi 0, %s63
    %s78 = sphi 0, %s64
    %s82 = sphi 0, %s82
    %s84 = sphi 0, %s82
    %s85 = sphi 0, %s84
    %s99 = sphi 0, %s85
    %s103 = sphi 0, %s103
    %s105 = sphi 0, %s103
    %s106 = sphi 0, %s105
    %s120 = sphi 0, %s106
    %s124 = sphi 0, %s124
    %s126 = sphi 0, %s124
    %s127 = sphi 0, %s126
    %s141 = sphi 0, %s127
    %s145 = sphi 0, %s145
    %s147 = sphi 0, %s145
    %s148 = sphi 0, %s147
    %s162 = sphi 0, %s148
    %s172 = sphi 0, %s174
    %s175 = sphi 0, %s172
    %s176 = sphi 0, %s175
    %s192 = sphi 0, %s176
    %s202 = sphi 0, %s204
    %s205 = sphi 0, %s202
    %s206 = sphi 0, %s205
    %s222 = sphi 0, %s206
    %s234 = sphi 0, %s236
    %s237 = sphi 0, %s234
    %s238 = sphi 0, %s237
    %s254 = sphi 0, %s238
    %s266 = sphi 0, %s268
    %s269 = sphi 0, %s266
    %s270 = sphi 0, %s269
    %s286 = sphi 0, %s270
    %s298 = sphi 0, %s300
    %s301 = sphi 0, %s298
    %s302 = sphi 0, %s301
    %s318 = sphi 0, %s302
    %s330 = sphi 0, %s332
    %s333 = sphi 0, %s330
    %s334 = sphi 0, %s333
    %s350 = sphi 0, %s334
    %s358 = sphi 0, %s360
    %s361 = sphi 0, %s358
    %s362 = sphi 0, %s361
    %s378 = sphi 0, %s362
    %s386 = sphi 0, %s388
    %s389 = sphi 0, %s386
    %s390 = sphi 0, %s389
    %s406 = sphi 0, %s390
  $region4: #{stem_block.4} parent=0 // loop_header_branch
    %23 = sbr.rel (%p21) target = $region8
  $region5: #{stem_block.4} parent=0 // loop_body
    %s25 = ssub.s32 %s20, 1
    %s26 = ssub.s32 %s20, 2
    %s33 = sadd.s32 1, %s28
    %p34 = scmp.ge.s32.totalorder %s33, 8
    %s35 = scalar_select %p34, 0, %s33
    %s36 = sadd.s32 1, %s27
    %s37 = scalar_select %p34, %s36, %s27
    %p38 = scmp.ge.s32.totalorder %s37, 2
    %s39 = scalar_select %p38, 0, %s37
    %s41 = sadd.s32 %s40, 1
    %p44 = scmp.eq.s32.totalorder %s20, 15
    %p45 = scmp.ne.s32.totalorder %s40, %s42
    %p46 = scmp.eq.s32.totalorder %s20, 0
    %p47 = por %p45, %p46
    %p48 = scmp.ne.s32.totalorder %s40, %s42
    %p49 = scmp.eq.s32.totalorder %s25, 15
    %p50 = por %p48, %p49
    %p51 = scmp.ne.s32.totalorder %s42, %s43
    %p52 = scmp.eq.s32.totalorder %s25, 0
    %p53 = por %p51, %p52
    %p54 = scmp.ne.s32.totalorder %s42, %s43
    %p55 = scmp.eq.s32.totalorder %s26, 15
    %p56 = por %p54, %p55
    %p58 = scmp.ne.s32.totalorder %s43, %s57
    %p59 = scmp.eq.s32.totalorder %s26, 0
    %p60 = por %p58, %p59
    %s62 = sadd.s32 %s61, 1
    %p65 = scmp.eq.s32.totalorder %s20, 15
    %p66 = scmp.ne.s32.totalorder %s61, %s63
    %p67 = scmp.eq.s32.totalorder %s20, 0
    %p68 = por %p66, %p67
    %p69 = scmp.ne.s32.totalorder %s61, %s63
    %p70 = scmp.eq.s32.totalorder %s25, 15
    %p71 = por %p69, %p70
    %p72 = scmp.ne.s32.totalorder %s63, %s64
    %p73 = scmp.eq.s32.totalorder %s25, 0
    %p74 = por %p72, %p73
    %p75 = scmp.ne.s32.totalorder %s63, %s64
    %p76 = scmp.eq.s32.totalorder %s26, 15
    %p77 = por %p75, %p76
    %p79 = scmp.ne.s32.totalorder %s64, %s78
    %p80 = scmp.eq.s32.totalorder %s26, 0
    %p81 = por %p79, %p80
    %s83 = sadd.s32 %s82, 1
    %p86 = scmp.eq.s32.totalorder %s20, 15
    %p87 = scmp.ne.s32.totalorder %s82, %s84
    %p88 = scmp.eq.s32.totalorder %s20, 0
    %p89 = por %p87, %p88
    %p90 = scmp.ne.s32.totalorder %s82, %s84
    %p91 = scmp.eq.s32.totalorder %s25, 15
    %p92 = por %p90, %p91
    %p93 = scmp.ne.s32.totalorder %s84, %s85
    %p94 = scmp.eq.s32.totalorder %s25, 0
    %p95 = por %p93, %p94
    %p96 = scmp.ne.s32.totalorder %s84, %s85
    %p97 = scmp.eq.s32.totalorder %s26, 15
    %p98 = por %p96, %p97
    %p100 = scmp.ne.s32.totalorder %s85, %s99
    %p101 = scmp.eq.s32.totalorder %s26, 0
    %p102 = por %p100, %p101
    %s104 = sadd.s32 %s103, 1
    %p107 = scmp.eq.s32.totalorder %s20, 15
    %p108 = scmp.ne.s32.totalorder %s103, %s105
    %p109 = scmp.eq.s32.totalorder %s20, 0
    %p110 = por %p108, %p109
    %p111 = scmp.ne.s32.totalorder %s103, %s105
    %p112 = scmp.eq.s32.totalorder %s25, 15
    %p113 = por %p111, %p112
    %p114 = scmp.ne.s32.totalorder %s105, %s106
    %p115 = scmp.eq.s32.totalorder %s25, 0
    %p116 = por %p114, %p115
    %p117 = scmp.ne.s32.totalorder %s105, %s106
    %p118 = scmp.eq.s32.totalorder %s26, 15
    %p119 = por %p117, %p118
    %p121 = scmp.ne.s32.totalorder %s106, %s120
    %p122 = scmp.eq.s32.totalorder %s26, 0
    %p123 = por %p121, %p122
    %s125 = sadd.s32 %s124, 1
    %p128 = scmp.eq.s32.totalorder %s20, 15
    %p129 = scmp.ne.s32.totalorder %s124, %s126
    %p130 = scmp.eq.s32.totalorder %s20, 0
    %p131 = por %p129, %p130
    %p132 = scmp.ne.s32.totalorder %s124, %s126
    %p133 = scmp.eq.s32.totalorder %s25, 15
    %p134 = por %p132, %p133
    %p135 = scmp.ne.s32.totalorder %s126, %s127
    %p136 = scmp.eq.s32.totalorder %s25, 0
    %p137 = por %p135, %p136
    %p138 = scmp.ne.s32.totalorder %s126, %s127
    %p139 = scmp.eq.s32.totalorder %s26, 15
    %p140 = por %p138, %p139
    %p142 = scmp.ne.s32.totalorder %s127, %s141
    %p143 = scmp.eq.s32.totalorder %s26, 0
    %p144 = por %p142, %p143
    %s146 = sadd.s32 %s145, 1
    %p149 = scmp.eq.s32.totalorder %s20, 15
    %p150 = scmp.ne.s32.totalorder %s145, %s147
    %p151 = scmp.eq.s32.totalorder %s20, 0
    %p152 = por %p150, %p151
    %p153 = scmp.ne.s32.totalorder %s145, %s147
    %p154 = scmp.eq.s32.totalorder %s25, 15
    %p155 = por %p153, %p154
    %p156 = scmp.ne.s32.totalorder %s147, %s148
    %p157 = scmp.eq.s32.totalorder %s25, 0
    %p158 = por %p156, %p157
    %p159 = scmp.ne.s32.totalorder %s147, %s148
    %p160 = scmp.eq.s32.totalorder %s26, 15
    %p161 = por %p159, %p160
    %p163 = scmp.ne.s32.totalorder %s148, %s162
    %p164 = scmp.eq.s32.totalorder %s26, 0
    %p165 = por %p163, %p164
    %s166 = smul.u32 %s28, 2
    %s167 = smul.u32 %s35, 2
    %s168 = ssub.s32 %s27, %s39
    %s169 = ssub.s32 %s166, %s167
    %s170 = sor.u32 %s168, %s169
    %p171 = scmp.eq.s32.totalorder %s170, 0
    %s173 = sadd.s32 %s172, 1
    %s174 = scalar_select %p171, %s172, %s173
    %p177 = pneg %p171
    %p178 = scmp.eq.s32.totalorder %s20, 15
    %p179 = por %p177, %p178
    %p180 = scmp.ne.s32.totalorder %s172, %s175
    %p181 = scmp.eq.s32.totalorder %s20, 0
    %p182 = por %p180, %p181
    %p183 = scmp.ne.s32.totalorder %s172, %s175
    %p184 = scmp.eq.s32.totalorder %s25, 15
    %p185 = por %p183, %p184
    %p186 = scmp.ne.s32.totalorder %s175, %s176
    %p187 = scmp.eq.s32.totalorder %s25, 0
    %p188 = por %p186, %p187
    %p189 = scmp.ne.s32.totalorder %s175, %s176
    %p190 = scmp.eq.s32.totalorder %s26, 15
    %p191 = por %p189, %p190
    %p193 = scmp.ne.s32.totalorder %s176, %s192
    %p194 = scmp.eq.s32.totalorder %s26, 0
    %p195 = por %p193, %p194
    %s196 = smul.u32 %s28, 2
    %s197 = smul.u32 %s35, 2
    %s198 = ssub.s32 %s27, %s39
    %s199 = ssub.s32 %s196, %s197
    %s200 = sor.u32 %s198, %s199
    %p201 = scmp.eq.s32.totalorder %s200, 0
    %s203 = sadd.s32 %s202, 1
    %s204 = scalar_select %p201, %s202, %s203
    %p207 = pneg %p201
    %p208 = scmp.eq.s32.totalorder %s20, 15
    %p209 = por %p207, %p208
    %p210 = scmp.ne.s32.totalorder %s202, %s205
    %p211 = scmp.eq.s32.totalorder %s20, 0
    %p212 = por %p210, %p211
    %p213 = scmp.ne.s32.totalorder %s202, %s205
    %p214 = scmp.eq.s32.totalorder %s25, 15
    %p215 = por %p213, %p214
    %p216 = scmp.ne.s32.totalorder %s205, %s206
    %p217 = scmp.eq.s32.totalorder %s25, 0
    %p218 = por %p216, %p217
    %p219 = scmp.ne.s32.totalorder %s205, %s206
    %p220 = scmp.eq.s32.totalorder %s26, 15
    %p221 = por %p219, %p220
    %p223 = scmp.ne.s32.totalorder %s206, %s222
    %p224 = scmp.eq.s32.totalorder %s26, 0
    %p225 = por %p223, %p224
    %s226 = smul.u32 %s28, 2
    %s227 = sadd.s32 %s226, 1
    %s228 = smul.u32 %s35, 2
    %s229 = sadd.s32 %s228, 1
    %s230 = ssub.s32 %s27, %s39
    %s231 = ssub.s32 %s227, %s229
    %s232 = sor.u32 %s230, %s231
    %p233 = scmp.eq.s32.totalorder %s232, 0
    %s235 = sadd.s32 %s234, 1
    %s236 = scalar_select %p233, %s234, %s235
    %p239 = pneg %p233
    %p240 = scmp.eq.s32.totalorder %s20, 15
    %p241 = por %p239, %p240
    %p242 = scmp.ne.s32.totalorder %s234, %s237
    %p243 = scmp.eq.s32.totalorder %s20, 0
    %p244 = por %p242, %p243
    %p245 = scmp.ne.s32.totalorder %s234, %s237
    %p246 = scmp.eq.s32.totalorder %s25, 15
    %p247 = por %p245, %p246
    %p248 = scmp.ne.s32.totalorder %s237, %s238
    %p249 = scmp.eq.s32.totalorder %s25, 0
    %p250 = por %p248, %p249
    %p251 = scmp.ne.s32.totalorder %s237, %s238
    %p252 = scmp.eq.s32.totalorder %s26, 15
    %p253 = por %p251, %p252
    %p255 = scmp.ne.s32.totalorder %s238, %s254
    %p256 = scmp.eq.s32.totalorder %s26, 0
    %p257 = por %p255, %p256
    %s258 = smul.u32 %s28, 2
    %s259 = sadd.s32 %s258, 1
    %s260 = smul.u32 %s35, 2
    %s261 = sadd.s32 %s260, 1
    %s262 = ssub.s32 %s27, %s39
    %s263 = ssub.s32 %s259, %s261
    %s264 = sor.u32 %s262, %s263
    %p265 = scmp.eq.s32.totalorder %s264, 0
    %s267 = sadd.s32 %s266, 1
    %s268 = scalar_select %p265, %s266, %s267
    %p271 = pneg %p265
    %p272 = scmp.eq.s32.totalorder %s20, 15
    %p273 = por %p271, %p272
    %p274 = scmp.ne.s32.totalorder %s266, %s269
    %p275 = scmp.eq.s32.totalorder %s20, 0
    %p276 = por %p274, %p275
    %p277 = scmp.ne.s32.totalorder %s266, %s269
    %p278 = scmp.eq.s32.totalorder %s25, 15
    %p279 = por %p277, %p278
    %p280 = scmp.ne.s32.totalorder %s269, %s270
    %p281 = scmp.eq.s32.totalorder %s25, 0
    %p282 = por %p280, %p281
    %p283 = scmp.ne.s32.totalorder %s269, %s270
    %p284 = scmp.eq.s32.totalorder %s26, 15
    %p285 = por %p283, %p284
    %p287 = scmp.ne.s32.totalorder %s270, %s286
    %p288 = scmp.eq.s32.totalorder %s26, 0
    %p289 = por %p287, %p288
    %s290 = smul.u32 %s28, 2
    %s291 = sadd.s32 %s290, 2
    %s292 = smul.u32 %s35, 2
    %s293 = sadd.s32 %s292, 2
    %s294 = ssub.s32 %s27, %s39
    %s295 = ssub.s32 %s291, %s293
    %s296 = sor.u32 %s294, %s295
    %p297 = scmp.eq.s32.totalorder %s296, 0
    %s299 = sadd.s32 %s298, 1
    %s300 = scalar_select %p297, %s298, %s299
    %p303 = pneg %p297
    %p304 = scmp.eq.s32.totalorder %s20, 15
    %p305 = por %p303, %p304
    %p306 = scmp.ne.s32.totalorder %s298, %s301
    %p307 = scmp.eq.s32.totalorder %s20, 0
    %p308 = por %p306, %p307
    %p309 = scmp.ne.s32.totalorder %s298, %s301
    %p310 = scmp.eq.s32.totalorder %s25, 15
    %p311 = por %p309, %p310
    %p312 = scmp.ne.s32.totalorder %s301, %s302
    %p313 = scmp.eq.s32.totalorder %s25, 0
    %p314 = por %p312, %p313
    %p315 = scmp.ne.s32.totalorder %s301, %s302
    %p316 = scmp.eq.s32.totalorder %s26, 15
    %p317 = por %p315, %p316
    %p319 = scmp.ne.s32.totalorder %s302, %s318
    %p320 = scmp.eq.s32.totalorder %s26, 0
    %p321 = por %p319, %p320
    %s322 = smul.u32 %s28, 2
    %s323 = sadd.s32 %s322, 2
    %s324 = smul.u32 %s35, 2
    %s325 = sadd.s32 %s324, 2
    %s326 = ssub.s32 %s27, %s39
    %s327 = ssub.s32 %s323, %s325
    %s328 = sor.u32 %s326, %s327
    %p329 = scmp.eq.s32.totalorder %s328, 0
    %s331 = sadd.s32 %s330, 1
    %s332 = scalar_select %p329, %s330, %s331
    %p335 = pneg %p329
    %p336 = scmp.eq.s32.totalorder %s20, 15
    %p337 = por %p335, %p336
    %p338 = scmp.ne.s32.totalorder %s330, %s333
    %p339 = scmp.eq.s32.totalorder %s20, 0
    %p340 = por %p338, %p339
    %p341 = scmp.ne.s32.totalorder %s330, %s333
    %p342 = scmp.eq.s32.totalorder %s25, 15
    %p343 = por %p341, %p342
    %p344 = scmp.ne.s32.totalorder %s333, %s334
    %p345 = scmp.eq.s32.totalorder %s25, 0
    %p346 = por %p344, %p345
    %p347 = scmp.ne.s32.totalorder %s333, %s334
    %p348 = scmp.eq.s32.totalorder %s26, 15
    %p349 = por %p347, %p348
    %p351 = scmp.ne.s32.totalorder %s334, %s350
    %p352 = scmp.eq.s32.totalorder %s26, 0
    %p353 = por %p351, %p352
    %s354 = ssub.s32 %s27, %s39
    %s355 = ssub.s32 %s28, %s35
    %s356 = sor.u32 %s354, %s355
    %p357 = scmp.eq.s32.totalorder %s356, 0
    %s359 = sadd.s32 %s358, 1
    %s360 = scalar_select %p357, %s358, %s359
    %p363 = pneg %p357
    %p364 = scmp.eq.s32.totalorder %s20, 15
    %p365 = por %p363, %p364
    %p366 = scmp.ne.s32.totalorder %s358, %s361
    %p367 = scmp.eq.s32.totalorder %s20, 0
    %p368 = por %p366, %p367
    %p369 = scmp.ne.s32.totalorder %s358, %s361
    %p370 = scmp.eq.s32.totalorder %s25, 15
    %p371 = por %p369, %p370
    %p372 = scmp.ne.s32.totalorder %s361, %s362
    %p373 = scmp.eq.s32.totalorder %s25, 0
    %p374 = por %p372, %p373
    %p375 = scmp.ne.s32.totalorder %s361, %s362
    %p376 = scmp.eq.s32.totalorder %s26, 15
    %p377 = por %p375, %p376
    %p379 = scmp.ne.s32.totalorder %s362, %s378
    %p380 = scmp.eq.s32.totalorder %s26, 0
    %p381 = por %p379, %p380
    %s382 = ssub.s32 %s27, %s39
    %s383 = ssub.s32 %s28, %s35
    %s384 = sor.u32 %s382, %s383
    %p385 = scmp.eq.s32.totalorder %s384, 0
    %s387 = sadd.s32 %s386, 1
    %s388 = scalar_select %p385, %s386, %s387
    %p391 = pneg %p385
    %p392 = scmp.eq.s32.totalorder %s20, 15
    %p393 = por %p391, %p392
    %p394 = scmp.ne.s32.totalorder %s386, %s389
    %p395 = scmp.eq.s32.totalorder %s20, 0
    %p396 = por %p394, %p395
    %p397 = scmp.ne.s32.totalorder %s386, %s389
    %p398 = scmp.eq.s32.totalorder %s25, 15
    %p399 = por %p397, %p398
    %p400 = scmp.ne.s32.totalorder %s389, %s390
    %p401 = scmp.eq.s32.totalorder %s25, 0
    %p402 = por %p400, %p401
    %p403 = scmp.ne.s32.totalorder %s389, %s390
    %p404 = scmp.eq.s32.totalorder %s26, 15
    %p405 = por %p403, %p404
    %p407 = scmp.ne.s32.totalorder %s390, %s406
    %p408 = scmp.eq.s32.totalorder %s26, 0
    %p409 = por %p407, %p408
    %p410 = scmp.le.s32.totalorder 1, %s20
    %p411 = scmp.lt.s32.totalorder %s20, 17
    %p412 = pnand %p410, %p411
    %p413 = pneg %p412
    // Predicated region
    $region9: #{stem_block.4} parent=5 // pred_check
      _
    $region10: #{stem_block.4} parent=5 // pred_check_branch
      %415 = sbr.rel (%p412) target = $region12
    $region11: #{stem_block.4} parent=5 // pred_region
      %s416 = ssub.s32 %s20, 1
      // Predicated region
      $region13: #{stem_block.4} parent=11 // pred_check
        %p417 = pneg %p53
      $region14: #{stem_block.4} parent=11 // pred_check_branch
        %419 = sbr.rel (%p417) target = $region16
      $region15: #{stem_block.4} parent=11 // pred_region
        _
      $region16: #{stem_block.4} parent=11 // pred_fallthru
        _
      // Predicated region
      $region17: #{stem_block.4} parent=11 // pred_check
        %p420 = pneg %p74
      $region18: #{stem_block.4} parent=11 // pred_check_branch
        %422 = sbr.rel (%p420) target = $region20
      $region19: #{stem_block.4} parent=11 // pred_region
        _
      $region20: #{stem_block.4} parent=11 // pred_fallthru
        _
      // Predicated region
      $region21: #{stem_block.4} parent=11 // pred_check
        %p423 = pneg %p95
      $region22: #{stem_block.4} parent=11 // pred_check_branch
        %425 = sbr.rel (%p423) target = $region24
      $region23: #{stem_block.4} parent=11 // pred_region
        _
      $region24: #{stem_block.4} parent=11 // pred_fallthru
        _
      // Predicated region
      $region25: #{stem_block.4} parent=11 // pred_check
        %p426 = pneg %p116
      $region26: #{stem_block.4} parent=11 // pred_check_branch
        %428 = sbr.rel (%p426) target = $region28
      $region27: #{stem_block.4} parent=11 // pred_region
        _
      $region28: #{stem_block.4} parent=11 // pred_fallthru
        _
      // Predicated region
      $region29: #{stem_block.4} parent=11 // pred_check
        %p429 = pneg %p137
      $region30: #{stem_block.4} parent=11 // pred_check_branch
        %431 = sbr.rel (%p429) target = $region32
      $region31: #{stem_block.4} parent=11 // pred_region
        _
      $region32: #{stem_block.4} parent=11 // pred_fallthru
        _
      // Predicated region
      $region33: #{stem_block.4} parent=11 // pred_check
        %p432 = pneg %p158
      $region34: #{stem_block.4} parent=11 // pred_check_branch
        %434 = sbr.rel (%p432) target = $region36
      $region35: #{stem_block.4} parent=11 // pred_region
        _
      $region36: #{stem_block.4} parent=11 // pred_fallthru
        _
    $region12: #{stem_block.4} parent=5 // pred_fallthru
      _
    %p435 = scmp.lt.s32.totalorder %s20, 16
    // Predicated region
    $region37: #{stem_block.4} parent=5 // pred_check
      %p436 = pneg %p435
    $region38: #{stem_block.4} parent=5 // pred_check_branch
      %438 = sbr.rel (%p436) target = $region40
    $region39: #{stem_block.4} parent=5 // pred_region
      // Predicated region
      $region41: #{stem_block.4} parent=39 // pred_check
        %p439 = pneg %p182
      $region42: #{stem_block.4} parent=39 // pred_check_branch
        %441 = sbr.rel (%p439) target = $region44
      $region43: #{stem_block.4} parent=39 // pred_region
        %s442 = smul.u32 %s28, 2
        %p443 = scmp.lt.s32.totalorder %s27, 1
        %s444 = scalar_select %p443, %s27, 1
        %p445 = scmp.lt.s32.totalorder %s442, 17
        %s446 = scalar_select %p445, %s442, 17
        %s447 = smul.addr %s444, 18
        %s448 = sadd.s32 %s446, %s447
        %s449 = smul.addr %s448, 2
        %s450 = scalar_lea.vmem %s6, %s449
        %s451 = smul.u32 %s28, 2
      $region44: #{stem_block.4} parent=39 // pred_fallthru
        _
      // Predicated region
      $region45: #{stem_block.4} parent=39 // pred_check
        %p452 = pneg %p212
      $region46: #{stem_block.4} parent=39 // pred_check_branch
        %454 = sbr.rel (%p452) target = $region48
      $region47: #{stem_block.4} parent=39 // pred_region
        %s455 = smul.u32 %s28, 2
        %p456 = scmp.lt.s32.totalorder %s27, 1
        %s457 = scalar_select %p456, %s27, 1
        %p458 = scmp.lt.s32.totalorder %s455, 17
        %s459 = scalar_select %p458, %s455, 17
        %s460 = smul.addr %s457, 18
        %s461 = sadd.s32 %s459, %s460
        %s462 = smul.addr %s461, 2
        %s463 = scalar_lea.vmem %s7, %s462
        %s464 = smul.u32 %s28, 2
      $region48: #{stem_block.4} parent=39 // pred_fallthru
        _
      // Predicated region
      $region49: #{stem_block.4} parent=39 // pred_check
        %p465 = pneg %p244
      $region50: #{stem_block.4} parent=39 // pred_check_branch
        %467 = sbr.rel (%p465) target = $region52
      $region51: #{stem_block.4} parent=39 // pred_region
        %s468 = smul.u32 %s28, 2
        %s469 = sadd.s32 %s468, 1
        %p470 = scmp.lt.s32.totalorder %s27, 1
        %s471 = scalar_select %p470, %s27, 1
        %p472 = scmp.lt.s32.totalorder %s469, 17
        %s473 = scalar_select %p472, %s469, 17
        %s474 = smul.addr %s471, 18
        %s475 = sadd.s32 %s473, %s474
        %s476 = smul.addr %s475, 2
        %s477 = scalar_lea.vmem %s8, %s476
        %s478 = smul.u32 %s28, 2
        %s479 = sadd.s32 %s478, 1
      $region52: #{stem_block.4} parent=39 // pred_fallthru
        _
      // Predicated region
      $region53: #{stem_block.4} parent=39 // pred_check
        %p480 = pneg %p276
      $region54: #{stem_block.4} parent=39 // pred_check_branch
        %482 = sbr.rel (%p480) target = $region56
      $region55: #{stem_block.4} parent=39 // pred_region
        %s483 = smul.u32 %s28, 2
        %s484 = sadd.s32 %s483, 1
        %p485 = scmp.lt.s32.totalorder %s27, 1
        %s486 = scalar_select %p485, %s27, 1
        %p487 = scmp.lt.s32.totalorder %s484, 17
        %s488 = scalar_select %p487, %s484, 17
        %s489 = smul.addr %s486, 18
        %s490 = sadd.s32 %s488, %s489
        %s491 = smul.addr %s490, 2
        %s492 = scalar_lea.vmem %s9, %s491
        %s493 = smul.u32 %s28, 2
        %s494 = sadd.s32 %s493, 1
      $region56: #{stem_block.4} parent=39 // pred_fallthru
        _
      // Predicated region
      $region57: #{stem_block.4} parent=39 // pred_check
        %p495 = pneg %p308
      $region58: #{stem_block.4} parent=39 // pred_check_branch
        %497 = sbr.rel (%p495) target = $region60
      $region59: #{stem_block.4} parent=39 // pred_region
        %s498 = smul.u32 %s28, 2
        %s499 = sadd.s32 %s498, 2
        %p500 = scmp.lt.s32.totalorder %s27, 1
        %s501 = scalar_select %p500, %s27, 1
        %p502 = scmp.lt.s32.totalorder %s499, 17
        %s503 = scalar_select %p502, %s499, 17
        %s504 = smul.addr %s501, 18
        %s505 = sadd.s32 %s503, %s504
        %s506 = smul.addr %s505, 2
        %s507 = scalar_lea.vmem %s10, %s506
        %s508 = smul.u32 %s28, 2
        %s509 = sadd.s32 %s508, 2
      $region60: #{stem_block.4} parent=39 // pred_fallthru
        _
      // Predicated region
      $region61: #{stem_block.4} parent=39 // pred_check
        %p510 = pneg %p340
      $region62: #{stem_block.4} parent=39 // pred_check_branch
        %512 = sbr.rel (%p510) target = $region64
      $region63: #{stem_block.4} parent=39 // pred_region
        %s513 = smul.u32 %s28, 2
        %s514 = sadd.s32 %s513, 2
        %p515 = scmp.lt.s32.totalorder %s27, 1
        %s516 = scalar_select %p515, %s27, 1
        %p517 = scmp.lt.s32.totalorder %s514, 17
        %s518 = scalar_select %p517, %s514, 17
        %s519 = smul.addr %s516, 18
        %s520 = sadd.s32 %s518, %s519
        %s521 = smul.addr %s520, 2
        %s522 = scalar_lea.vmem %s11, %s521
        %s523 = smul.u32 %s28, 2
        %s524 = sadd.s32 %s523, 2
      $region64: #{stem_block.4} parent=39 // pred_fallthru
        _
    $region40: #{stem_block.4} parent=5 // pred_fallthru
      _
    %p525 = scmp.le.s32.totalorder 1, %s20
    %p526 = scmp.lt.s32.totalorder %s20, 17
    %p527 = pnand %p525, %p526
    %p528 = pneg %p527
    // Predicated region
    $region65: #{stem_block.4} parent=5 // pred_check
      _
    $region66: #{stem_block.4} parent=5 // pred_check_branch
      %530 = sbr.rel (%p527) target = $region68
    $region67: #{stem_block.4} parent=5 // pred_region
      %s531 = ssub.s32 %s20, 1
      %p532 = pneg %p53
      %p533 = pneg %p50
      %p534 = pneg %p74
      %p535 = pneg %p71
      %p536 = pneg %p95
      %p537 = pneg %p92
      %p538 = pneg %p116
      %p539 = pneg %p113
      %p540 = pneg %p137
      %p541 = pneg %p134
      %p542 = pneg %p158
      %p543 = pneg %p155
      %s544 = smul.u32 %s30, 2
      %p545 = scmp.lt.s32.totalorder %s29, 1
      %s546 = scalar_select %p545, %s29, 1
      %p547 = scmp.lt.s32.totalorder %s544, 17
      %s548 = scalar_select %p547, %s544, 17
      %s549 = smul.addr %s546, 18
      %s550 = sadd.s32 %s548, %s549
      %s551 = smul.addr %s550, 2
      %s552 = scalar_lea.vmem %s6, %s551
      %p553 = pneg %p188
      %p554 = pneg %p185
      %s555 = smul.u32 %s30, 2
      %p556 = scmp.lt.s32.totalorder %s29, 1
      %s557 = scalar_select %p556, %s29, 1
      %p558 = scmp.lt.s32.totalorder %s555, 17
      %s559 = scalar_select %p558, %s555, 17
      %s560 = smul.addr %s557, 18
      %s561 = sadd.s32 %s559, %s560
      %s562 = smul.addr %s561, 2
      %s563 = scalar_lea.vmem %s7, %s562
      %p564 = pneg %p218
      %p565 = pneg %p215
      %s566 = smul.u32 %s30, 2
      %s567 = sadd.s32 %s566, 1
      %p568 = scmp.lt.s32.totalorder %s29, 1
      %s569 = scalar_select %p568, %s29, 1
      %p570 = scmp.lt.s32.totalorder %s567, 17
      %s571 = scalar_select %p570, %s567, 17
      %s572 = smul.addr %s569, 18
      %s573 = sadd.s32 %s571, %s572
      %s574 = smul.addr %s573, 2
      %s575 = scalar_lea.vmem %s8, %s574
      %p576 = pneg %p250
      %p577 = pneg %p247
      %s578 = smul.u32 %s30, 2
      %s579 = sadd.s32 %s578, 1
      %p580 = scmp.lt.s32.totalorder %s29, 1
      %s581 = scalar_select %p580, %s29, 1
      %p582 = scmp.lt.s32.totalorder %s579, 17
      %s583 = scalar_select %p582, %s579, 17
      %s584 = smul.addr %s581, 18
      %s585 = sadd.s32 %s583, %s584
      %s586 = smul.addr %s585, 2
      %s587 = scalar_lea.vmem %s9, %s586
      %p588 = pneg %p282
      %p589 = pneg %p279
      %s590 = smul.u32 %s30, 2
      %s591 = sadd.s32 %s590, 2
      %p592 = scmp.lt.s32.totalorder %s29, 1
      %s593 = scalar_select %p592, %s29, 1
      %p594 = scmp.lt.s32.totalorder %s591, 17
      %s595 = scalar_select %p594, %s591, 17
      %s596 = smul.addr %s593, 18
      %s597 = sadd.s32 %s595, %s596
      %s598 = smul.addr %s597, 2
      %s599 = scalar_lea.vmem %s10, %s598
      %p600 = pneg %p314
      %p601 = pneg %p311
      %s602 = smul.u32 %s30, 2
      %s603 = sadd.s32 %s602, 2
      %p604 = scmp.lt.s32.totalorder %s29, 1
      %s605 = scalar_select %p604, %s29, 1
      %p606 = scmp.lt.s32.totalorder %s603, 17
      %s607 = scalar_select %p606, %s603, 17
      %s608 = smul.addr %s605, 18
      %s609 = sadd.s32 %s607, %s608
      %s610 = smul.addr %s609, 2
      %s611 = scalar_lea.vmem %s11, %s610
      %p612 = pneg %p346
      %p613 = pneg %p343
      %p614 = pneg %p374
      %p615 = pneg %p371
      %p616 = scmp.lt.s32.totalorder %s29, 1
      %s617 = scalar_select %p616, %s29, 1
      %p618 = scmp.lt.s32.totalorder %s30, 7
      %s619 = scalar_select %p618, %s30, 7
      %s620 = smul.addr %s619, 2
      %s621 = smul.addr %s617, 16
      %s622 = sadd.s32 %s620, %s621
      %s623 = smul.addr %s622, 4
      %s624 = scalar_lea.vmem %s12, %s623
      %p625 = pneg %p402
      %p626 = pneg %p399
      %p627 = scmp.lt.s32.totalorder %s29, 1
      %s628 = scalar_select %p627, %s29, 1
      %p629 = scmp.lt.s32.totalorder %s30, 7
      %s630 = scalar_select %p629, %s30, 7
      %s631 = smul.addr %s628, 8
      %s632 = sadd.s32 %s630, %s631
      %s633 = smul.addr %s632, 8
      %s634 = scalar_lea.vmem %s13, %s633
      %s635 = smul.u32 %s30, 2
      %p636 = scmp.lt.s32.totalorder %s29, 1
      %s637 = scalar_select %p636, %s29, 1
      %p638 = scmp.lt.s32.totalorder %s635, 17
      %s639 = scalar_select %p638, %s635, 17
      %s640 = smul.addr %s637, 18
      %s641 = sadd.s32 %s639, %s640
      %s642 = smul.addr %s641, 2
      %s643 = scalar_lea.vmem %s6, %s642
      %s644 = smul.u32 %s30, 2
      %s645 = smul.u32 %s30, 2
      %p646 = scmp.lt.s32.totalorder %s29, 1
      %s647 = scalar_select %p646, %s29, 1
      %p648 = scmp.lt.s32.totalorder %s645, 17
      %s649 = scalar_select %p648, %s645, 17
      %s650 = smul.addr %s647, 18
      %s651 = sadd.s32 %s649, %s650
      %s652 = smul.addr %s651, 2
      %s653 = scalar_lea.vmem %s7, %s652
      %s654 = smul.u32 %s30, 2
      %s655 = smul.u32 %s30, 2
      %s656 = sadd.s32 %s655, 1
      %p657 = scmp.lt.s32.totalorder %s29, 1
      %s658 = scalar_select %p657, %s29, 1
      %p659 = scmp.lt.s32.totalorder %s656, 17
      %s660 = scalar_select %p659, %s656, 17
      %s661 = smul.addr %s658, 18
      %s662 = sadd.s32 %s660, %s661
      %s663 = smul.addr %s662, 2
      %s664 = scalar_lea.vmem %s8, %s663
      %s665 = smul.u32 %s30, 2
      %s666 = sadd.s32 %s665, 1
      %s667 = smul.u32 %s30, 2
      %s668 = sadd.s32 %s667, 1
      %p669 = scmp.lt.s32.totalorder %s29, 1
      %s670 = scalar_select %p669, %s29, 1
      %p671 = scmp.lt.s32.totalorder %s668, 17
      %s672 = scalar_select %p671, %s668, 17
      %s673 = smul.addr %s670, 18
      %s674 = sadd.s32 %s672, %s673
      %s675 = smul.addr %s674, 2
      %s676 = scalar_lea.vmem %s9, %s675
      %s677 = smul.u32 %s30, 2
      %s678 = sadd.s32 %s677, 1
      %s679 = smul.u32 %s30, 2
      %s680 = sadd.s32 %s679, 2
      %p681 = scmp.lt.s32.totalorder %s29, 1
      %s682 = scalar_select %p681, %s29, 1
      %p683 = scmp.lt.s32.totalorder %s680, 17
      %s684 = scalar_select %p683, %s680, 17
      %s685 = smul.addr %s682, 18
      %s686 = sadd.s32 %s684, %s685
      %s687 = smul.addr %s686, 2
      %s688 = scalar_lea.vmem %s10, %s687
      %s689 = smul.u32 %s30, 2
      %s690 = sadd.s32 %s689, 2
      %s691 = smul.u32 %s30, 2
      %s692 = sadd.s32 %s691, 2
      %p693 = scmp.lt.s32.totalorder %s29, 1
      %s694 = scalar_select %p693, %s29, 1
      %p695 = scmp.lt.s32.totalorder %s692, 17
      %s696 = scalar_select %p695, %s692, 17
      %s697 = smul.addr %s694, 18
      %s698 = sadd.s32 %s696, %s697
      %s699 = smul.addr %s698, 2
      %s700 = scalar_lea.vmem %s11, %s699
      %s701 = smul.u32 %s30, 2
      %s702 = sadd.s32 %s701, 2
      %p703 = scmp.lt.s32.totalorder %s29, 1
      %s704 = scalar_select %p703, %s29, 1
      %p705 = scmp.lt.s32.totalorder %s30, 7
      %s706 = scalar_select %p705, %s30, 7
      %s707 = smul.addr %s706, 2
      %s708 = smul.addr %s704, 16
      %s709 = sadd.s32 %s707, %s708
      %s710 = smul.addr %s709, 4
      %s711 = scalar_lea.vmem %s12, %s710
      %p712 = scmp.lt.s32.totalorder %s29, 1
      %s713 = scalar_select %p712, %s29, 1
      %p714 = scmp.lt.s32.totalorder %s30, 7
      %s715 = scalar_select %p714, %s30, 7
      %s716 = smul.addr %s713, 8
      %s717 = sadd.s32 %s715, %s716
      %s718 = smul.addr %s717, 8
      %s719 = scalar_lea.vmem %s13, %s718
      %v721 = vld [vmem:[%s643] sm:$0x3]
      %v722 = vld [vmem:[%s653] sm:$0x3]
      %v723 = vld [vmem:[%s0] sm:$0xf]
      %v724 = vld [vmem:[%s0 + $0x4] sm:$0xf]
      %s725 = scalar_lea.vmem %s0, 8
      %v726 = vld [vmem:[%s725] sm:$0xf]
      %v727 = vld [vmem:[%s725 + $0x4] sm:$0xf]
      %v730 = vunpack.c.l.b16 %v726
      %v731 = vunpack.c.l.b16 %v727
      %v732 = vpack.c.b16 %v731, %v730
      %vm733 = vcmask 31744
      %v735 = vsel %vm733, %v732, 0
      %vm737 = vcmask 1041408
      %v739 = vsel %vm737, %v722, 0
      %741 = vmatprep.subr.bf16.mxu0 0
      %742 = vmatpush1.bf16.msra.mxu0 0
      %743 = vmatprep.subr.bf16.mxu0 0
      %744 = vmatpush1.bf16.msra.mxu0 0
      %745 = vmatprep.subr.bf16.mxu0 0
      %746 = vmatpush1.bf16.msra.mxu0 0
      %747 = vmatprep.subr.bf16.mxu0 0
      %748 = vmatpush1.bf16.msra.mxu0 0
      %749 = vmatprep.subr.bf16.mxu0 0
      %750 = vmatpush1.bf16.msra.mxu0 0
      %751 = vmatprep.subr.bf16.mxu0 0
      %752 = vmatpush1.bf16.msra.mxu0 0
      %753 = vmatprep.subr.bf16.mxu0 0
      %754 = vmatpush1.bf16.msra.mxu0 0
      %755 = vmatprep.subr.bf16.mxu0 0
      %756 = vmatpush1.bf16.msra.mxu0 %v739
      %757 = vmatprep.subr.bf16.mxu0 0
      %758 = vmatpush2.bf16.msra.mxu0 0
      %759 = vmatprep.subr.bf16.mxu0 0
      %760 = vmatpush2.bf16.msra.mxu0 0
      %761 = vmatprep.subr.bf16.mxu0 0
      %762 = vmatpush2.bf16.msra.mxu0 0
      %763 = vmatprep.subr.bf16.mxu0 0
      %764 = vmatpush2.bf16.msra.mxu0 0
      %765 = vmatprep.subr.bf16.mxu0 0
      %766 = vmatpush2.bf16.msra.mxu0 0
      %767 = vmatprep.subr.bf16.mxu0 0
      %768 = vmatpush2.bf16.msra.mxu0 0
      %769 = vmatprep.subr.bf16.mxu0 0
      %770 = vmatpush2.bf16.msra.mxu0 0
      %771 = vmatprep.subr.bf16.mxu0 0
      %772 = vmatpush2.bf16.msra.mxu0 0
      %773 = vmatprep.mubr.bf16.mxu0 0
      %774 = vmatmul.mubr.bf16.gmra.mxu0 %v735
      %v775 = vpop.f32.mrf.mxu0
      %v776 = vadd.f32 0.0, %v775
      %v777 = vpop.f32.mrf.mxu0
      %v778 = vpop.f32.mrf.mxu0
      %v779 = vadd.f32 0.0, %v778
      %v780 = vpop.f32.mrf.mxu0
      %781 = vdwg.mxu0
      %v784 = vunpack.c.l.b16 %v723
      %v785 = vunpack.c.l.b16 %v724
      %v786 = vpack.c.b16 %v785, %v784
      %v788 = vsel %vm733, %v786, 0
      %v791 = vsel %vm737, %v721, 0
      %793 = vmatprep.subr.bf16.mxu0 0
      %794 = vmatpush1.bf16.msra.mxu0 0
      %795 = vmatprep.subr.bf16.mxu0 0
      %796 = vmatpush1.bf16.msra.mxu0 0
      %797 = vmatprep.subr.bf16.mxu0 0
      %798 = vmatpush1.bf16.msra.mxu0 0
      %799 = vmatprep.subr.bf16.mxu0 0
      %800 = vmatpush1.bf16.msra.mxu0 0
      %801 = vmatprep.subr.bf16.mxu0 0
      %802 = vmatpush1.bf16.msra.mxu0 0
      %803 = vmatprep.subr.bf16.mxu0 0
      %804 = vmatpush1.bf16.msra.mxu0 0
      %805 = vmatprep.subr.bf16.mxu0 0
      %806 = vmatpush1.bf16.msra.mxu0 0
      %807 = vmatprep.subr.bf16.mxu0 0
      %808 = vmatpush1.bf16.msra.mxu0 %v791
      %809 = vmatprep.subr.bf16.mxu0 0
      %810 = vmatpush2.bf16.msra.mxu0 0
      %811 = vmatprep.subr.bf16.mxu0 0
      %812 = vmatpush2.bf16.msra.mxu0 0
      %813 = vmatprep.subr.bf16.mxu0 0
      %814 = vmatpush2.bf16.msra.mxu0 0
      %815 = vmatprep.subr.bf16.mxu0 0
      %816 = vmatpush2.bf16.msra.mxu0 0
      %817 = vmatprep.subr.bf16.mxu0 0
      %818 = vmatpush2.bf16.msra.mxu0 0
      %819 = vmatprep.subr.bf16.mxu0 0
      %820 = vmatpush2.bf16.msra.mxu0 0
      %821 = vmatprep.subr.bf16.mxu0 0
      %822 = vmatpush2.bf16.msra.mxu0 0
      %823 = vmatprep.subr.bf16.mxu0 0
      %824 = vmatpush2.bf16.msra.mxu0 0
      %825 = vmatprep.mubr.bf16.mxu0 0
      %826 = vmatmul.mubr.bf16.gmra.mxu0 %v788
      %v827 = vpop.f32.mrf.mxu0
      %v828 = vadd.f32 %v776, %v827
      %v829 = vpop.f32.mrf.mxu0
      %v830 = vpop.f32.mrf.mxu0
      %v831 = vadd.f32 %v779, %v830
      %v832 = vpop.f32.mrf.mxu0
      %833 = vdwg.mxu0
      %s834 = scalar_lea.vmem %s0, 16
      %v835 = vld [vmem:[%s834] sm:$0xf]
      %v836 = vld [vmem:[%s834 + $0x4] sm:$0xf]
      %v839 = vunpack.c.l.b16 %v835
      %v840 = vunpack.c.l.b16 %v836
      %v841 = vpack.c.b16 %v840, %v839
      %v844 = vunpack.c.l.s4 1983009808
      %v845 = vunpack.c.0.s8 %v844
      %v846 = vlaneseq
      %v847 = vshrl.u32 %v846, 7
      %v848 = vsub.s32 %v845, %v847
      %v849 = vrot.slane %v721, %v848
      %850 = vrot.lane.b32.xlu0 %v849, 127
      %v851 = vpop.permute.xlu0 %850
      %v853 = vsel %vm733, %v841, 0
      %v856 = vsel %vm737, %v851, 0
      %858 = vmatprep.subr.bf16.mxu0 0
      %859 = vmatpush1.bf16.msra.mxu0 0
      %860 = vmatprep.subr.bf16.mxu0 0
      %861 = vmatpush1.bf16.msra.mxu0 0
      %862 = vmatprep.subr.bf16.mxu0 0
      %863 = vmatpush1.bf16.msra.mxu0 0
      %864 = vmatprep.subr.bf16.mxu0 0
      %865 = vmatpush1.bf16.msra.mxu0 0
      %866 = vmatprep.subr.bf16.mxu0 0
      %867 = vmatpush1.bf16.msra.mxu0 0
      %868 = vmatprep.subr.bf16.mxu0 0
      %869 = vmatpush1.bf16.msra.mxu0 0
      %870 = vmatprep.subr.bf16.mxu0 0
      %871 = vmatpush1.bf16.msra.mxu0 0
      %872 = vmatprep.subr.bf16.mxu0 0
      %873 = vmatpush1.bf16.msra.mxu0 %v856
      %874 = vmatprep.subr.bf16.mxu0 0
      %875 = vmatpush2.bf16.msra.mxu0 0
      %876 = vmatprep.subr.bf16.mxu0 0
      %877 = vmatpush2.bf16.msra.mxu0 0
      %878 = vmatprep.subr.bf16.mxu0 0
      %879 = vmatpush2.bf16.msra.mxu0 0
      %880 = vmatprep.subr.bf16.mxu0 0
      %881 = vmatpush2.bf16.msra.mxu0 0
      %882 = vmatprep.subr.bf16.mxu0 0
      %883 = vmatpush2.bf16.msra.mxu0 0
      %884 = vmatprep.subr.bf16.mxu0 0
      %885 = vmatpush2.bf16.msra.mxu0 0
      %886 = vmatprep.subr.bf16.mxu0 0
      %887 = vmatpush2.bf16.msra.mxu0 0
      %888 = vmatprep.subr.bf16.mxu0 0
      %889 = vmatpush2.bf16.msra.mxu0 0
      %890 = vmatprep.mubr.bf16.mxu0 0
      %891 = vmatmul.mubr.bf16.gmra.mxu0 %v853
      %v892 = vpop.f32.mrf.mxu0
      %v893 = vadd.f32 0.0, %v892
      %v894 = vpop.f32.mrf.mxu0
      %v895 = vpop.f32.mrf.mxu0
      %v896 = vadd.f32 0.0, %v895
      %v897 = vpop.f32.mrf.mxu0
      %898 = vdwg.mxu0
      %v899 = vadd.f32 %v828, %v893
      %v900 = vadd.f32 %v831, %v896
      %v901 = vld [vmem:[%s664] sm:$0x3]
      %v902 = vld [vmem:[%s676] sm:$0x3]
      %s903 = scalar_lea.vmem %s0, 24
      %v904 = vld [vmem:[%s903] sm:$0xf]
      %v905 = vld [vmem:[%s903 + $0x4] sm:$0xf]
      %v908 = vunpack.c.l.b16 %v904
      %v909 = vunpack.c.l.b16 %v905
      %v910 = vpack.c.b16 %v909, %v908
      %v912 = vsel %vm733, %v910, 0
      %v915 = vsel %vm737, %v901, 0
      %917 = vmatprep.subr.bf16.mxu0 0
      %918 = vmatpush1.bf16.msra.mxu0 0
      %919 = vmatprep.subr.bf16.mxu0 0
      %920 = vmatpush1.bf16.msra.mxu0 0
      %921 = vmatprep.subr.bf16.mxu0 0
      %922 = vmatpush1.bf16.msra.mxu0 0
      %923 = vmatprep.subr.bf16.mxu0 0
      %924 = vmatpush1.bf16.msra.mxu0 0
      %925 = vmatprep.subr.bf16.mxu0 0
      %926 = vmatpush1.bf16.msra.mxu0 0
      %927 = vmatprep.subr.bf16.mxu0 0
      %928 = vmatpush1.bf16.msra.mxu0 0
      %929 = vmatprep.subr.bf16.mxu0 0
      %930 = vmatpush1.bf16.msra.mxu0 0
      %931 = vmatprep.subr.bf16.mxu0 0
      %932 = vmatpush1.bf16.msra.mxu0 %v915
      %933 = vmatprep.subr.bf16.mxu0 0
      %934 = vmatpush2.bf16.msra.mxu0 0
      %935 = vmatprep.subr.bf16.mxu0 0
      %936 = vmatpush2.bf16.msra.mxu0 0
      %937 = vmatprep.subr.bf16.mxu0 0
      %938 = vmatpush2.bf16.msra.mxu0 0
      %939 = vmatprep.subr.bf16.mxu0 0
      %940 = vmatpush2.bf16.msra.mxu0 0
      %941 = vmatprep.subr.bf16.mxu0 0
      %942 = vmatpush2.bf16.msra.mxu0 0
      %943 = vmatprep.subr.bf16.mxu0 0
      %944 = vmatpush2.bf16.msra.mxu0 0
      %945 = vmatprep.subr.bf16.mxu0 0
      %946 = vmatpush2.bf16.msra.mxu0 0
      %947 = vmatprep.subr.bf16.mxu0 0
      %948 = vmatpush2.bf16.msra.mxu0 0
      %949 = vmatprep.mubr.bf16.mxu0 0
      %950 = vmatmul.mubr.bf16.gmra.mxu0 %v912
      %v951 = vpop.f32.mrf.mxu0
      %v952 = vadd.f32 0.0, %v951
      %v953 = vpop.f32.mrf.mxu0
      %v954 = vpop.f32.mrf.mxu0
      %v955 = vadd.f32 0.0, %v954
      %v956 = vpop.f32.mrf.mxu0
      %957 = vdwg.mxu0
      %v958 = vadd.f32 %v899, %v952
      %v959 = vadd.f32 %v900, %v955
      %s960 = scalar_lea.vmem %s0, 32
      %v961 = vld [vmem:[%s960] sm:$0xf]
      %v962 = vld [vmem:[%s960 + $0x4] sm:$0xf]
      %v965 = vunpack.c.l.b16 %v961
      %v966 = vunpack.c.l.b16 %v962
      %v967 = vpack.c.b16 %v966, %v965
      %v969 = vsel %vm733, %v967, 0
      %v972 = vsel %vm737, %v902, 0
      %974 = vmatprep.subr.bf16.mxu0 0
      %975 = vmatpush1.bf16.msra.mxu0 0
      %976 = vmatprep.subr.bf16.mxu0 0
      %977 = vmatpush1.bf16.msra.mxu0 0
      %978 = vmatprep.subr.bf16.mxu0 0
      %979 = vmatpush1.bf16.msra.mxu0 0
      %980 = vmatprep.subr.bf16.mxu0 0
      %981 = vmatpush1.bf16.msra.mxu0 0
      %982 = vmatprep.subr.bf16.mxu0 0
      %983 = vmatpush1.bf16.msra.mxu0 0
      %984 = vmatprep.subr.bf16.mxu0 0
      %985 = vmatpush1.bf16.msra.mxu0 0
      %986 = vmatprep.subr.bf16.mxu0 0
      %987 = vmatpush1.bf16.msra.mxu0 0
      %988 = vmatprep.subr.bf16.mxu0 0
      %989 = vmatpush1.bf16.msra.mxu0 %v972
      %990 = vmatprep.subr.bf16.mxu0 0
      %991 = vmatpush2.bf16.msra.mxu0 0
      %992 = vmatprep.subr.bf16.mxu0 0
      %993 = vmatpush2.bf16.msra.mxu0 0
      %994 = vmatprep.subr.bf16.mxu0 0
      %995 = vmatpush2.bf16.msra.mxu0 0
      %996 = vmatprep.subr.bf16.mxu0 0
      %997 = vmatpush2.bf16.msra.mxu0 0
      %998 = vmatprep.subr.bf16.mxu0 0
      %999 = vmatpush2.bf16.msra.mxu0 0
      %1000 = vmatprep.subr.bf16.mxu0 0
      %1001 = vmatpush2.bf16.msra.mxu0 0
      %1002 = vmatprep.subr.bf16.mxu0 0
      %1003 = vmatpush2.bf16.msra.mxu0 0
      %1004 = vmatprep.subr.bf16.mxu0 0
      %1005 = vmatpush2.bf16.msra.mxu0 0
      %1006 = vmatprep.mubr.bf16.mxu0 0
      %1007 = vmatmul.mubr.bf16.gmra.mxu0 %v969
      %v1008 = vpop.f32.mrf.mxu0
      %v1009 = vadd.f32 0.0, %v1008
      %v1010 = vpop.f32.mrf.mxu0
      %v1011 = vpop.f32.mrf.mxu0
      %v1012 = vadd.f32 0.0, %v1011
      %v1013 = vpop.f32.mrf.mxu0
      %1014 = vdwg.mxu0
      %v1015 = vadd.f32 %v958, %v1009
      %v1016 = vadd.f32 %v959, %v1012
      %s1017 = scalar_lea.vmem %s0, 40
      %v1018 = vld [vmem:[%s1017] sm:$0xf]
      %v1019 = vld [vmem:[%s1017 + $0x4] sm:$0xf]
      %v1022 = vunpack.c.l.b16 %v1018
      %v1023 = vunpack.c.l.b16 %v1019
      %v1024 = vpack.c.b16 %v1023, %v1022
      %v1027 = vunpack.c.l.s4 1983009808
      %v1028 = vunpack.c.0.s8 %v1027
      %v1029 = vlaneseq
      %v1030 = vshrl.u32 %v1029, 7
      %v1031 = vsub.s32 %v1028, %v1030
      %v1032 = vrot.slane %v901, %v1031
      %1033 = vrot.lane.b32.xlu0 %v1032, 127
      %v1034 = vpop.permute.xlu0 %1033
      %v1036 = vsel %vm733, %v1024, 0
      %v1039 = vsel %vm737, %v1034, 0
      %1041 = vmatprep.subr.bf16.mxu0 0
      %1042 = vmatpush1.bf16.msra.mxu0 0
      %1043 = vmatprep.subr.bf16.mxu0 0
      %1044 = vmatpush1.bf16.msra.mxu0 0
      %1045 = vmatprep.subr.bf16.mxu0 0
      %1046 = vmatpush1.bf16.msra.mxu0 0
      %1047 = vmatprep.subr.bf16.mxu0 0
      %1048 = vmatpush1.bf16.msra.mxu0 0
      %1049 = vmatprep.subr.bf16.mxu0 0
      %1050 = vmatpush1.bf16.msra.mxu0 0
      %1051 = vmatprep.subr.bf16.mxu0 0
      %1052 = vmatpush1.bf16.msra.mxu0 0
      %1053 = vmatprep.subr.bf16.mxu0 0
      %1054 = vmatpush1.bf16.msra.mxu0 0
      %1055 = vmatprep.subr.bf16.mxu0 0
      %1056 = vmatpush1.bf16.msra.mxu0 %v1039
      %1057 = vmatprep.subr.bf16.mxu0 0
      %1058 = vmatpush2.bf16.msra.mxu0 0
      %1059 = vmatprep.subr.bf16.mxu0 0
      %1060 = vmatpush2.bf16.msra.mxu0 0
      %1061 = vmatprep.subr.bf16.mxu0 0
      %1062 = vmatpush2.bf16.msra.mxu0 0
      %1063 = vmatprep.subr.bf16.mxu0 0
      %1064 = vmatpush2.bf16.msra.mxu0 0
      %1065 = vmatprep.subr.bf16.mxu0 0
      %1066 = vmatpush2.bf16.msra.mxu0 0
      %1067 = vmatprep.subr.bf16.mxu0 0
      %1068 = vmatpush2.bf16.msra.mxu0 0
      %1069 = vmatprep.subr.bf16.mxu0 0
      %1070 = vmatpush2.bf16.msra.mxu0 0
      %1071 = vmatprep.subr.bf16.mxu0 0
      %1072 = vmatpush2.bf16.msra.mxu0 0
      %1073 = vmatprep.mubr.bf16.mxu0 0
      %1074 = vmatmul.mubr.bf16.gmra.mxu0 %v1036
      %v1075 = vpop.f32.mrf.mxu0
      %v1076 = vadd.f32 0.0, %v1075
      %v1077 = vpop.f32.mrf.mxu0
      %v1078 = vpop.f32.mrf.mxu0
      %v1079 = vadd.f32 0.0, %v1078
      %v1080 = vpop.f32.mrf.mxu0
      %1081 = vdwg.mxu0
      %v1082 = vadd.f32 %v1015, %v1076
      %v1083 = vadd.f32 %v1016, %v1079
      %v1084 = vld [vmem:[%s688] sm:$0x3]
      %v1085 = vld [vmem:[%s700] sm:$0x3]
      %s1086 = scalar_lea.vmem %s0, 48
      %v1087 = vld [vmem:[%s1086] sm:$0xf]
      %v1088 = vld [vmem:[%s1086 + $0x4] sm:$0xf]
      %v1091 = vunpack.c.l.b16 %v1087
      %v1092 = vunpack.c.l.b16 %v1088
      %v1093 = vpack.c.b16 %v1092, %v1091
      %v1095 = vsel %vm733, %v1093, 0
      %v1098 = vsel %vm737, %v1084, 0
      %1100 = vmatprep.subr.bf16.mxu0 0
      %1101 = vmatpush1.bf16.msra.mxu0 0
      %1102 = vmatprep.subr.bf16.mxu0 0
      %1103 = vmatpush1.bf16.msra.mxu0 0
      %1104 = vmatprep.subr.bf16.mxu0 0
      %1105 = vmatpush1.bf16.msra.mxu0 0
      %1106 = vmatprep.subr.bf16.mxu0 0
      %1107 = vmatpush1.bf16.msra.mxu0 0
      %1108 = vmatprep.subr.bf16.mxu0 0
      %1109 = vmatpush1.bf16.msra.mxu0 0
      %1110 = vmatprep.subr.bf16.mxu0 0
      %1111 = vmatpush1.bf16.msra.mxu0 0
      %1112 = vmatprep.subr.bf16.mxu0 0
      %1113 = vmatpush1.bf16.msra.mxu0 0
      %1114 = vmatprep.subr.bf16.mxu0 0
      %1115 = vmatpush1.bf16.msra.mxu0 %v1098
      %1116 = vmatprep.subr.bf16.mxu0 0
      %1117 = vmatpush2.bf16.msra.mxu0 0
      %1118 = vmatprep.subr.bf16.mxu0 0
      %1119 = vmatpush2.bf16.msra.mxu0 0
      %1120 = vmatprep.subr.bf16.mxu0 0
      %1121 = vmatpush2.bf16.msra.mxu0 0
      %1122 = vmatprep.subr.bf16.mxu0 0
      %1123 = vmatpush2.bf16.msra.mxu0 0
      %1124 = vmatprep.subr.bf16.mxu0 0
      %1125 = vmatpush2.bf16.msra.mxu0 0
      %1126 = vmatprep.subr.bf16.mxu0 0
      %1127 = vmatpush2.bf16.msra.mxu0 0
      %1128 = vmatprep.subr.bf16.mxu0 0
      %1129 = vmatpush2.bf16.msra.mxu0 0
      %1130 = vmatprep.subr.bf16.mxu0 0
      %1131 = vmatpush2.bf16.msra.mxu0 0
      %1132 = vmatprep.mubr.bf16.mxu0 0
      %1133 = vmatmul.mubr.bf16.gmra.mxu0 %v1095
      %v1134 = vpop.f32.mrf.mxu0
      %v1135 = vadd.f32 0.0, %v1134
      %v1136 = vpop.f32.mrf.mxu0
      %v1137 = vpop.f32.mrf.mxu0
      %v1138 = vadd.f32 0.0, %v1137
      %v1139 = vpop.f32.mrf.mxu0
      %1140 = vdwg.mxu0
      %v1141 = vadd.f32 %v1082, %v1135
      %v1142 = vadd.f32 %v1083, %v1138
      %s1143 = scalar_lea.vmem %s0, 56
      %v1144 = vld [vmem:[%s1143] sm:$0xf]
      %v1145 = vld [vmem:[%s1143 + $0x4] sm:$0xf]
      %v1148 = vunpack.c.l.b16 %v1144
      %v1149 = vunpack.c.l.b16 %v1145
      %v1150 = vpack.c.b16 %v1149, %v1148
      %v1152 = vsel %vm733, %v1150, 0
      %v1155 = vsel %vm737, %v1085, 0
      %1157 = vmatprep.subr.bf16.mxu0 0
      %1158 = vmatpush1.bf16.msra.mxu0 0
      %1159 = vmatprep.subr.bf16.mxu0 0
      %1160 = vmatpush1.bf16.msra.mxu0 0
      %1161 = vmatprep.subr.bf16.mxu0 0
      %1162 = vmatpush1.bf16.msra.mxu0 0
      %1163 = vmatprep.subr.bf16.mxu0 0
      %1164 = vmatpush1.bf16.msra.mxu0 0
      %1165 = vmatprep.subr.bf16.mxu0 0
      %1166 = vmatpush1.bf16.msra.mxu0 0
      %1167 = vmatprep.subr.bf16.mxu0 0
      %1168 = vmatpush1.bf16.msra.mxu0 0
      %1169 = vmatprep.subr.bf16.mxu0 0
      %1170 = vmatpush1.bf16.msra.mxu0 0
      %1171 = vmatprep.subr.bf16.mxu0 0
      %1172 = vmatpush1.bf16.msra.mxu0 %v1155
      %1173 = vmatprep.subr.bf16.mxu0 0
      %1174 = vmatpush2.bf16.msra.mxu0 0
      %1175 = vmatprep.subr.bf16.mxu0 0
      %1176 = vmatpush2.bf16.msra.mxu0 0
      %1177 = vmatprep.subr.bf16.mxu0 0
      %1178 = vmatpush2.bf16.msra.mxu0 0
      %1179 = vmatprep.subr.bf16.mxu0 0
      %1180 = vmatpush2.bf16.msra.mxu0 0
      %1181 = vmatprep.subr.bf16.mxu0 0
      %1182 = vmatpush2.bf16.msra.mxu0 0
      %1183 = vmatprep.subr.bf16.mxu0 0
      %1184 = vmatpush2.bf16.msra.mxu0 0
      %1185 = vmatprep.subr.bf16.mxu0 0
      %1186 = vmatpush2.bf16.msra.mxu0 0
      %1187 = vmatprep.subr.bf16.mxu0 0
      %1188 = vmatpush2.bf16.msra.mxu0 0
      %1189 = vmatprep.mubr.bf16.mxu0 0
      %1190 = vmatmul.mubr.bf16.gmra.mxu0 %v1152
      %v1191 = vpop.f32.mrf.mxu0
      %v1192 = vadd.f32 0.0, %v1191
      %v1193 = vpop.f32.mrf.mxu0
      %v1194 = vpop.f32.mrf.mxu0
      %v1195 = vadd.f32 0.0, %v1194
      %v1196 = vpop.f32.mrf.mxu0
      %1197 = vdwg.mxu0
      %v1198 = vadd.f32 %v1141, %v1192
      %v1199 = vadd.f32 %v1142, %v1195
      %s1200 = scalar_lea.vmem %s0, 64
      %v1201 = vld [vmem:[%s1200] sm:$0xf]
      %v1202 = vld [vmem:[%s1200 + $0x4] sm:$0xf]
      %v1205 = vunpack.c.l.b16 %v1201
      %v1206 = vunpack.c.l.b16 %v1202
      %v1207 = vpack.c.b16 %v1206, %v1205
      %v1210 = vunpack.c.l.s4 1983009808
      %v1211 = vunpack.c.0.s8 %v1210
      %v1212 = vlaneseq
      %v1213 = vshrl.u32 %v1212, 7
      %v1214 = vsub.s32 %v1211, %v1213
      %v1215 = vrot.slane %v1084, %v1214
      %1216 = vrot.lane.b32.xlu0 %v1215, 127
      %v1217 = vpop.permute.xlu0 %1216
      %v1219 = vsel %vm733, %v1207, 0
      %v1222 = vsel %vm737, %v1217, 0
      %1224 = vmatprep.subr.bf16.mxu0 0
      %1225 = vmatpush1.bf16.msra.mxu0 0
      %1226 = vmatprep.subr.bf16.mxu0 0
      %1227 = vmatpush1.bf16.msra.mxu0 0
      %1228 = vmatprep.subr.bf16.mxu0 0
      %1229 = vmatpush1.bf16.msra.mxu0 0
      %1230 = vmatprep.subr.bf16.mxu0 0
      %1231 = vmatpush1.bf16.msra.mxu0 0
      %1232 = vmatprep.subr.bf16.mxu0 0
      %1233 = vmatpush1.bf16.msra.mxu0 0
      %1234 = vmatprep.subr.bf16.mxu0 0
      %1235 = vmatpush1.bf16.msra.mxu0 0
      %1236 = vmatprep.subr.bf16.mxu0 0
      %1237 = vmatpush1.bf16.msra.mxu0 0
      %1238 = vmatprep.subr.bf16.mxu0 0
      %1239 = vmatpush1.bf16.msra.mxu0 %v1222
      %1240 = vmatprep.subr.bf16.mxu0 0
      %1241 = vmatpush2.bf16.msra.mxu0 0
      %1242 = vmatprep.subr.bf16.mxu0 0
      %1243 = vmatpush2.bf16.msra.mxu0 0
      %1244 = vmatprep.subr.bf16.mxu0 0
      %1245 = vmatpush2.bf16.msra.mxu0 0
      %1246 = vmatprep.subr.bf16.mxu0 0
      %1247 = vmatpush2.bf16.msra.mxu0 0
      %1248 = vmatprep.subr.bf16.mxu0 0
      %1249 = vmatpush2.bf16.msra.mxu0 0
      %1250 = vmatprep.subr.bf16.mxu0 0
      %1251 = vmatpush2.bf16.msra.mxu0 0
      %1252 = vmatprep.subr.bf16.mxu0 0
      %1253 = vmatpush2.bf16.msra.mxu0 0
      %1254 = vmatprep.subr.bf16.mxu0 0
      %1255 = vmatpush2.bf16.msra.mxu0 0
      %1256 = vmatprep.mubr.bf16.mxu0 0
      %1257 = vmatmul.mubr.bf16.gmra.mxu0 %v1219
      %v1258 = vpop.f32.mrf.mxu0
      %v1259 = vadd.f32 0.0, %v1258
      %v1260 = vpop.f32.mrf.mxu0
      %v1261 = vpop.f32.mrf.mxu0
      %v1262 = vadd.f32 0.0, %v1261
      %v1263 = vpop.f32.mrf.mxu0
      %1264 = vdwg.mxu0
      %v1265 = vadd.f32 %v1198, %v1259
      %v1266 = vadd.f32 %v1199, %v1262
      %v1267 = vld [vmem:[%s1] sm:$0xff]
      %v1268 = vld [vmem:[%s1 + $0x8] sm:$0xff]
      %1270 = vset.pattern.permute.xlu0 0
      %1271 = vperm.xlu0 %1270, %v1267
      %v1272 = vpop.permute.xlu0 %1271
      %1275 = vset.pattern.permute.xlu0 0
      %1276 = vperm.xlu0 %1275, %v1268
      %v1277 = vpop.permute.xlu0 %1276
      %v1279 = vmul.f32 %v1265, %v1272
      %v1280 = vmul.f32 %v1266, %v1277
      %v1281 = vld [vmem:[%s2] sm:$0xff]
      %v1282 = vld [vmem:[%s2 + $0x8] sm:$0xff]
      %1284 = vset.pattern.permute.xlu0 0
      %1285 = vperm.xlu0 %1284, %v1281
      %v1286 = vpop.permute.xlu0 %1285
      %1289 = vset.pattern.permute.xlu0 0
      %1290 = vperm.xlu0 %1289, %v1282
      %v1291 = vpop.permute.xlu0 %1290
      %v1293 = vadd.f32 %v1279, %v1286
      %v1294 = vadd.f32 %v1280, %v1291
      %v1295 = vmax.f32 %v1293, 0.0
      %v1296 = vmax.f32 %v1294, 0.0
      %v1297 = vpack.c.bf16 %v1296, %v1295
      %v1299 = vunpack.c.l.b16 %v1297
      %v1300 = vunpack.c.h.b16 %v1297
      %v1301 = vpack.c.b16 %v1299, %v1299
      %v1302 = vpack.c.b16 %v1300, %v1300
      %vm1305 = vcmask 60416
      %1306 = vst.msk [vmem:[%s711] sm:$0xf] %vm1305, %v1301
      %1307 = vst.msk [vmem:[%s711 + $0x4] sm:$0xf] %vm1305, %v1302
      %v1308 = vld [vmem:[%s3] sm:$0xf]
      %vm1309 = vcmask 130048
      %v1311 = vsel %vm1309, %v1308, 0
      %1313 = vmatprep.subr.bf16.mxu0 0
      %1314 = vmatpush1.bf16.msra.mxu0 0
      %1315 = vmatprep.subr.bf16.mxu0 0
      %1316 = vmatpush1.bf16.msra.mxu0 0
      %1317 = vmatprep.subr.bf16.mxu0 0
      %1318 = vmatpush1.bf16.msra.mxu0 0
      %1319 = vmatprep.subr.bf16.mxu0 0
      %1320 = vmatpush1.bf16.msra.mxu0 0
      %1321 = vmatprep.subr.bf16.mxu0 0
      %1322 = vmatpush1.bf16.msra.mxu0 0
      %1323 = vmatprep.subr.bf16.mxu0 0
      %1324 = vmatpush1.bf16.msra.mxu0 0
      %1325 = vmatprep.subr.bf16.mxu0 0
      %1326 = vmatpush1.bf16.msra.mxu0 0
      %1327 = vmatprep.subr.bf16.mxu0 0
      %1328 = vmatpush1.bf16.msra.mxu0 %v1297
      %1329 = vmatprep.subr.bf16.mxu0 0
      %1330 = vmatpush2.bf16.msra.mxu0 0
      %1331 = vmatprep.subr.bf16.mxu0 0
      %1332 = vmatpush2.bf16.msra.mxu0 0
      %1333 = vmatprep.subr.bf16.mxu0 0
      %1334 = vmatpush2.bf16.msra.mxu0 0
      %1335 = vmatprep.subr.bf16.mxu0 0
      %1336 = vmatpush2.bf16.msra.mxu0 0
      %1337 = vmatprep.subr.bf16.mxu0 0
      %1338 = vmatpush2.bf16.msra.mxu0 0
      %1339 = vmatprep.subr.bf16.mxu0 0
      %1340 = vmatpush2.bf16.msra.mxu0 0
      %1341 = vmatprep.subr.bf16.mxu0 0
      %1342 = vmatpush2.bf16.msra.mxu0 0
      %1343 = vmatprep.subr.bf16.mxu0 0
      %1344 = vmatpush2.bf16.msra.mxu0 0
      %1345 = vmatprep.mubr.bf16.mxu0 0
      %1346 = vmatmul.mubr.bf16.gmra.mxu0 %v1311
      %v1347 = vpop.f32.mrf.mxu0
      %v1348 = vadd.f32 0.0, %v1347
      %v1349 = vpop.f32.mrf.mxu0
      %v1350 = vpop.f32.mrf.mxu0
      %v1351 = vpop.f32.mrf.mxu0
      %1352 = vdwg.mxu0
      %v1353 = vld [vmem:[%s4] sm:$0xff]
      %1355 = vset.pattern.permute.xlu0 0
      %1356 = vperm.xlu0 %1355, %v1353
      %v1357 = vpop.permute.xlu0 %1356
      %v1359 = vmul.f32 %v1348, %v1357
      %v1360 = vld [vmem:[%s5] sm:$0xff]
      %1362 = vset.pattern.permute.xlu0 0
      %1363 = vperm.xlu0 %1362, %v1360
      %v1364 = vpop.permute.xlu0 %1363
      %v1366 = vadd.f32 %v1359, %v1364
      %v1367 = vmax.f32 %v1366, 0.0
      %vm1368 = vcmask 64512
      %1369 = vst.msk [vmem:[%s719] sm:$0xff] %vm1368, %v1367
      %p1370 = scmp.lt.s32.totalorder %s29, 1
      %s1371 = scalar_select %p1370, %s29, 1
      %p1372 = scmp.lt.s32.totalorder %s30, 7
      %s1373 = scalar_select %p1372, %s30, 7
      %s1374 = smul.addr %s1373, 2
      %s1375 = smul.addr %s1371, 16
      %s1376 = sadd.s32 %s1374, %s1375
      %s1377 = smul.addr %s1376, 4
      %s1378 = scalar_lea.vmem %s12, %s1377
      %p1379 = scmp.lt.s32.totalorder %s29, 1
      %s1380 = scalar_select %p1379, %s29, 1
      %p1381 = scmp.lt.s32.totalorder %s30, 7
      %s1382 = scalar_select %p1381, %s30, 7
      %s1383 = smul.addr %s1380, 8
      %s1384 = sadd.s32 %s1382, %s1383
      %s1385 = smul.addr %s1384, 8
      %s1386 = scalar_lea.vmem %s13, %s1385
      // Predicated region
      $region69: #{stem_block.4} parent=67 // pred_check
        %p1387 = pneg %p371
      $region70: #{stem_block.4} parent=67 // pred_check_branch
        %1389 = sbr.rel (%p1387) target = $region72
      $region71: #{stem_block.4} parent=67 // pred_region
        _
      $region72: #{stem_block.4} parent=67 // pred_fallthru
        _
      // Predicated region
      $region73: #{stem_block.4} parent=67 // pred_check
        %p1390 = pneg %p399
      $region74: #{stem_block.4} parent=67 // pred_check_branch
        %1392 = sbr.rel (%p1390) target = $region76
      $region75: #{stem_block.4} parent=67 // pred_region
        _
      $region76: #{stem_block.4} parent=67 // pred_fallthru
        _
    $region68: #{stem_block.4} parent=5 // pred_fallthru
      _
    %p1393 = scmp.le.s32.totalorder 2, %s20
    // Predicated region
    $region77: #{stem_block.4} parent=5 // pred_check
      %p1394 = pneg %p1393
    $region78: #{stem_block.4} parent=5 // pred_check_branch
      %1396 = sbr.rel (%p1394) target = $region80
    $region79: #{stem_block.4} parent=5 // pred_region
      %s1397 = ssub.s32 %s20, 2
      // Predicated region
      $region81: #{stem_block.4} parent=79 // pred_check
        %p1398 = pneg %p377
      $region82: #{stem_block.4} parent=79 // pred_check_branch
        %1400 = sbr.rel (%p1398) target = $region84
      $region83: #{stem_block.4} parent=79 // pred_region
        %p1401 = scmp.lt.s32.totalorder %s31, 1
        %s1402 = scalar_select %p1401, %s31, 1
        %p1403 = scmp.lt.s32.totalorder %s32, 7
        %s1404 = scalar_select %p1403, %s32, 7
        %s1405 = smul.addr %s1404, 2
        %s1406 = smul.addr %s1402, 16
        %s1407 = sadd.s32 %s1405, %s1406
        %s1408 = smul.addr %s1407, 4
        %s1409 = scalar_lea.vmem %s12, %s1408
      $region84: #{stem_block.4} parent=79 // pred_fallthru
        _
      // Predicated region
      $region85: #{stem_block.4} parent=79 // pred_check
        %p1410 = pneg %p405
      $region86: #{stem_block.4} parent=79 // pred_check_branch
        %1412 = sbr.rel (%p1410) target = $region88
      $region87: #{stem_block.4} parent=79 // pred_region
        %p1413 = scmp.lt.s32.totalorder %s31, 1
        %s1414 = scalar_select %p1413, %s31, 1
        %p1415 = scmp.lt.s32.totalorder %s32, 7
        %s1416 = scalar_select %p1415, %s32, 7
        %s1417 = smul.addr %s1414, 8
        %s1418 = sadd.s32 %s1416, %s1417
        %s1419 = smul.addr %s1418, 8
        %s1420 = scalar_lea.vmem %s13, %s1419
      $region88: #{stem_block.4} parent=79 // pred_fallthru
        _
    $region80: #{stem_block.4} parent=5 // pred_fallthru
      _
  $region6: #{stem_block.4} parent=0 // loop_footer
    %s24 = sadd.s32 1, %s20
  $region7: #{stem_block.4} parent=0 // loop_footer_branch
    %19 = sbr.rel target = $region3
  $region8: #{stem_block.4} parent=0 // loop_exit
    _

// kernel: stem_block.6
$region0: #{stem_block.6}
  #allocation0 [shape = 'u32[]', space=smem, size = 0x4, offset = 0x4, fixed_abs, tag = 'smem constant byte address 0x4 - core index']
  #allocation1 [shape = 'u32[144,128]{1,0:T(1,128)}', space=vmem, size = 0x12000, scoped, tag = 'internal scratch']
  %s0 = inlined_call_operand.vmem [shape: bf16[2,10,16,5], index: 0, kind: input, shape index: {}, may-alias: {0,2,4}]
  %s1 = inlined_call_operand.vmem [shape: bf16[2,10,16,5], index: 1, kind: input, shape index: {}, may-alias: {1,3,5}]
  %s2 = inlined_call_operand.vmem [shape: bf16[2,10,16,5], index: 2, kind: input, shape index: {}, may-alias: {0,2,4}]
  %s3 = inlined_call_operand.vmem [shape: bf16[2,10,16,5], index: 3, kind: input, shape index: {}, may-alias: {1,3,5}]
  %s4 = inlined_call_operand.vmem [shape: bf16[2,10,16,5], index: 4, kind: input, shape index: {}, may-alias: {0,2,4}]
  %s5 = inlined_call_operand.vmem [shape: bf16[2,10,16,5], index: 5, kind: input, shape index: {}, may-alias: {1,3,5}]
  %s6 = inlined_call_operand.vmem [shape: bf16[2,4,16,4], index: 6, kind: output, shape index: {}]
  %s7 = sld [smem:[#allocation0]]
  $region57: #{stem_block.6} parent=0
    _
  %s9 = ssub.s32 1, %s7
  %s10 = scalar_select 0, %s9, %s7
  loop: start=0, step=1, limit=10
  $region2: #{stem_block.6} parent=0 // loop_pre_header
    _
  $region3: #{stem_block.6} parent=0 // loop_header
    %s12 = sphi 0, %s16
    %p13 = scmp.ge.s32.totalorder %s12, 10
    %s19 = sphi 0, %s31
    %s20 = sphi 0, %s27
    %s21 = sphi 0, %s19
    %s22 = sphi 0, %s20
    %s23 = sphi 0, %s21
    %s24 = sphi 0, %s22
    %s38 = sphi 0, %s40
    %s41 = sphi 0, %s38
    %s42 = sphi 0, %s41
    %s58 = sphi 0, %s42
    %s68 = sphi 0, %s70
    %s71 = sphi 0, %s68
    %s72 = sphi 0, %s71
    %s88 = sphi 0, %s72
    %s100 = sphi 0, %s102
    %s103 = sphi 0, %s100
    %s104 = sphi 0, %s103
    %s120 = sphi 0, %s104
    %s132 = sphi 0, %s134
    %s135 = sphi 0, %s132
    %s136 = sphi 0, %s135
    %s152 = sphi 0, %s136
    %s164 = sphi 0, %s166
    %s167 = sphi 0, %s164
    %s168 = sphi 0, %s167
    %s184 = sphi 0, %s168
    %s196 = sphi 0, %s198
    %s199 = sphi 0, %s196
    %s200 = sphi 0, %s199
    %s216 = sphi 0, %s200
    %s224 = sphi 0, %s226
    %s227 = sphi 0, %s224
    %s228 = sphi 0, %s227
    %s244 = sphi 0, %s228
  $region4: #{stem_block.6} parent=0 // loop_header_branch
    %15 = sbr.rel (%p13) target = $region8
  $region5: #{stem_block.6} parent=0 // loop_body
    %s17 = ssub.s32 %s12, 1
    %s18 = ssub.s32 %s12, 2
    %s25 = sadd.s32 1, %s20
    %p26 = scmp.ge.s32.totalorder %s25, 4
    %s27 = scalar_select %p26, 0, %s25
    %s28 = sadd.s32 1, %s19
    %s29 = scalar_select %p26, %s28, %s19
    %p30 = scmp.ge.s32.totalorder %s29, 2
    %s31 = scalar_select %p30, 0, %s29
    %s32 = smul.u32 %s20, 2
    %s33 = smul.u32 %s27, 2
    %s34 = ssub.s32 %s19, %s31
    %s35 = ssub.s32 %s32, %s33
    %s36 = sor.u32 %s34, %s35
    %p37 = scmp.eq.s32.totalorder %s36, 0
    %s39 = sadd.s32 %s38, 1
    %s40 = scalar_select %p37, %s38, %s39
    %p43 = pneg %p37
    %p44 = scmp.eq.s32.totalorder %s12, 7
    %p45 = por %p43, %p44
    %p46 = scmp.ne.s32.totalorder %s38, %s41
    %p47 = scmp.eq.s32.totalorder %s12, 0
    %p48 = por %p46, %p47
    %p49 = scmp.ne.s32.totalorder %s38, %s41
    %p50 = scmp.eq.s32.totalorder %s17, 7
    %p51 = por %p49, %p50
    %p52 = scmp.ne.s32.totalorder %s41, %s42
    %p53 = scmp.eq.s32.totalorder %s17, 0
    %p54 = por %p52, %p53
    %p55 = scmp.ne.s32.totalorder %s41, %s42
    %p56 = scmp.eq.s32.totalorder %s18, 7
    %p57 = por %p55, %p56
    %p59 = scmp.ne.s32.totalorder %s42, %s58
    %p60 = scmp.eq.s32.totalorder %s18, 0
    %p61 = por %p59, %p60
    %s62 = smul.u32 %s20, 2
    %s63 = smul.u32 %s27, 2
    %s64 = ssub.s32 %s19, %s31
    %s65 = ssub.s32 %s62, %s63
    %s66 = sor.u32 %s64, %s65
    %p67 = scmp.eq.s32.totalorder %s66, 0
    %s69 = sadd.s32 %s68, 1
    %s70 = scalar_select %p67, %s68, %s69
    %p73 = pneg %p67
    %p74 = scmp.eq.s32.totalorder %s12, 7
    %p75 = por %p73, %p74
    %p76 = scmp.ne.s32.totalorder %s68, %s71
    %p77 = scmp.eq.s32.totalorder %s12, 0
    %p78 = por %p76, %p77
    %p79 = scmp.ne.s32.totalorder %s68, %s71
    %p80 = scmp.eq.s32.totalorder %s17, 7
    %p81 = por %p79, %p80
    %p82 = scmp.ne.s32.totalorder %s71, %s72
    %p83 = scmp.eq.s32.totalorder %s17, 0
    %p84 = por %p82, %p83
    %p85 = scmp.ne.s32.totalorder %s71, %s72
    %p86 = scmp.eq.s32.totalorder %s18, 7
    %p87 = por %p85, %p86
    %p89 = scmp.ne.s32.totalorder %s72, %s88
    %p90 = scmp.eq.s32.totalorder %s18, 0
    %p91 = por %p89, %p90
    %s92 = smul.u32 %s20, 2
    %s93 = sadd.s32 %s92, 1
    %s94 = smul.u32 %s27, 2
    %s95 = sadd.s32 %s94, 1
    %s96 = ssub.s32 %s19, %s31
    %s97 = ssub.s32 %s93, %s95
    %s98 = sor.u32 %s96, %s97
    %p99 = scmp.eq.s32.totalorder %s98, 0
    %s101 = sadd.s32 %s100, 1
    %s102 = scalar_select %p99, %s100, %s101
    %p105 = pneg %p99
    %p106 = scmp.eq.s32.totalorder %s12, 7
    %p107 = por %p105, %p106
    %p108 = scmp.ne.s32.totalorder %s100, %s103
    %p109 = scmp.eq.s32.totalorder %s12, 0
    %p110 = por %p108, %p109
    %p111 = scmp.ne.s32.totalorder %s100, %s103
    %p112 = scmp.eq.s32.totalorder %s17, 7
    %p113 = por %p111, %p112
    %p114 = scmp.ne.s32.totalorder %s103, %s104
    %p115 = scmp.eq.s32.totalorder %s17, 0
    %p116 = por %p114, %p115
    %p117 = scmp.ne.s32.totalorder %s103, %s104
    %p118 = scmp.eq.s32.totalorder %s18, 7
    %p119 = por %p117, %p118
    %p121 = scmp.ne.s32.totalorder %s104, %s120
    %p122 = scmp.eq.s32.totalorder %s18, 0
    %p123 = por %p121, %p122
    %s124 = smul.u32 %s20, 2
    %s125 = sadd.s32 %s124, 1
    %s126 = smul.u32 %s27, 2
    %s127 = sadd.s32 %s126, 1
    %s128 = ssub.s32 %s19, %s31
    %s129 = ssub.s32 %s125, %s127
    %s130 = sor.u32 %s128, %s129
    %p131 = scmp.eq.s32.totalorder %s130, 0
    %s133 = sadd.s32 %s132, 1
    %s134 = scalar_select %p131, %s132, %s133
    %p137 = pneg %p131
    %p138 = scmp.eq.s32.totalorder %s12, 7
    %p139 = por %p137, %p138
    %p140 = scmp.ne.s32.totalorder %s132, %s135
    %p141 = scmp.eq.s32.totalorder %s12, 0
    %p142 = por %p140, %p141
    %p143 = scmp.ne.s32.totalorder %s132, %s135
    %p144 = scmp.eq.s32.totalorder %s17, 7
    %p145 = por %p143, %p144
    %p146 = scmp.ne.s32.totalorder %s135, %s136
    %p147 = scmp.eq.s32.totalorder %s17, 0
    %p148 = por %p146, %p147
    %p149 = scmp.ne.s32.totalorder %s135, %s136
    %p150 = scmp.eq.s32.totalorder %s18, 7
    %p151 = por %p149, %p150
    %p153 = scmp.ne.s32.totalorder %s136, %s152
    %p154 = scmp.eq.s32.totalorder %s18, 0
    %p155 = por %p153, %p154
    %s156 = smul.u32 %s20, 2
    %s157 = sadd.s32 %s156, 2
    %s158 = smul.u32 %s27, 2
    %s159 = sadd.s32 %s158, 2
    %s160 = ssub.s32 %s19, %s31
    %s161 = ssub.s32 %s157, %s159
    %s162 = sor.u32 %s160, %s161
    %p163 = scmp.eq.s32.totalorder %s162, 0
    %s165 = sadd.s32 %s164, 1
    %s166 = scalar_select %p163, %s164, %s165
    %p169 = pneg %p163
    %p170 = scmp.eq.s32.totalorder %s12, 7
    %p171 = por %p169, %p170
    %p172 = scmp.ne.s32.totalorder %s164, %s167
    %p173 = scmp.eq.s32.totalorder %s12, 0
    %p174 = por %p172, %p173
    %p175 = scmp.ne.s32.totalorder %s164, %s167
    %p176 = scmp.eq.s32.totalorder %s17, 7
    %p177 = por %p175, %p176
    %p178 = scmp.ne.s32.totalorder %s167, %s168
    %p179 = scmp.eq.s32.totalorder %s17, 0
    %p180 = por %p178, %p179
    %p181 = scmp.ne.s32.totalorder %s167, %s168
    %p182 = scmp.eq.s32.totalorder %s18, 7
    %p183 = por %p181, %p182
    %p185 = scmp.ne.s32.totalorder %s168, %s184
    %p186 = scmp.eq.s32.totalorder %s18, 0
    %p187 = por %p185, %p186
    %s188 = smul.u32 %s20, 2
    %s189 = sadd.s32 %s188, 2
    %s190 = smul.u32 %s27, 2
    %s191 = sadd.s32 %s190, 2
    %s192 = ssub.s32 %s19, %s31
    %s193 = ssub.s32 %s189, %s191
    %s194 = sor.u32 %s192, %s193
    %p195 = scmp.eq.s32.totalorder %s194, 0
    %s197 = sadd.s32 %s196, 1
    %s198 = scalar_select %p195, %s196, %s197
    %p201 = pneg %p195
    %p202 = scmp.eq.s32.totalorder %s12, 7
    %p203 = por %p201, %p202
    %p204 = scmp.ne.s32.totalorder %s196, %s199
    %p205 = scmp.eq.s32.totalorder %s12, 0
    %p206 = por %p204, %p205
    %p207 = scmp.ne.s32.totalorder %s196, %s199
    %p208 = scmp.eq.s32.totalorder %s17, 7
    %p209 = por %p207, %p208
    %p210 = scmp.ne.s32.totalorder %s199, %s200
    %p211 = scmp.eq.s32.totalorder %s17, 0
    %p212 = por %p210, %p211
    %p213 = scmp.ne.s32.totalorder %s199, %s200
    %p214 = scmp.eq.s32.totalorder %s18, 7
    %p215 = por %p213, %p214
    %p217 = scmp.ne.s32.totalorder %s200, %s216
    %p218 = scmp.eq.s32.totalorder %s18, 0
    %p219 = por %p217, %p218
    %s220 = ssub.s32 %s19, %s31
    %s221 = ssub.s32 %s20, %s27
    %s222 = sor.u32 %s220, %s221
    %p223 = scmp.eq.s32.totalorder %s222, 0
    %s225 = sadd.s32 %s224, 1
    %s226 = scalar_select %p223, %s224, %s225
    %p229 = pneg %p223
    %p230 = scmp.eq.s32.totalorder %s12, 7
    %p231 = por %p229, %p230
    %p232 = scmp.ne.s32.totalorder %s224, %s227
    %p233 = scmp.eq.s32.totalorder %s12, 0
    %p234 = por %p232, %p233
    %p235 = scmp.ne.s32.totalorder %s224, %s227
    %p236 = scmp.eq.s32.totalorder %s17, 7
    %p237 = por %p235, %p236
    %p238 = scmp.ne.s32.totalorder %s227, %s228
    %p239 = scmp.eq.s32.totalorder %s17, 0
    %p240 = por %p238, %p239
    %p241 = scmp.ne.s32.totalorder %s227, %s228
    %p242 = scmp.eq.s32.totalorder %s18, 7
    %p243 = por %p241, %p242
    %p245 = scmp.ne.s32.totalorder %s228, %s244
    %p246 = scmp.eq.s32.totalorder %s18, 0
    %p247 = por %p245, %p246
    %p248 = scmp.le.s32.totalorder 1, %s12
    %p249 = scmp.lt.s32.totalorder %s12, 9
    %p250 = pnand %p248, %p249
    %p251 = pneg %p250
    // Predicated region
    $region9: #{stem_block.6} parent=5 // pred_check
      _
    $region10: #{stem_block.6} parent=5 // pred_check_branch
      %253 = sbr.rel (%p250) target = $region12
    $region11: #{stem_block.6} parent=5 // pred_region
      %s254 = ssub.s32 %s12, 1
    $region12: #{stem_block.6} parent=5 // pred_fallthru
      _
    %p255 = scmp.lt.s32.totalorder %s12, 8
    // Predicated region
    $region13: #{stem_block.6} parent=5 // pred_check
      %p256 = pneg %p255
    $region14: #{stem_block.6} parent=5 // pred_check_branch
      %258 = sbr.rel (%p256) target = $region16
    $region15: #{stem_block.6} parent=5 // pred_region
      // Predicated region
      $region17: #{stem_block.6} parent=15 // pred_check
        %p259 = pneg %p48
      $region18: #{stem_block.6} parent=15 // pred_check_branch
        %261 = sbr.rel (%p259) target = $region20
      $region19: #{stem_block.6} parent=15 // pred_region
        %s262 = smul.u32 %s20, 2
        %p263 = scmp.lt.s32.totalorder %s19, 1
        %s264 = scalar_select %p263, %s19, 1
        %p265 = scmp.lt.s32.totalorder %s262, 9
        %s266 = scalar_select %p265, %s262, 9
        %s267 = smul.addr %s266, 2
        %s268 = smul.addr %s264, 20
        %s269 = sadd.s32 %s267, %s268
        %s270 = smul.addr %s269, 4
        %s271 = scalar_lea.vmem %s0, %s270
        %s272 = smul.u32 %s20, 2
      $region20: #{stem_block.6} parent=15 // pred_fallthru
        _
      // Predicated region
      $region21: #{stem_block.6} parent=15 // pred_check
        %p273 = pneg %p78
      $region22: #{stem_block.6} parent=15 // pred_check_branch
        %275 = sbr.rel (%p273) target = $region24
      $region23: #{stem_block.6} parent=15 // pred_region
        %s276 = smul.u32 %s20, 2
        %p277 = scmp.lt.s32.totalorder %s19, 1
        %s278 = scalar_select %p277, %s19, 1
        %p279 = scmp.lt.s32.totalorder %s276, 9
        %s280 = scalar_select %p279, %s276, 9
        %s281 = smul.addr %s280, 2
        %s282 = smul.addr %s278, 20
        %s283 = sadd.s32 %s281, %s282
        %s284 = smul.addr %s283, 4
        %s285 = scalar_lea.vmem %s1, %s284
        %s286 = smul.u32 %s20, 2
      $region24: #{stem_block.6} parent=15 // pred_fallthru
        _
      // Predicated region
      $region25: #{stem_block.6} parent=15 // pred_check
        %p287 = pneg %p110
      $region26: #{stem_block.6} parent=15 // pred_check_branch
        %289 = sbr.rel (%p287) target = $region28
      $region27: #{stem_block.6} parent=15 // pred_region
        %s290 = smul.u32 %s20, 2
        %s291 = sadd.s32 %s290, 1
        %p292 = scmp.lt.s32.totalorder %s19, 1
        %s293 = scalar_select %p292, %s19, 1
        %p294 = scmp.lt.s32.totalorder %s291, 9
        %s295 = scalar_select %p294, %s291, 9
        %s296 = smul.addr %s295, 2
        %s297 = smul.addr %s293, 20
        %s298 = sadd.s32 %s296, %s297
        %s299 = smul.addr %s298, 4
        %s300 = scalar_lea.vmem %s2, %s299
        %s301 = smul.u32 %s20, 2
        %s302 = sadd.s32 %s301, 1
      $region28: #{stem_block.6} parent=15 // pred_fallthru
        _
      // Predicated region
      $region29: #{stem_block.6} parent=15 // pred_check
        %p303 = pneg %p142
      $region30: #{stem_block.6} parent=15 // pred_check_branch
        %305 = sbr.rel (%p303) target = $region32
      $region31: #{stem_block.6} parent=15 // pred_region
        %s306 = smul.u32 %s20, 2
        %s307 = sadd.s32 %s306, 1
        %p308 = scmp.lt.s32.totalorder %s19, 1
        %s309 = scalar_select %p308, %s19, 1
        %p310 = scmp.lt.s32.totalorder %s307, 9
        %s311 = scalar_select %p310, %s307, 9
        %s312 = smul.addr %s311, 2
        %s313 = smul.addr %s309, 20
        %s314 = sadd.s32 %s312, %s313
        %s315 = smul.addr %s314, 4
        %s316 = scalar_lea.vmem %s3, %s315
        %s317 = smul.u32 %s20, 2
        %s318 = sadd.s32 %s317, 1
      $region32: #{stem_block.6} parent=15 // pred_fallthru
        _
      // Predicated region
      $region33: #{stem_block.6} parent=15 // pred_check
        %p319 = pneg %p174
      $region34: #{stem_block.6} parent=15 // pred_check_branch
        %321 = sbr.rel (%p319) target = $region36
      $region35: #{stem_block.6} parent=15 // pred_region
        %s322 = smul.u32 %s20, 2
        %s323 = sadd.s32 %s322, 2
        %p324 = scmp.lt.s32.totalorder %s19, 1
        %s325 = scalar_select %p324, %s19, 1
        %p326 = scmp.lt.s32.totalorder %s323, 9
        %s327 = scalar_select %p326, %s323, 9
        %s328 = smul.addr %s327, 2
        %s329 = smul.addr %s325, 20
        %s330 = sadd.s32 %s328, %s329
        %s331 = smul.addr %s330, 4
        %s332 = scalar_lea.vmem %s4, %s331
        %s333 = smul.u32 %s20, 2
        %s334 = sadd.s32 %s333, 2
      $region36: #{stem_block.6} parent=15 // pred_fallthru
        _
      // Predicated region
      $region37: #{stem_block.6} parent=15 // pred_check
        %p335 = pneg %p206
      $region38: #{stem_block.6} parent=15 // pred_check_branch
        %337 = sbr.rel (%p335) target = $region40
      $region39: #{stem_block.6} parent=15 // pred_region
        %s338 = smul.u32 %s20, 2
        %s339 = sadd.s32 %s338, 2
        %p340 = scmp.lt.s32.totalorder %s19, 1
        %s341 = scalar_select %p340, %s19, 1
        %p342 = scmp.lt.s32.totalorder %s339, 9
        %s343 = scalar_select %p342, %s339, 9
        %s344 = smul.addr %s343, 2
        %s345 = smul.addr %s341, 20
        %s346 = sadd.s32 %s344, %s345
        %s347 = smul.addr %s346, 4
        %s348 = scalar_lea.vmem %s5, %s347
        %s349 = smul.u32 %s20, 2
        %s350 = sadd.s32 %s349, 2
      $region40: #{stem_block.6} parent=15 // pred_fallthru
        _
    $region16: #{stem_block.6} parent=5 // pred_fallthru
      _
    %p351 = scmp.le.s32.totalorder 1, %s12
    %p352 = scmp.lt.s32.totalorder %s12, 9
    %p353 = pnand %p351, %p352
    %p354 = pneg %p353
    // Predicated region
    $region41: #{stem_block.6} parent=5 // pred_check
      _
    $region42: #{stem_block.6} parent=5 // pred_check_branch
      %356 = sbr.rel (%p353) target = $region44
    $region43: #{stem_block.6} parent=5 // pred_region
      %s357 = ssub.s32 %s12, 1
      %s358 = smul.u32 %s22, 2
      %p359 = scmp.lt.s32.totalorder %s21, 1
      %s360 = scalar_select %p359, %s21, 1
      %p361 = scmp.lt.s32.totalorder %s358, 9
      %s362 = scalar_select %p361, %s358, 9
      %s363 = smul.addr %s362, 2
      %s364 = smul.addr %s360, 20
      %s365 = sadd.s32 %s363, %s364
      %s366 = smul.addr %s365, 4
      %s367 = scalar_lea.vmem %s0, %s366
      %p368 = pneg %p54
      %p369 = pneg %p51
      %s370 = smul.u32 %s22, 2
      %p371 = scmp.lt.s32.totalorder %s21, 1
      %s372 = scalar_select %p371, %s21, 1
      %p373 = scmp.lt.s32.totalorder %s370, 9
      %s374 = scalar_select %p373, %s370, 9
      %s375 = smul.addr %s374, 2
      %s376 = smul.addr %s372, 20
      %s377 = sadd.s32 %s375, %s376
      %s378 = smul.addr %s377, 4
      %s379 = scalar_lea.vmem %s1, %s378
      %p380 = pneg %p84
      %p381 = pneg %p81
      %s382 = smul.u32 %s22, 2
      %s383 = sadd.s32 %s382, 1
      %p384 = scmp.lt.s32.totalorder %s21, 1
      %s385 = scalar_select %p384, %s21, 1
      %p386 = scmp.lt.s32.totalorder %s383, 9
      %s387 = scalar_select %p386, %s383, 9
      %s388 = smul.addr %s387, 2
      %s389 = smul.addr %s385, 20
      %s390 = sadd.s32 %s388, %s389
      %s391 = smul.addr %s390, 4
      %s392 = scalar_lea.vmem %s2, %s391
      %p393 = pneg %p116
      %p394 = pneg %p113
      %s395 = smul.u32 %s22, 2
      %s396 = sadd.s32 %s395, 1
      %p397 = scmp.lt.s32.totalorder %s21, 1
      %s398 = scalar_select %p397, %s21, 1
      %p399 = scmp.lt.s32.totalorder %s396, 9
      %s400 = scalar_select %p399, %s396, 9
      %s401 = smul.addr %s400, 2
      %s402 = smul.addr %s398, 20
      %s403 = sadd.s32 %s401, %s402
      %s404 = smul.addr %s403, 4
      %s405 = scalar_lea.vmem %s3, %s404
      %p406 = pneg %p148
      %p407 = pneg %p145
      %s408 = smul.u32 %s22, 2
      %s409 = sadd.s32 %s408, 2
      %p410 = scmp.lt.s32.totalorder %s21, 1
      %s411 = scalar_select %p410, %s21, 1
      %p412 = scmp.lt.s32.totalorder %s409, 9
      %s413 = scalar_select %p412, %s409, 9
      %s414 = smul.addr %s413, 2
      %s415 = smul.addr %s411, 20
      %s416 = sadd.s32 %s414, %s415
      %s417 = smul.addr %s416, 4
      %s418 = scalar_lea.vmem %s4, %s417
      %p419 = pneg %p180
      %p420 = pneg %p177
      %s421 = smul.u32 %s22, 2
      %s422 = sadd.s32 %s421, 2
      %p423 = scmp.lt.s32.totalorder %s21, 1
      %s424 = scalar_select %p423, %s21, 1
      %p425 = scmp.lt.s32.totalorder %s422, 9
      %s426 = scalar_select %p425, %s422, 9
      %s427 = smul.addr %s426, 2
      %s428 = smul.addr %s424, 20
      %s429 = sadd.s32 %s427, %s428
      %s430 = smul.addr %s429, 4
      %s431 = scalar_lea.vmem %s5, %s430
      %p432 = pneg %p212
      %p433 = pneg %p209
      %p434 = pneg %p240
      %p435 = pneg %p237
      %p436 = scmp.lt.s32.totalorder %s21, 1
      %s437 = scalar_select %p436, %s21, 1
      %p438 = scmp.lt.s32.totalorder %s22, 3
      %s439 = scalar_select %p438, %s22, 3
      %s440 = smul.addr %s439, 2
      %s441 = smul.addr %s437, 8
      %s442 = sadd.s32 %s440, %s441
      %s443 = smul.addr %s442, 4
      %s444 = scalar_lea.vmem %s6, %s443
      %s445 = smul.u32 %s22, 2
      %p446 = scmp.lt.s32.totalorder %s21, 1
      %s447 = scalar_select %p446, %s21, 1
      %p448 = scmp.lt.s32.totalorder %s445, 9
      %s449 = scalar_select %p448, %s445, 9
      %s450 = smul.addr %s449, 2
      %s451 = smul.addr %s447, 20
      %s452 = sadd.s32 %s450, %s451
      %s453 = smul.addr %s452, 4
      %s454 = scalar_lea.vmem %s0, %s453
      %s455 = smul.u32 %s22, 2
      %s456 = smul.u32 %s22, 2
      %p457 = scmp.lt.s32.totalorder %s21, 1
      %s458 = scalar_select %p457, %s21, 1
      %p459 = scmp.lt.s32.totalorder %s456, 9
      %s460 = scalar_select %p459, %s456, 9
      %s461 = smul.addr %s460, 2
      %s462 = smul.addr %s458, 20
      %s463 = sadd.s32 %s461, %s462
      %s464 = smul.addr %s463, 4
      %s465 = scalar_lea.vmem %s1, %s464
      %s466 = smul.u32 %s22, 2
      %s467 = smul.u32 %s22, 2
      %s468 = sadd.s32 %s467, 1
      %p469 = scmp.lt.s32.totalorder %s21, 1
      %s470 = scalar_select %p469, %s21, 1
      %p471 = scmp.lt.s32.totalorder %s468, 9
      %s472 = scalar_select %p471, %s468, 9
      %s473 = smul.addr %s472, 2
      %s474 = smul.addr %s470, 20
      %s475 = sadd.s32 %s473, %s474
      %s476 = smul.addr %s475, 4
      %s477 = scalar_lea.vmem %s2, %s476
      %s478 = smul.u32 %s22, 2
      %s479 = sadd.s32 %s478, 1
      %s480 = smul.u32 %s22, 2
      %s481 = sadd.s32 %s480, 1
      %p482 = scmp.lt.s32.totalorder %s21, 1
      %s483 = scalar_select %p482, %s21, 1
      %p484 = scmp.lt.s32.totalorder %s481, 9
      %s485 = scalar_select %p484, %s481, 9
      %s486 = smul.addr %s485, 2
      %s487 = smul.addr %s483, 20
      %s488 = sadd.s32 %s486, %s487
      %s489 = smul.addr %s488, 4
      %s490 = scalar_lea.vmem %s3, %s489
      %s491 = smul.u32 %s22, 2
      %s492 = sadd.s32 %s491, 1
      %s493 = smul.u32 %s22, 2
      %s494 = sadd.s32 %s493, 2
      %p495 = scmp.lt.s32.totalorder %s21, 1
      %s496 = scalar_select %p495, %s21, 1
      %p497 = scmp.lt.s32.totalorder %s494, 9
      %s498 = scalar_select %p497, %s494, 9
      %s499 = smul.addr %s498, 2
      %s500 = smul.addr %s496, 20
      %s501 = sadd.s32 %s499, %s500
      %s502 = smul.addr %s501, 4
      %s503 = scalar_lea.vmem %s4, %s502
      %s504 = smul.u32 %s22, 2
      %s505 = sadd.s32 %s504, 2
      %s506 = smul.u32 %s22, 2
      %s507 = sadd.s32 %s506, 2
      %p508 = scmp.lt.s32.totalorder %s21, 1
      %s509 = scalar_select %p508, %s21, 1
      %p510 = scmp.lt.s32.totalorder %s507, 9
      %s511 = scalar_select %p510, %s507, 9
      %s512 = smul.addr %s511, 2
      %s513 = smul.addr %s509, 20
      %s514 = sadd.s32 %s512, %s513
      %s515 = smul.addr %s514, 4
      %s516 = scalar_lea.vmem %s5, %s515
      %s517 = smul.u32 %s22, 2
      %s518 = sadd.s32 %s517, 2
      %p519 = scmp.lt.s32.totalorder %s21, 1
      %s520 = scalar_select %p519, %s21, 1
      %p521 = scmp.lt.s32.totalorder %s22, 3
      %s522 = scalar_select %p521, %s22, 3
      %s523 = smul.addr %s522, 2
      %s524 = smul.addr %s520, 8
      %s525 = sadd.s32 %s523, %s524
      %s526 = smul.addr %s525, 4
      %s527 = scalar_lea.vmem %s6, %s526
      %v528 = vld [vmem:[%s454] sm:$0xf]
      %v529 = vld [vmem:[%s454 + $0x4] sm:$0xf]
      %v530 = vld [vmem:[%s465] sm:$0xf]
      %v531 = vld [vmem:[%s465 + $0x4] sm:$0xf]
      %v532 = vmax.bf16 %v528, %v530
      %v533 = vmax.bf16 %v529, %v531
      %536 = vrot.lane.b32.xlu0 %v528, 127
      %v537 = vpop.permute.xlu0 %536
      %538 = vrot.lane.b32.xlu0 %v529, 127
      %v539 = vpop.permute.xlu0 %538
      %v542 = vmax.bf16 %v532, %v537
      %v543 = vmax.bf16 %v533, %v539
      %v544 = vld [vmem:[%s477] sm:$0xf]
      %v545 = vld [vmem:[%s477 + $0x4] sm:$0xf]
      %v546 = vld [vmem:[%s490] sm:$0xf]
      %v547 = vld [vmem:[%s490 + $0x4] sm:$0xf]
      %v548 = vmax.bf16 %v542, %v544
      %v549 = vmax.bf16 %v543, %v545
      %v550 = vmax.bf16 %v548, %v546
      %v551 = vmax.bf16 %v549, %v547
      %554 = vrot.lane.b32.xlu0 %v544, 127
      %v555 = vpop.permute.xlu0 %554
      %556 = vrot.lane.b32.xlu0 %v545, 127
      %v557 = vpop.permute.xlu0 %556
      %v560 = vmax.bf16 %v550, %v555
      %v561 = vmax.bf16 %v551, %v557
      %v562 = vld [vmem:[%s503] sm:$0xf]
      %v563 = vld [vmem:[%s503 + $0x4] sm:$0xf]
      %v564 = vld [vmem:[%s516] sm:$0xf]
      %v565 = vld [vmem:[%s516 + $0x4] sm:$0xf]
      %v566 = vmax.bf16 %v560, %v562
      %v567 = vmax.bf16 %v561, %v563
      %v568 = vmax.bf16 %v566, %v564
      %v569 = vmax.bf16 %v567, %v565
      %572 = vrot.lane.b32.xlu0 %v562, 127
      %v573 = vpop.permute.xlu0 %572
      %574 = vrot.lane.b32.xlu0 %v563, 127
      %v575 = vpop.permute.xlu0 %574
      %v578 = vmax.bf16 %v568, %v573
      %v579 = vmax.bf16 %v569, %v575
      %vm580 = vcmask 27648
      %581 = vst.msk [vmem:[%s527] sm:$0xf] %vm580, %v578
      %582 = vst.msk [vmem:[%s527 + $0x4] sm:$0xf] %vm580, %v579
      %p583 = scmp.lt.s32.totalorder %s21, 1
      %s584 = scalar_select %p583, %s21, 1
      %p585 = scmp.lt.s32.totalorder %s22, 3
      %s586 = scalar_select %p585, %s22, 3
      %s587 = smul.addr %s586, 2
      %s588 = smul.addr %s584, 8
      %s589 = sadd.s32 %s587, %s588
      %s590 = smul.addr %s589, 4
      %s591 = scalar_lea.vmem %s6, %s590
      // Predicated region
      $region45: #{stem_block.6} parent=43 // pred_check
        %p592 = pneg %p237
      $region46: #{stem_block.6} parent=43 // pred_check_branch
        %594 = sbr.rel (%p592) target = $region48
      $region47: #{stem_block.6} parent=43 // pred_region
        _
      $region48: #{stem_block.6} parent=43 // pred_fallthru
        _
    $region44: #{stem_block.6} parent=5 // pred_fallthru
      _
    %p595 = scmp.le.s32.totalorder 2, %s12
    // Predicated region
    $region49: #{stem_block.6} parent=5 // pred_check
      %p596 = pneg %p595
    $region50: #{stem_block.6} parent=5 // pred_check_branch
      %598 = sbr.rel (%p596) target = $region52
    $region51: #{stem_block.6} parent=5 // pred_region
      %s599 = ssub.s32 %s12, 2
      // Predicated region
      $region53: #{stem_block.6} parent=51 // pred_check
        %p600 = pneg %p243
      $region54: #{stem_block.6} parent=51 // pred_check_branch
        %602 = sbr.rel (%p600) target = $region56
      $region55: #{stem_block.6} parent=51 // pred_region
        %p603 = scmp.lt.s32.totalorder %s23, 1
        %s604 = scalar_select %p603, %s23, 1
        %p605 = scmp.lt.s32.totalorder %s24, 3
        %s606 = scalar_select %p605, %s24, 3
        %s607 = smul.addr %s606, 2
        %s608 = smul.addr %s604, 8
        %s609 = sadd.s32 %s607, %s608
        %s610 = smul.addr %s609, 4
        %s611 = scalar_lea.vmem %s6, %s610
      $region56: #{stem_block.6} parent=51 // pred_fallthru
        _
    $region52: #{stem_block.6} parent=5 // pred_fallthru
      _
  $region6: #{stem_block.6} parent=0 // loop_footer
    %s16 = sadd.s32 1, %s12
  $region7: #{stem_block.6} parent=0 // loop_footer_branch
    %11 = sbr.rel target = $region3
  $region8: #{stem_block.6} parent=0 // loop_exit
    _

// kernel: stem_block.7
$region0: #{stem_block.7}
  #allocation0 [shape = 'u32[]', space=smem, size = 0x4, offset = 0x4, fixed_abs, tag = 'smem constant byte address 0x4 - core index']
  #allocation1 [shape = 'u32[144,128]{1,0:T(1,128)}', space=vmem, size = 0x12000, scoped, tag = 'internal scratch']
  %s0 = inlined_call_operand.vmem [shape: bf16[9,16,16], index: 0, kind: input, shape index: {}]
  %s1 = inlined_call_operand.vmem [shape: bf16[9,16,16], index: 1, kind: input, shape index: {}]
  %s2 = inlined_call_operand.vmem [shape: f32[16,1], index: 2, kind: input, shape index: {}]
  %s3 = inlined_call_operand.vmem [shape: f32[16,1], index: 3, kind: input, shape index: {}]
  %s4 = inlined_call_operand.vmem [shape: bf16[2,6,16,6], index: 4, kind: input, shape index: {}, may-alias: {4,5,6}]
  %s5 = inlined_call_operand.vmem [shape: bf16[2,6,16,6], index: 5, kind: input, shape index: {}, may-alias: {4,5,6}]
  %s6 = inlined_call_operand.vmem [shape: bf16[2,6,16,6], index: 6, kind: input, shape index: {}, may-alias: {4,5,6}]
  %s7 = inlined_call_operand.vmem [shape: bf16[2,6,16,6], index: 7, kind: input, shape index: {}, may-alias: {7,8,9}]
  %s8 = inlined_call_operand.vmem [shape: bf16[2,6,16,6], index: 8, kind: input, shape index: {}, may-alias: {7,8,9}]
  %s9 = inlined_call_operand.vmem [shape: bf16[2,6,16,6], index: 9, kind: input, shape index: {}, may-alias: {7,8,9}]
  %s10 = inlined_call_operand.vmem [shape: f32[2,4,16,4], index: 10, kind: output, shape index: {}]
  %s11 = sld [smem:[#allocation0]]
  $region73: #{stem_block.7} parent=0
    _
  %s13 = ssub.s32 1, %s11
  %s14 = scalar_select 0, %s13, %s11
  loop: start=0, step=1, limit=10
  $region2: #{stem_block.7} parent=0 // loop_pre_header
    _
  $region3: #{stem_block.7} parent=0 // loop_header
    %s16 = sphi 0, %s20
    %p17 = scmp.ge.s32.totalorder %s16, 10
    %s23 = sphi 0, %s35
    %s24 = sphi 0, %s31
    %s25 = sphi 0, %s23
    %s26 = sphi 0, %s24
    %s27 = sphi 0, %s25
    %s28 = sphi 0, %s26
    %s36 = sphi 0, %s36
    %s38 = sphi 0, %s36
    %s39 = sphi 0, %s38
    %s53 = sphi 0, %s39
    %s57 = sphi 0, %s57
    %s59 = sphi 0, %s57
    %s60 = sphi 0, %s59
    %s74 = sphi 0, %s60
    %s78 = sphi 0, %s78
    %s80 = sphi 0, %s78
    %s81 = sphi 0, %s80
    %s95 = sphi 0, %s81
    %s99 = sphi 0, %s99
    %s101 = sphi 0, %s99
    %s102 = sphi 0, %s101
    %s116 = sphi 0, %s102
    %s124 = sphi 0, %s126
    %s127 = sphi 0, %s124
    %s128 = sphi 0, %s127
    %s144 = sphi 0, %s128
    %s154 = sphi 0, %s156
    %s157 = sphi 0, %s154
    %s158 = sphi 0, %s157
    %s174 = sphi 0, %s158
    %s184 = sphi 0, %s186
    %s187 = sphi 0, %s184
    %s188 = sphi 0, %s187
    %s204 = sphi 0, %s188
    %s212 = sphi 0, %s214
    %s215 = sphi 0, %s212
    %s216 = sphi 0, %s215
    %s232 = sphi 0, %s216
    %s242 = sphi 0, %s244
    %s245 = sphi 0, %s242
    %s246 = sphi 0, %s245
    %s262 = sphi 0, %s246
    %s272 = sphi 0, %s274
    %s275 = sphi 0, %s272
    %s276 = sphi 0, %s275
    %s292 = sphi 0, %s276
    %s300 = sphi 0, %s302
    %s303 = sphi 0, %s300
    %s304 = sphi 0, %s303
    %s320 = sphi 0, %s304
  $region4: #{stem_block.7} parent=0 // loop_header_branch
    %19 = sbr.rel (%p17) target = $region8
  $region5: #{stem_block.7} parent=0 // loop_body
    %s21 = ssub.s32 %s16, 1
    %s22 = ssub.s32 %s16, 2
    %s29 = sadd.s32 1, %s24
    %p30 = scmp.ge.s32.totalorder %s29, 4
    %s31 = scalar_select %p30, 0, %s29
    %s32 = sadd.s32 1, %s23
    %s33 = scalar_select %p30, %s32, %s23
    %p34 = scmp.ge.s32.totalorder %s33, 2
    %s35 = scalar_select %p34, 0, %s33
    %s37 = sadd.s32 %s36, 1
    %p40 = scmp.eq.s32.totalorder %s16, 7
    %p41 = scmp.ne.s32.totalorder %s36, %s38
    %p42 = scmp.eq.s32.totalorder %s16, 0
    %p43 = por %p41, %p42
    %p44 = scmp.ne.s32.totalorder %s36, %s38
    %p45 = scmp.eq.s32.totalorder %s21, 7
    %p46 = por %p44, %p45
    %p47 = scmp.ne.s32.totalorder %s38, %s39
    %p48 = scmp.eq.s32.totalorder %s21, 0
    %p49 = por %p47, %p48
    %p50 = scmp.ne.s32.totalorder %s38, %s39
    %p51 = scmp.eq.s32.totalorder %s22, 7
    %p52 = por %p50, %p51
    %p54 = scmp.ne.s32.totalorder %s39, %s53
    %p55 = scmp.eq.s32.totalorder %s22, 0
    %p56 = por %p54, %p55
    %s58 = sadd.s32 %s57, 1
    %p61 = scmp.eq.s32.totalorder %s16, 7
    %p62 = scmp.ne.s32.totalorder %s57, %s59
    %p63 = scmp.eq.s32.totalorder %s16, 0
    %p64 = por %p62, %p63
    %p65 = scmp.ne.s32.totalorder %s57, %s59
    %p66 = scmp.eq.s32.totalorder %s21, 7
    %p67 = por %p65, %p66
    %p68 = scmp.ne.s32.totalorder %s59, %s60
    %p69 = scmp.eq.s32.totalorder %s21, 0
    %p70 = por %p68, %p69
    %p71 = scmp.ne.s32.totalorder %s59, %s60
    %p72 = scmp.eq.s32.totalorder %s22, 7
    %p73 = por %p71, %p72
    %p75 = scmp.ne.s32.totalorder %s60, %s74
    %p76 = scmp.eq.s32.totalorder %s22, 0
    %p77 = por %p75, %p76
    %s79 = sadd.s32 %s78, 1
    %p82 = scmp.eq.s32.totalorder %s16, 7
    %p83 = scmp.ne.s32.totalorder %s78, %s80
    %p84 = scmp.eq.s32.totalorder %s16, 0
    %p85 = por %p83, %p84
    %p86 = scmp.ne.s32.totalorder %s78, %s80
    %p87 = scmp.eq.s32.totalorder %s21, 7
    %p88 = por %p86, %p87
    %p89 = scmp.ne.s32.totalorder %s80, %s81
    %p90 = scmp.eq.s32.totalorder %s21, 0
    %p91 = por %p89, %p90
    %p92 = scmp.ne.s32.totalorder %s80, %s81
    %p93 = scmp.eq.s32.totalorder %s22, 7
    %p94 = por %p92, %p93
    %p96 = scmp.ne.s32.totalorder %s81, %s95
    %p97 = scmp.eq.s32.totalorder %s22, 0
    %p98 = por %p96, %p97
    %s100 = sadd.s32 %s99, 1
    %p103 = scmp.eq.s32.totalorder %s16, 7
    %p104 = scmp.ne.s32.totalorder %s99, %s101
    %p105 = scmp.eq.s32.totalorder %s16, 0
    %p106 = por %p104, %p105
    %p107 = scmp.ne.s32.totalorder %s99, %s101
    %p108 = scmp.eq.s32.totalorder %s21, 7
    %p109 = por %p107, %p108
    %p110 = scmp.ne.s32.totalorder %s101, %s102
    %p111 = scmp.eq.s32.totalorder %s21, 0
    %p112 = por %p110, %p111
    %p113 = scmp.ne.s32.totalorder %s101, %s102
    %p114 = scmp.eq.s32.totalorder %s22, 7
    %p115 = por %p113, %p114
    %p117 = scmp.ne.s32.totalorder %s102, %s116
    %p118 = scmp.eq.s32.totalorder %s22, 0
    %p119 = por %p117, %p118
    %s120 = ssub.s32 %s23, %s35
    %s121 = ssub.s32 %s24, %s31
    %s122 = sor.u32 %s120, %s121
    %p123 = scmp.eq.s32.totalorder %s122, 0
    %s125 = sadd.s32 %s124, 1
    %s126 = scalar_select %p123, %s124, %s125
    %p129 = pneg %p123
    %p130 = scmp.eq.s32.totalorder %s16, 7
    %p131 = por %p129, %p130
    %p132 = scmp.ne.s32.totalorder %s124, %s127
    %p133 = scmp.eq.s32.totalorder %s16, 0
    %p134 = por %p132, %p133
    %p135 = scmp.ne.s32.totalorder %s124, %s127
    %p136 = scmp.eq.s32.totalorder %s21, 7
    %p137 = por %p135, %p136
    %p138 = scmp.ne.s32.totalorder %s127, %s128
    %p139 = scmp.eq.s32.totalorder %s21, 0
    %p140 = por %p138, %p139
    %p141 = scmp.ne.s32.totalorder %s127, %s128
    %p142 = scmp.eq.s32.totalorder %s22, 7
    %p143 = por %p141, %p142
    %p145 = scmp.ne.s32.totalorder %s128, %s144
    %p146 = scmp.eq.s32.totalorder %s22, 0
    %p147 = por %p145, %p146
    %s148 = sadd.s32 %s24, 1
    %s149 = sadd.s32 %s31, 1
    %s150 = ssub.s32 %s23, %s35
    %s151 = ssub.s32 %s148, %s149
    %s152 = sor.u32 %s150, %s151
    %p153 = scmp.eq.s32.totalorder %s152, 0
    %s155 = sadd.s32 %s154, 1
    %s156 = scalar_select %p153, %s154, %s155
    %p159 = pneg %p153
    %p160 = scmp.eq.s32.totalorder %s16, 7
    %p161 = por %p159, %p160
    %p162 = scmp.ne.s32.totalorder %s154, %s157
    %p163 = scmp.eq.s32.totalorder %s16, 0
    %p164 = por %p162, %p163
    %p165 = scmp.ne.s32.totalorder %s154, %s157
    %p166 = scmp.eq.s32.totalorder %s21, 7
    %p167 = por %p165, %p166
    %p168 = scmp.ne.s32.totalorder %s157, %s158
    %p169 = scmp.eq.s32.totalorder %s21, 0
    %p170 = por %p168, %p169
    %p171 = scmp.ne.s32.totalorder %s157, %s158
    %p172 = scmp.eq.s32.totalorder %s22, 7
    %p173 = por %p171, %p172
    %p175 = scmp.ne.s32.totalorder %s158, %s174
    %p176 = scmp.eq.s32.totalorder %s22, 0
    %p177 = por %p175, %p176
    %s178 = sadd.s32 %s24, 2
    %s179 = sadd.s32 %s31, 2
    %s180 = ssub.s32 %s23, %s35
    %s181 = ssub.s32 %s178, %s179
    %s182 = sor.u32 %s180, %s181
    %p183 = scmp.eq.s32.totalorder %s182, 0
    %s185 = sadd.s32 %s184, 1
    %s186 = scalar_select %p183, %s184, %s185
    %p189 = pneg %p183
    %p190 = scmp.eq.s32.totalorder %s16, 7
    %p191 = por %p189, %p190
    %p192 = scmp.ne.s32.totalorder %s184, %s187
    %p193 = scmp.eq.s32.totalorder %s16, 0
    %p194 = por %p192, %p193
    %p195 = scmp.ne.s32.totalorder %s184, %s187
    %p196 = scmp.eq.s32.totalorder %s21, 7
    %p197 = por %p195, %p196
    %p198 = scmp.ne.s32.totalorder %s187, %s188
    %p199 = scmp.eq.s32.totalorder %s21, 0
    %p200 = por %p198, %p199
    %p201 = scmp.ne.s32.totalorder %s187, %s188
    %p202 = scmp.eq.s32.totalorder %s22, 7
    %p203 = por %p201, %p202
    %p205 = scmp.ne.s32.totalorder %s188, %s204
    %p206 = scmp.eq.s32.totalorder %s22, 0
    %p207 = por %p205, %p206
    %s208 = ssub.s32 %s23, %s35
    %s209 = ssub.s32 %s24, %s31
    %s210 = sor.u32 %s208, %s209
    %p211 = scmp.eq.s32.totalorder %s210, 0
    %s213 = sadd.s32 %s212, 1
    %s214 = scalar_select %p211, %s212, %s213
    %p217 = pneg %p211
    %p218 = scmp.eq.s32.totalorder %s16, 7
    %p219 = por %p217, %p218
    %p220 = scmp.ne.s32.totalorder %s212, %s215
    %p221 = scmp.eq.s32.totalorder %s16, 0
    %p222 = por %p220, %p221
    %p223 = scmp.ne.s32.totalorder %s212, %s215
    %p224 = scmp.eq.s32.totalorder %s21, 7
    %p225 = por %p223, %p224
    %p226 = scmp.ne.s32.totalorder %s215, %s216
    %p227 = scmp.eq.s32.totalorder %s21, 0
    %p228 = por %p226, %p227
    %p229 = scmp.ne.s32.totalorder %s215, %s216
    %p230 = scmp.eq.s32.totalorder %s22, 7
    %p231 = por %p229, %p230
    %p233 = scmp.ne.s32.totalorder %s216, %s232
    %p234 = scmp.eq.s32.totalorder %s22, 0
    %p235 = por %p233, %p234
    %s236 = sadd.s32 %s24, 1
    %s237 = sadd.s32 %s31, 1
    %s238 = ssub.s32 %s23, %s35
    %s239 = ssub.s32 %s236, %s237
    %s240 = sor.u32 %s238, %s239
    %p241 = scmp.eq.s32.totalorder %s240, 0
    %s243 = sadd.s32 %s242, 1
    %s244 = scalar_select %p241, %s242, %s243
    %p247 = pneg %p241
    %p248 = scmp.eq.s32.totalorder %s16, 7
    %p249 = por %p247, %p248
    %p250 = scmp.ne.s32.totalorder %s242, %s245
    %p251 = scmp.eq.s32.totalorder %s16, 0
    %p252 = por %p250, %p251
    %p253 = scmp.ne.s32.totalorder %s242, %s245
    %p254 = scmp.eq.s32.totalorder %s21, 7
    %p255 = por %p253, %p254
    %p256 = scmp.ne.s32.totalorder %s245, %s246
    %p257 = scmp.eq.s32.totalorder %s21, 0
    %p258 = por %p256, %p257
    %p259 = scmp.ne.s32.totalorder %s245, %s246
    %p260 = scmp.eq.s32.totalorder %s22, 7
    %p261 = por %p259, %p260
    %p263 = scmp.ne.s32.totalorder %s246, %s262
    %p264 = scmp.eq.s32.totalorder %s22, 0
    %p265 = por %p263, %p264
    %s266 = sadd.s32 %s24, 2
    %s267 = sadd.s32 %s31, 2
    %s268 = ssub.s32 %s23, %s35
    %s269 = ssub.s32 %s266, %s267
    %s270 = sor.u32 %s268, %s269
    %p271 = scmp.eq.s32.totalorder %s270, 0
    %s273 = sadd.s32 %s272, 1
    %s274 = scalar_select %p271, %s272, %s273
    %p277 = pneg %p271
    %p278 = scmp.eq.s32.totalorder %s16, 7
    %p279 = por %p277, %p278
    %p280 = scmp.ne.s32.totalorder %s272, %s275
    %p281 = scmp.eq.s32.totalorder %s16, 0
    %p282 = por %p280, %p281
    %p283 = scmp.ne.s32.totalorder %s272, %s275
    %p284 = scmp.eq.s32.totalorder %s21, 7
    %p285 = por %p283, %p284
    %p286 = scmp.ne.s32.totalorder %s275, %s276
    %p287 = scmp.eq.s32.totalorder %s21, 0
    %p288 = por %p286, %p287
    %p289 = scmp.ne.s32.totalorder %s275, %s276
    %p290 = scmp.eq.s32.totalorder %s22, 7
    %p291 = por %p289, %p290
    %p293 = scmp.ne.s32.totalorder %s276, %s292
    %p294 = scmp.eq.s32.totalorder %s22, 0
    %p295 = por %p293, %p294
    %s296 = ssub.s32 %s23, %s35
    %s297 = ssub.s32 %s24, %s31
    %s298 = sor.u32 %s296, %s297
    %p299 = scmp.eq.s32.totalorder %s298, 0
    %s301 = sadd.s32 %s300, 1
    %s302 = scalar_select %p299, %s300, %s301
    %p305 = pneg %p299
    %p306 = scmp.eq.s32.totalorder %s16, 7
    %p307 = por %p305, %p306
    %p308 = scmp.ne.s32.totalorder %s300, %s303
    %p309 = scmp.eq.s32.totalorder %s16, 0
    %p310 = por %p308, %p309
    %p311 = scmp.ne.s32.totalorder %s300, %s303
    %p312 = scmp.eq.s32.totalorder %s21, 7
    %p313 = por %p311, %p312
    %p314 = scmp.ne.s32.totalorder %s303, %s304
    %p315 = scmp.eq.s32.totalorder %s21, 0
    %p316 = por %p314, %p315
    %p317 = scmp.ne.s32.totalorder %s303, %s304
    %p318 = scmp.eq.s32.totalorder %s22, 7
    %p319 = por %p317, %p318
    %p321 = scmp.ne.s32.totalorder %s304, %s320
    %p322 = scmp.eq.s32.totalorder %s22, 0
    %p323 = por %p321, %p322
    %p324 = scmp.le.s32.totalorder 1, %s16
    %p325 = scmp.lt.s32.totalorder %s16, 9
    %p326 = pnand %p324, %p325
    %p327 = pneg %p326
    // Predicated region
    $region9: #{stem_block.7} parent=5 // pred_check
      _
    $region10: #{stem_block.7} parent=5 // pred_check_branch
      %329 = sbr.rel (%p326) target = $region12
    $region11: #{stem_block.7} parent=5 // pred_region
      %s330 = ssub.s32 %s16, 1
      // Predicated region
      $region13: #{stem_block.7} parent=11 // pred_check
        %p331 = pneg %p49
      $region14: #{stem_block.7} parent=11 // pred_check_branch
        %333 = sbr.rel (%p331) target = $region16
      $region15: #{stem_block.7} parent=11 // pred_region
        _
      $region16: #{stem_block.7} parent=11 // pred_fallthru
        _
      // Predicated region
      $region17: #{stem_block.7} parent=11 // pred_check
        %p334 = pneg %p70
      $region18: #{stem_block.7} parent=11 // pred_check_branch
        %336 = sbr.rel (%p334) target = $region20
      $region19: #{stem_block.7} parent=11 // pred_region
        _
      $region20: #{stem_block.7} parent=11 // pred_fallthru
        _
      // Predicated region
      $region21: #{stem_block.7} parent=11 // pred_check
        %p337 = pneg %p91
      $region22: #{stem_block.7} parent=11 // pred_check_branch
        %339 = sbr.rel (%p337) target = $region24
      $region23: #{stem_block.7} parent=11 // pred_region
        _
      $region24: #{stem_block.7} parent=11 // pred_fallthru
        _
      // Predicated region
      $region25: #{stem_block.7} parent=11 // pred_check
        %p340 = pneg %p112
      $region26: #{stem_block.7} parent=11 // pred_check_branch
        %342 = sbr.rel (%p340) target = $region28
      $region27: #{stem_block.7} parent=11 // pred_region
        _
      $region28: #{stem_block.7} parent=11 // pred_fallthru
        _
    $region12: #{stem_block.7} parent=5 // pred_fallthru
      _
    %p343 = scmp.lt.s32.totalorder %s16, 8
    // Predicated region
    $region29: #{stem_block.7} parent=5 // pred_check
      %p344 = pneg %p343
    $region30: #{stem_block.7} parent=5 // pred_check_branch
      %346 = sbr.rel (%p344) target = $region32
    $region31: #{stem_block.7} parent=5 // pred_region
      // Predicated region
      $region33: #{stem_block.7} parent=31 // pred_check
        %p347 = pneg %p134
      $region34: #{stem_block.7} parent=31 // pred_check_branch
        %349 = sbr.rel (%p347) target = $region36
      $region35: #{stem_block.7} parent=31 // pred_region
        %p350 = scmp.lt.s32.totalorder %s23, 1
        %s351 = scalar_select %p350, %s23, 1
        %p352 = scmp.lt.s32.totalorder %s24, 5
        %s353 = scalar_select %p352, %s24, 5
        %s354 = smul.addr %s353, 2
        %s355 = smul.addr %s351, 12
        %s356 = sadd.s32 %s354, %s355
        %s357 = smul.addr %s356, 4
        %s358 = scalar_lea.vmem %s4, %s357
      $region36: #{stem_block.7} parent=31 // pred_fallthru
        _
      // Predicated region
      $region37: #{stem_block.7} parent=31 // pred_check
        %p359 = pneg %p164
      $region38: #{stem_block.7} parent=31 // pred_check_branch
        %361 = sbr.rel (%p359) target = $region40
      $region39: #{stem_block.7} parent=31 // pred_region
        %s362 = sadd.s32 %s24, 1
        %p363 = scmp.lt.s32.totalorder %s23, 1
        %s364 = scalar_select %p363, %s23, 1
        %p365 = scmp.lt.s32.totalorder %s362, 5
        %s366 = scalar_select %p365, %s362, 5
        %s367 = smul.addr %s366, 2
        %s368 = smul.addr %s364, 12
        %s369 = sadd.s32 %s367, %s368
        %s370 = smul.addr %s369, 4
        %s371 = scalar_lea.vmem %s5, %s370
        %s372 = sadd.s32 %s24, 1
      $region40: #{stem_block.7} parent=31 // pred_fallthru
        _
      // Predicated region
      $region41: #{stem_block.7} parent=31 // pred_check
        %p373 = pneg %p194
      $region42: #{stem_block.7} parent=31 // pred_check_branch
        %375 = sbr.rel (%p373) target = $region44
      $region43: #{stem_block.7} parent=31 // pred_region
        %s376 = sadd.s32 %s24, 2
        %p377 = scmp.lt.s32.totalorder %s23, 1
        %s378 = scalar_select %p377, %s23, 1
        %p379 = scmp.lt.s32.totalorder %s376, 5
        %s380 = scalar_select %p379, %s376, 5
        %s381 = smul.addr %s380, 2
        %s382 = smul.addr %s378, 12
        %s383 = sadd.s32 %s381, %s382
        %s384 = smul.addr %s383, 4
        %s385 = scalar_lea.vmem %s6, %s384
        %s386 = sadd.s32 %s24, 2
      $region44: #{stem_block.7} parent=31 // pred_fallthru
        _
      // Predicated region
      $region45: #{stem_block.7} parent=31 // pred_check
        %p387 = pneg %p222
      $region46: #{stem_block.7} parent=31 // pred_check_branch
        %389 = sbr.rel (%p387) target = $region48
      $region47: #{stem_block.7} parent=31 // pred_region
        %p390 = scmp.lt.s32.totalorder %s23, 1
        %s391 = scalar_select %p390, %s23, 1
        %p392 = scmp.lt.s32.totalorder %s24, 5
        %s393 = scalar_select %p392, %s24, 5
        %s394 = smul.addr %s393, 2
        %s395 = smul.addr %s391, 12
        %s396 = sadd.s32 %s394, %s395
        %s397 = smul.addr %s396, 4
        %s398 = scalar_lea.vmem %s7, %s397
      $region48: #{stem_block.7} parent=31 // pred_fallthru
        _
      // Predicated region
      $region49: #{stem_block.7} parent=31 // pred_check
        %p399 = pneg %p252
      $region50: #{stem_block.7} parent=31 // pred_check_branch
        %401 = sbr.rel (%p399) target = $region52
      $region51: #{stem_block.7} parent=31 // pred_region
        %s402 = sadd.s32 %s24, 1
        %p403 = scmp.lt.s32.totalorder %s23, 1
        %s404 = scalar_select %p403, %s23, 1
        %p405 = scmp.lt.s32.totalorder %s402, 5
        %s406 = scalar_select %p405, %s402, 5
        %s407 = smul.addr %s406, 2
        %s408 = smul.addr %s404, 12
        %s409 = sadd.s32 %s407, %s408
        %s410 = smul.addr %s409, 4
        %s411 = scalar_lea.vmem %s8, %s410
        %s412 = sadd.s32 %s24, 1
      $region52: #{stem_block.7} parent=31 // pred_fallthru
        _
      // Predicated region
      $region53: #{stem_block.7} parent=31 // pred_check
        %p413 = pneg %p282
      $region54: #{stem_block.7} parent=31 // pred_check_branch
        %415 = sbr.rel (%p413) target = $region56
      $region55: #{stem_block.7} parent=31 // pred_region
        %s416 = sadd.s32 %s24, 2
        %p417 = scmp.lt.s32.totalorder %s23, 1
        %s418 = scalar_select %p417, %s23, 1
        %p419 = scmp.lt.s32.totalorder %s416, 5
        %s420 = scalar_select %p419, %s416, 5
        %s421 = smul.addr %s420, 2
        %s422 = smul.addr %s418, 12
        %s423 = sadd.s32 %s421, %s422
        %s424 = smul.addr %s423, 4
        %s425 = scalar_lea.vmem %s9, %s424
        %s426 = sadd.s32 %s24, 2
      $region56: #{stem_block.7} parent=31 // pred_fallthru
        _
    $region32: #{stem_block.7} parent=5 // pred_fallthru
      _
    %p427 = scmp.le.s32.totalorder 1, %s16
    %p428 = scmp.lt.s32.totalorder %s16, 9
    %p429 = pnand %p427, %p428
    %p430 = pneg %p429
    // Predicated region
    $region57: #{stem_block.7} parent=5 // pred_check
      _
    $region58: #{stem_block.7} parent=5 // pred_check_branch
      %432 = sbr.rel (%p429) target = $region60
    $region59: #{stem_block.7} parent=5 // pred_region
      %s433 = ssub.s32 %s16, 1
      %p434 = pneg %p49
      %p435 = pneg %p46
      %p436 = pneg %p70
      %p437 = pneg %p67
      %p438 = pneg %p91
      %p439 = pneg %p88
      %p440 = pneg %p112
      %p441 = pneg %p109
      %p442 = scmp.lt.s32.totalorder %s25, 1
      %s443 = scalar_select %p442, %s25, 1
      %p444 = scmp.lt.s32.totalorder %s26, 5
      %s445 = scalar_select %p444, %s26, 5
      %s446 = smul.addr %s445, 2
      %s447 = smul.addr %s443, 12
      %s448 = sadd.s32 %s446, %s447
      %s449 = smul.addr %s448, 4
      %s450 = scalar_lea.vmem %s4, %s449
      %p451 = pneg %p140
      %p452 = pneg %p137
      %s453 = sadd.s32 %s26, 1
      %p454 = scmp.lt.s32.totalorder %s25, 1
      %s455 = scalar_select %p454, %s25, 1
      %p456 = scmp.lt.s32.totalorder %s453, 5
      %s457 = scalar_select %p456, %s453, 5
      %s458 = smul.addr %s457, 2
      %s459 = smul.addr %s455, 12
      %s460 = sadd.s32 %s458, %s459
      %s461 = smul.addr %s460, 4
      %s462 = scalar_lea.vmem %s5, %s461
      %p463 = pneg %p170
      %p464 = pneg %p167
      %s465 = sadd.s32 %s26, 2
      %p466 = scmp.lt.s32.totalorder %s25, 1
      %s467 = scalar_select %p466, %s25, 1
      %p468 = scmp.lt.s32.totalorder %s465, 5
      %s469 = scalar_select %p468, %s465, 5
      %s470 = smul.addr %s469, 2
      %s471 = smul.addr %s467, 12
      %s472 = sadd.s32 %s470, %s471
      %s473 = smul.addr %s472, 4
      %s474 = scalar_lea.vmem %s6, %s473
      %p475 = pneg %p200
      %p476 = pneg %p197
      %p477 = scmp.lt.s32.totalorder %s25, 1
      %s478 = scalar_select %p477, %s25, 1
      %p479 = scmp.lt.s32.totalorder %s26, 5
      %s480 = scalar_select %p479, %s26, 5
      %s481 = smul.addr %s480, 2
      %s482 = smul.addr %s478, 12
      %s483 = sadd.s32 %s481, %s482
      %s484 = smul.addr %s483, 4
      %s485 = scalar_lea.vmem %s7, %s484
      %p486 = pneg %p228
      %p487 = pneg %p225
      %s488 = sadd.s32 %s26, 1
      %p489 = scmp.lt.s32.totalorder %s25, 1
      %s490 = scalar_select %p489, %s25, 1
      %p491 = scmp.lt.s32.totalorder %s488, 5
      %s492 = scalar_select %p491, %s488, 5
      %s493 = smul.addr %s492, 2
      %s494 = smul.addr %s490, 12
      %s495 = sadd.s32 %s493, %s494
      %s496 = smul.addr %s495, 4
      %s497 = scalar_lea.vmem %s8, %s496
      %p498 = pneg %p258
      %p499 = pneg %p255
      %s500 = sadd.s32 %s26, 2
      %p501 = scmp.lt.s32.totalorder %s25, 1
      %s502 = scalar_select %p501, %s25, 1
      %p503 = scmp.lt.s32.totalorder %s500, 5
      %s504 = scalar_select %p503, %s500, 5
      %s505 = smul.addr %s504, 2
      %s506 = smul.addr %s502, 12
      %s507 = sadd.s32 %s505, %s506
      %s508 = smul.addr %s507, 4
      %s509 = scalar_lea.vmem %s9, %s508
      %p510 = pneg %p288
      %p511 = pneg %p285
      %p512 = pneg %p316
      %p513 = pneg %p313
      %p514 = scmp.lt.s32.totalorder %s25, 1
      %s515 = scalar_select %p514, %s25, 1
      %p516 = scmp.lt.s32.totalorder %s26, 3
      %s517 = scalar_select %p516, %s26, 3
      %s518 = smul.addr %s517, 2
      %s519 = smul.addr %s515, 8
      %s520 = sadd.s32 %s518, %s519
      %s521 = smul.addr %s520, 8
      %s522 = scalar_lea.vmem %s10, %s521
      %p523 = scmp.lt.s32.totalorder %s25, 1
      %s524 = scalar_select %p523, %s25, 1
      %p525 = scmp.lt.s32.totalorder %s26, 5
      %s526 = scalar_select %p525, %s26, 5
      %s527 = smul.addr %s526, 2
      %s528 = smul.addr %s524, 12
      %s529 = sadd.s32 %s527, %s528
      %s530 = smul.addr %s529, 4
      %s531 = scalar_lea.vmem %s4, %s530
      %s532 = sadd.s32 %s26, 1
      %p533 = scmp.lt.s32.totalorder %s25, 1
      %s534 = scalar_select %p533, %s25, 1
      %p535 = scmp.lt.s32.totalorder %s532, 5
      %s536 = scalar_select %p535, %s532, 5
      %s537 = smul.addr %s536, 2
      %s538 = smul.addr %s534, 12
      %s539 = sadd.s32 %s537, %s538
      %s540 = smul.addr %s539, 4
      %s541 = scalar_lea.vmem %s5, %s540
      %s542 = sadd.s32 %s26, 1
      %s543 = sadd.s32 %s26, 2
      %p544 = scmp.lt.s32.totalorder %s25, 1
      %s545 = scalar_select %p544, %s25, 1
      %p546 = scmp.lt.s32.totalorder %s543, 5
      %s547 = scalar_select %p546, %s543, 5
      %s548 = smul.addr %s547, 2
      %s549 = smul.addr %s545, 12
      %s550 = sadd.s32 %s548, %s549
      %s551 = smul.addr %s550, 4
      %s552 = scalar_lea.vmem %s6, %s551
      %s553 = sadd.s32 %s26, 2
      %p554 = scmp.lt.s32.totalorder %s25, 1
      %s555 = scalar_select %p554, %s25, 1
      %p556 = scmp.lt.s32.totalorder %s26, 5
      %s557 = scalar_select %p556, %s26, 5
      %s558 = smul.addr %s557, 2
      %s559 = smul.addr %s555, 12
      %s560 = sadd.s32 %s558, %s559
      %s561 = smul.addr %s560, 4
      %s562 = scalar_lea.vmem %s7, %s561
      %s563 = sadd.s32 %s26, 1
      %p564 = scmp.lt.s32.totalorder %s25, 1
      %s565 = scalar_select %p564, %s25, 1
      %p566 = scmp.lt.s32.totalorder %s563, 5
      %s567 = scalar_select %p566, %s563, 5
      %s568 = smul.addr %s567, 2
      %s569 = smul.addr %s565, 12
      %s570 = sadd.s32 %s568, %s569
      %s571 = smul.addr %s570, 4
      %s572 = scalar_lea.vmem %s8, %s571
      %s573 = sadd.s32 %s26, 1
      %s574 = sadd.s32 %s26, 2
      %p575 = scmp.lt.s32.totalorder %s25, 1
      %s576 = scalar_select %p575, %s25, 1
      %p577 = scmp.lt.s32.totalorder %s574, 5
      %s578 = scalar_select %p577, %s574, 5
      %s579 = smul.addr %s578, 2
      %s580 = smul.addr %s576, 12
      %s581 = sadd.s32 %s579, %s580
      %s582 = smul.addr %s581, 4
      %s583 = scalar_lea.vmem %s9, %s582
      %s584 = sadd.s32 %s26, 2
      %p585 = scmp.lt.s32.totalorder %s25, 1
      %s586 = scalar_select %p585, %s25, 1
      %p587 = scmp.lt.s32.totalorder %s26, 3
      %s588 = scalar_select %p587, %s26, 3
      %s589 = smul.addr %s588, 2
      %s590 = smul.addr %s586, 8
      %s591 = sadd.s32 %s589, %s590
      %s592 = smul.addr %s591, 8
      %s593 = scalar_lea.vmem %s10, %s592
      %v595 = vld [vmem:[%s531] sm:$0xf]
      %v596 = vld [vmem:[%s531 + $0x4] sm:$0xf]
      %v597 = vld [vmem:[%s562] sm:$0xf]
      %v598 = vld [vmem:[%s562 + $0x4] sm:$0xf]
      %v599 = vld [vmem:[%s0] sm:$0xf]
      %v600 = vld [vmem:[%s0 + $0x4] sm:$0xf]
      %v601 = vld [vmem:[%s1] sm:$0xf]
      %v602 = vld [vmem:[%s1 + $0x4] sm:$0xf]
      %v605 = vunpack.c.l.b16 %v601
      %v606 = vunpack.c.l.b16 %v602
      %v607 = vpack.c.b16 %v606, %v605
      %v610 = vunpack.c.l.b16 %v597
      %v611 = vunpack.c.l.b16 %v598
      %v612 = vpack.c.b16 %v611, %v610
      %vm614 = vcmask 130048
      %v616 = vsel %vm614, %v607, 0
      %618 = vmatprep.subr.bf16.mxu0 0
      %619 = vmatpush1.bf16.msra.mxu0 0
      %620 = vmatprep.subr.bf16.mxu0 0
      %621 = vmatpush1.bf16.msra.mxu0 0
      %622 = vmatprep.subr.bf16.mxu0 0
      %623 = vmatpush1.bf16.msra.mxu0 0
      %624 = vmatprep.subr.bf16.mxu0 0
      %625 = vmatpush1.bf16.msra.mxu0 0
      %626 = vmatprep.subr.bf16.mxu0 0
      %627 = vmatpush1.bf16.msra.mxu0 0
      %628 = vmatprep.subr.bf16.mxu0 0
      %629 = vmatpush1.bf16.msra.mxu0 0
      %630 = vmatprep.subr.bf16.mxu0 0
      %631 = vmatpush1.bf16.msra.mxu0 0
      %632 = vmatprep.subr.bf16.mxu0 0
      %633 = vmatpush1.bf16.msra.mxu0 %v612
      %634 = vmatprep.subr.bf16.mxu0 0
      %635 = vmatpush2.bf16.msra.mxu0 0
      %636 = vmatprep.subr.bf16.mxu0 0
      %637 = vmatpush2.bf16.msra.mxu0 0
      %638 = vmatprep.subr.bf16.mxu0 0
      %639 = vmatpush2.bf16.msra.mxu0 0
      %640 = vmatprep.subr.bf16.mxu0 0
      %641 = vmatpush2.bf16.msra.mxu0 0
      %642 = vmatprep.subr.bf16.mxu0 0
      %643 = vmatpush2.bf16.msra.mxu0 0
      %644 = vmatprep.subr.bf16.mxu0 0
      %645 = vmatpush2.bf16.msra.mxu0 0
      %646 = vmatprep.subr.bf16.mxu0 0
      %647 = vmatpush2.bf16.msra.mxu0 0
      %648 = vmatprep.subr.bf16.mxu0 0
      %649 = vmatpush2.bf16.msra.mxu0 0
      %650 = vmatprep.mubr.bf16.mxu0 0
      %651 = vmatmul.mubr.bf16.gmra.mxu0 %v616
      %v652 = vpop.f32.mrf.mxu0
      %v653 = vadd.f32 0.0, %v652
      %v654 = vpop.f32.mrf.mxu0
      %v655 = vpop.f32.mrf.mxu0
      %v656 = vadd.f32 0.0, %v655
      %v657 = vpop.f32.mrf.mxu0
      %658 = vdwg.mxu0
      %v661 = vunpack.c.l.b16 %v599
      %v662 = vunpack.c.l.b16 %v600
      %v663 = vpack.c.b16 %v662, %v661
      %v666 = vunpack.c.l.b16 %v595
      %v667 = vunpack.c.l.b16 %v596
      %v668 = vpack.c.b16 %v667, %v666
      %v671 = vsel %vm614, %v663, 0
      %673 = vmatprep.subr.bf16.mxu0 0
      %674 = vmatpush1.bf16.msra.mxu0 0
      %675 = vmatprep.subr.bf16.mxu0 0
      %676 = vmatpush1.bf16.msra.mxu0 0
      %677 = vmatprep.subr.bf16.mxu0 0
      %678 = vmatpush1.bf16.msra.mxu0 0
      %679 = vmatprep.subr.bf16.mxu0 0
      %680 = vmatpush1.bf16.msra.mxu0 0
      %681 = vmatprep.subr.bf16.mxu0 0
      %682 = vmatpush1.bf16.msra.mxu0 0
      %683 = vmatprep.subr.bf16.mxu0 0
      %684 = vmatpush1.bf16.msra.mxu0 0
      %685 = vmatprep.subr.bf16.mxu0 0
      %686 = vmatpush1.bf16.msra.mxu0 0
      %687 = vmatprep.subr.bf16.mxu0 0
      %688 = vmatpush1.bf16.msra.mxu0 %v668
      %689 = vmatprep.subr.bf16.mxu0 0
      %690 = vmatpush2.bf16.msra.mxu0 0
      %691 = vmatprep.subr.bf16.mxu0 0
      %692 = vmatpush2.bf16.msra.mxu0 0
      %693 = vmatprep.subr.bf16.mxu0 0
      %694 = vmatpush2.bf16.msra.mxu0 0
      %695 = vmatprep.subr.bf16.mxu0 0
      %696 = vmatpush2.bf16.msra.mxu0 0
      %697 = vmatprep.subr.bf16.mxu0 0
      %698 = vmatpush2.bf16.msra.mxu0 0
      %699 = vmatprep.subr.bf16.mxu0 0
      %700 = vmatpush2.bf16.msra.mxu0 0
      %701 = vmatprep.subr.bf16.mxu0 0
      %702 = vmatpush2.bf16.msra.mxu0 0
      %703 = vmatprep.subr.bf16.mxu0 0
      %704 = vmatpush2.bf16.msra.mxu0 0
      %705 = vmatprep.mubr.bf16.mxu0 0
      %706 = vmatmul.mubr.bf16.gmra.mxu0 %v671
      %v707 = vpop.f32.mrf.mxu0
      %v708 = vadd.f32 %v653, %v707
      %v709 = vpop.f32.mrf.mxu0
      %v710 = vpop.f32.mrf.mxu0
      %v711 = vadd.f32 %v656, %v710
      %v712 = vpop.f32.mrf.mxu0
      %713 = vdwg.mxu0
      %s714 = scalar_lea.vmem %s0, 8
      %v715 = vld [vmem:[%s714] sm:$0xf]
      %v716 = vld [vmem:[%s714 + $0x4] sm:$0xf]
      %s717 = scalar_lea.vmem %s1, 8
      %v718 = vld [vmem:[%s717] sm:$0xf]
      %v719 = vld [vmem:[%s717 + $0x4] sm:$0xf]
      %v722 = vunpack.c.l.b16 %v718
      %v723 = vunpack.c.l.b16 %v719
      %v724 = vpack.c.b16 %v723, %v722
      %725 = vrot.lane.b32.xlu0 %v612, 127
      %v726 = vpop.permute.xlu0 %725
      %v729 = vsel %vm614, %v724, 0
      %731 = vmatprep.subr.bf16.mxu0 0
      %732 = vmatpush1.bf16.msra.mxu0 0
      %733 = vmatprep.subr.bf16.mxu0 0
      %734 = vmatpush1.bf16.msra.mxu0 0
      %735 = vmatprep.subr.bf16.mxu0 0
      %736 = vmatpush1.bf16.msra.mxu0 0
      %737 = vmatprep.subr.bf16.mxu0 0
      %738 = vmatpush1.bf16.msra.mxu0 0
      %739 = vmatprep.subr.bf16.mxu0 0
      %740 = vmatpush1.bf16.msra.mxu0 0
      %741 = vmatprep.subr.bf16.mxu0 0
      %742 = vmatpush1.bf16.msra.mxu0 0
      %743 = vmatprep.subr.bf16.mxu0 0
      %744 = vmatpush1.bf16.msra.mxu0 0
      %745 = vmatprep.subr.bf16.mxu0 0
      %746 = vmatpush1.bf16.msra.mxu0 %v726
      %747 = vmatprep.subr.bf16.mxu0 0
      %748 = vmatpush2.bf16.msra.mxu0 0
      %749 = vmatprep.subr.bf16.mxu0 0
      %750 = vmatpush2.bf16.msra.mxu0 0
      %751 = vmatprep.subr.bf16.mxu0 0
      %752 = vmatpush2.bf16.msra.mxu0 0
      %753 = vmatprep.subr.bf16.mxu0 0
      %754 = vmatpush2.bf16.msra.mxu0 0
      %755 = vmatprep.subr.bf16.mxu0 0
      %756 = vmatpush2.bf16.msra.mxu0 0
      %757 = vmatprep.subr.bf16.mxu0 0
      %758 = vmatpush2.bf16.msra.mxu0 0
      %759 = vmatprep.subr.bf16.mxu0 0
      %760 = vmatpush2.bf16.msra.mxu0 0
      %761 = vmatprep.subr.bf16.mxu0 0
      %762 = vmatpush2.bf16.msra.mxu0 0
      %763 = vmatprep.mubr.bf16.mxu0 0
      %764 = vmatmul.mubr.bf16.gmra.mxu0 %v729
      %v765 = vpop.f32.mrf.mxu0
      %v766 = vadd.f32 0.0, %v765
      %v767 = vpop.f32.mrf.mxu0
      %v768 = vpop.f32.mrf.mxu0
      %v769 = vadd.f32 0.0, %v768
      %v770 = vpop.f32.mrf.mxu0
      %771 = vdwg.mxu0
      %v774 = vunpack.c.l.b16 %v715
      %v775 = vunpack.c.l.b16 %v716
      %v776 = vpack.c.b16 %v775, %v774
      %777 = vrot.lane.b32.xlu0 %v668, 127
      %v778 = vpop.permute.xlu0 %777
      %v781 = vsel %vm614, %v776, 0
      %783 = vmatprep.subr.bf16.mxu0 0
      %784 = vmatpush1.bf16.msra.mxu0 0
      %785 = vmatprep.subr.bf16.mxu0 0
      %786 = vmatpush1.bf16.msra.mxu0 0
      %787 = vmatprep.subr.bf16.mxu0 0
      %788 = vmatpush1.bf16.msra.mxu0 0
      %789 = vmatprep.subr.bf16.mxu0 0
      %790 = vmatpush1.bf16.msra.mxu0 0
      %791 = vmatprep.subr.bf16.mxu0 0
      %792 = vmatpush1.bf16.msra.mxu0 0
      %793 = vmatprep.subr.bf16.mxu0 0
      %794 = vmatpush1.bf16.msra.mxu0 0
      %795 = vmatprep.subr.bf16.mxu0 0
      %796 = vmatpush1.bf16.msra.mxu0 0
      %797 = vmatprep.subr.bf16.mxu0 0
      %798 = vmatpush1.bf16.msra.mxu0 %v778
      %799 = vmatprep.subr.bf16.mxu0 0
      %800 = vmatpush2.bf16.msra.mxu0 0
      %801 = vmatprep.subr.bf16.mxu0 0
      %802 = vmatpush2.bf16.msra.mxu0 0
      %803 = vmatprep.subr.bf16.mxu0 0
      %804 = vmatpush2.bf16.msra.mxu0 0
      %805 = vmatprep.subr.bf16.mxu0 0
      %806 = vmatpush2.bf16.msra.mxu0 0
      %807 = vmatprep.subr.bf16.mxu0 0
      %808 = vmatpush2.bf16.msra.mxu0 0
      %809 = vmatprep.subr.bf16.mxu0 0
      %810 = vmatpush2.bf16.msra.mxu0 0
      %811 = vmatprep.subr.bf16.mxu0 0
      %812 = vmatpush2.bf16.msra.mxu0 0
      %813 = vmatprep.subr.bf16.mxu0 0
      %814 = vmatpush2.bf16.msra.mxu0 0
      %815 = vmatprep.mubr.bf16.mxu0 0
      %816 = vmatmul.mubr.bf16.gmra.mxu0 %v781
      %v817 = vpop.f32.mrf.mxu0
      %v818 = vadd.f32 %v766, %v817
      %v819 = vpop.f32.mrf.mxu0
      %v820 = vpop.f32.mrf.mxu0
      %v821 = vadd.f32 %v769, %v820
      %v822 = vpop.f32.mrf.mxu0
      %823 = vdwg.mxu0
      %v824 = vadd.f32 %v708, %v818
      %v825 = vadd.f32 %v711, %v821
      %s826 = scalar_lea.vmem %s0, 16
      %v827 = vld [vmem:[%s826] sm:$0xf]
      %v828 = vld [vmem:[%s826 + $0x4] sm:$0xf]
      %s829 = scalar_lea.vmem %s1, 16
      %v830 = vld [vmem:[%s829] sm:$0xf]
      %v831 = vld [vmem:[%s829 + $0x4] sm:$0xf]
      %v834 = vunpack.c.l.b16 %v830
      %v835 = vunpack.c.l.b16 %v831
      %v836 = vpack.c.b16 %v835, %v834
      %837 = vrot.lane.b32.xlu0 %v612, 126
      %v838 = vpop.permute.xlu0 %837
      %v841 = vsel %vm614, %v836, 0
      %843 = vmatprep.subr.bf16.mxu0 0
      %844 = vmatpush1.bf16.msra.mxu0 0
      %845 = vmatprep.subr.bf16.mxu0 0
      %846 = vmatpush1.bf16.msra.mxu0 0
      %847 = vmatprep.subr.bf16.mxu0 0
      %848 = vmatpush1.bf16.msra.mxu0 0
      %849 = vmatprep.subr.bf16.mxu0 0
      %850 = vmatpush1.bf16.msra.mxu0 0
      %851 = vmatprep.subr.bf16.mxu0 0
      %852 = vmatpush1.bf16.msra.mxu0 0
      %853 = vmatprep.subr.bf16.mxu0 0
      %854 = vmatpush1.bf16.msra.mxu0 0
      %855 = vmatprep.subr.bf16.mxu0 0
      %856 = vmatpush1.bf16.msra.mxu0 0
      %857 = vmatprep.subr.bf16.mxu0 0
      %858 = vmatpush1.bf16.msra.mxu0 %v838
      %859 = vmatprep.subr.bf16.mxu0 0
      %860 = vmatpush2.bf16.msra.mxu0 0
      %861 = vmatprep.subr.bf16.mxu0 0
      %862 = vmatpush2.bf16.msra.mxu0 0
      %863 = vmatprep.subr.bf16.mxu0 0
      %864 = vmatpush2.bf16.msra.mxu0 0
      %865 = vmatprep.subr.bf16.mxu0 0
      %866 = vmatpush2.bf16.msra.mxu0 0
      %867 = vmatprep.subr.bf16.mxu0 0
      %868 = vmatpush2.bf16.msra.mxu0 0
      %869 = vmatprep.subr.bf16.mxu0 0
      %870 = vmatpush2.bf16.msra.mxu0 0
      %871 = vmatprep.subr.bf16.mxu0 0
      %872 = vmatpush2.bf16.msra.mxu0 0
      %873 = vmatprep.subr.bf16.mxu0 0
      %874 = vmatpush2.bf16.msra.mxu0 0
      %875 = vmatprep.mubr.bf16.mxu0 0
      %876 = vmatmul.mubr.bf16.gmra.mxu0 %v841
      %v877 = vpop.f32.mrf.mxu0
      %v878 = vadd.f32 0.0, %v877
      %v879 = vpop.f32.mrf.mxu0
      %v880 = vpop.f32.mrf.mxu0
      %v881 = vadd.f32 0.0, %v880
      %v882 = vpop.f32.mrf.mxu0
      %883 = vdwg.mxu0
      %v886 = vunpack.c.l.b16 %v827
      %v887 = vunpack.c.l.b16 %v828
      %v888 = vpack.c.b16 %v887, %v886
      %889 = vrot.lane.b32.xlu0 %v668, 126
      %v890 = vpop.permute.xlu0 %889
      %v893 = vsel %vm614, %v888, 0
      %895 = vmatprep.subr.bf16.mxu0 0
      %896 = vmatpush1.bf16.msra.mxu0 0
      %897 = vmatprep.subr.bf16.mxu0 0
      %898 = vmatpush1.bf16.msra.mxu0 0
      %899 = vmatprep.subr.bf16.mxu0 0
      %900 = vmatpush1.bf16.msra.mxu0 0
      %901 = vmatprep.subr.bf16.mxu0 0
      %902 = vmatpush1.bf16.msra.mxu0 0
      %903 = vmatprep.subr.bf16.mxu0 0
      %904 = vmatpush1.bf16.msra.mxu0 0
      %905 = vmatprep.subr.bf16.mxu0 0
      %906 = vmatpush1.bf16.msra.mxu0 0
      %907 = vmatprep.subr.bf16.mxu0 0
      %908 = vmatpush1.bf16.msra.mxu0 0
      %909 = vmatprep.subr.bf16.mxu0 0
      %910 = vmatpush1.bf16.msra.mxu0 %v890
      %911 = vmatprep.subr.bf16.mxu0 0
      %912 = vmatpush2.bf16.msra.mxu0 0
      %913 = vmatprep.subr.bf16.mxu0 0
      %914 = vmatpush2.bf16.msra.mxu0 0
      %915 = vmatprep.subr.bf16.mxu0 0
      %916 = vmatpush2.bf16.msra.mxu0 0
      %917 = vmatprep.subr.bf16.mxu0 0
      %918 = vmatpush2.bf16.msra.mxu0 0
      %919 = vmatprep.subr.bf16.mxu0 0
      %920 = vmatpush2.bf16.msra.mxu0 0
      %921 = vmatprep.subr.bf16.mxu0 0
      %922 = vmatpush2.bf16.msra.mxu0 0
      %923 = vmatprep.subr.bf16.mxu0 0
      %924 = vmatpush2.bf16.msra.mxu0 0
      %925 = vmatprep.subr.bf16.mxu0 0
      %926 = vmatpush2.bf16.msra.mxu0 0
      %927 = vmatprep.mubr.bf16.mxu0 0
      %928 = vmatmul.mubr.bf16.gmra.mxu0 %v893
      %v929 = vpop.f32.mrf.mxu0
      %v930 = vadd.f32 %v878, %v929
      %v931 = vpop.f32.mrf.mxu0
      %v932 = vpop.f32.mrf.mxu0
      %v933 = vadd.f32 %v881, %v932
      %v934 = vpop.f32.mrf.mxu0
      %935 = vdwg.mxu0
      %v936 = vadd.f32 %v824, %v930
      %v937 = vadd.f32 %v825, %v933
      %v938 = vld [vmem:[%s541] sm:$0xf]
      %v939 = vld [vmem:[%s541 + $0x4] sm:$0xf]
      %v940 = vld [vmem:[%s572] sm:$0xf]
      %v941 = vld [vmem:[%s572 + $0x4] sm:$0xf]
      %s942 = scalar_lea.vmem %s0, 24
      %v943 = vld [vmem:[%s942] sm:$0xf]
      %v944 = vld [vmem:[%s942 + $0x4] sm:$0xf]
      %s945 = scalar_lea.vmem %s1, 24
      %v946 = vld [vmem:[%s945] sm:$0xf]
      %v947 = vld [vmem:[%s945 + $0x4] sm:$0xf]
      %v950 = vunpack.c.l.b16 %v946
      %v951 = vunpack.c.l.b16 %v947
      %v952 = vpack.c.b16 %v951, %v950
      %v955 = vunpack.c.l.b16 %v940
      %v956 = vunpack.c.l.b16 %v941
      %v957 = vpack.c.b16 %v956, %v955
      %v960 = vsel %vm614, %v952, 0
      %962 = vmatprep.subr.bf16.mxu0 0
      %963 = vmatpush1.bf16.msra.mxu0 0
      %964 = vmatprep.subr.bf16.mxu0 0
      %965 = vmatpush1.bf16.msra.mxu0 0
      %966 = vmatprep.subr.bf16.mxu0 0
      %967 = vmatpush1.bf16.msra.mxu0 0
      %968 = vmatprep.subr.bf16.mxu0 0
      %969 = vmatpush1.bf16.msra.mxu0 0
      %970 = vmatprep.subr.bf16.mxu0 0
      %971 = vmatpush1.bf16.msra.mxu0 0
      %972 = vmatprep.subr.bf16.mxu0 0
      %973 = vmatpush1.bf16.msra.mxu0 0
      %974 = vmatprep.subr.bf16.mxu0 0
      %975 = vmatpush1.bf16.msra.mxu0 0
      %976 = vmatprep.subr.bf16.mxu0 0
      %977 = vmatpush1.bf16.msra.mxu0 %v957
      %978 = vmatprep.subr.bf16.mxu0 0
      %979 = vmatpush2.bf16.msra.mxu0 0
      %980 = vmatprep.subr.bf16.mxu0 0
      %981 = vmatpush2.bf16.msra.mxu0 0
      %982 = vmatprep.subr.bf16.mxu0 0
      %983 = vmatpush2.bf16.msra.mxu0 0
      %984 = vmatprep.subr.bf16.mxu0 0
      %985 = vmatpush2.bf16.msra.mxu0 0
      %986 = vmatprep.subr.bf16.mxu0 0
      %987 = vmatpush2.bf16.msra.mxu0 0
      %988 = vmatprep.subr.bf16.mxu0 0
      %989 = vmatpush2.bf16.msra.mxu0 0
      %990 = vmatprep.subr.bf16.mxu0 0
      %991 = vmatpush2.bf16.msra.mxu0 0
      %992 = vmatprep.subr.bf16.mxu0 0
      %993 = vmatpush2.bf16.msra.mxu0 0
      %994 = vmatprep.mubr.bf16.mxu0 0
      %995 = vmatmul.mubr.bf16.gmra.mxu0 %v960
      %v996 = vpop.f32.mrf.mxu0
      %v997 = vadd.f32 0.0, %v996
      %v998 = vpop.f32.mrf.mxu0
      %v999 = vpop.f32.mrf.mxu0
      %v1000 = vadd.f32 0.0, %v999
      %v1001 = vpop.f32.mrf.mxu0
      %1002 = vdwg.mxu0
      %v1005 = vunpack.c.l.b16 %v943
      %v1006 = vunpack.c.l.b16 %v944
      %v1007 = vpack.c.b16 %v1006, %v1005
      %v1010 = vunpack.c.l.b16 %v938
      %v1011 = vunpack.c.l.b16 %v939
      %v1012 = vpack.c.b16 %v1011, %v1010
      %v1015 = vsel %vm614, %v1007, 0
      %1017 = vmatprep.subr.bf16.mxu0 0
      %1018 = vmatpush1.bf16.msra.mxu0 0
      %1019 = vmatprep.subr.bf16.mxu0 0
      %1020 = vmatpush1.bf16.msra.mxu0 0
      %1021 = vmatprep.subr.bf16.mxu0 0
      %1022 = vmatpush1.bf16.msra.mxu0 0
      %1023 = vmatprep.subr.bf16.mxu0 0
      %1024 = vmatpush1.bf16.msra.mxu0 0
      %1025 = vmatprep.subr.bf16.mxu0 0
      %1026 = vmatpush1.bf16.msra.mxu0 0
      %1027 = vmatprep.subr.bf16.mxu0 0
      %1028 = vmatpush1.bf16.msra.mxu0 0
      %1029 = vmatprep.subr.bf16.mxu0 0
      %1030 = vmatpush1.bf16.msra.mxu0 0
      %1031 = vmatprep.subr.bf16.mxu0 0
      %1032 = vmatpush1.bf16.msra.mxu0 %v1012
      %1033 = vmatprep.subr.bf16.mxu0 0
      %1034 = vmatpush2.bf16.msra.mxu0 0
      %1035 = vmatprep.subr.bf16.mxu0 0
      %1036 = vmatpush2.bf16.msra.mxu0 0
      %1037 = vmatprep.subr.bf16.mxu0 0
      %1038 = vmatpush2.bf16.msra.mxu0 0
      %1039 = vmatprep.subr.bf16.mxu0 0
      %1040 = vmatpush2.bf16.msra.mxu0 0
      %1041 = vmatprep.subr.bf16.mxu0 0
      %1042 = vmatpush2.bf16.msra.mxu0 0
      %1043 = vmatprep.subr.bf16.mxu0 0
      %1044 = vmatpush2.bf16.msra.mxu0 0
      %1045 = vmatprep.subr.bf16.mxu0 0
      %1046 = vmatpush2.bf16.msra.mxu0 0
      %1047 = vmatprep.subr.bf16.mxu0 0
      %1048 = vmatpush2.bf16.msra.mxu0 0
      %1049 = vmatprep.mubr.bf16.mxu0 0
      %1050 = vmatmul.mubr.bf16.gmra.mxu0 %v1015
      %v1051 = vpop.f32.mrf.mxu0
      %v1052 = vadd.f32 %v997, %v1051
      %v1053 = vpop.f32.mrf.mxu0
      %v1054 = vpop.f32.mrf.mxu0
      %v1055 = vadd.f32 %v1000, %v1054
      %v1056 = vpop.f32.mrf.mxu0
      %1057 = vdwg.mxu0
      %v1058 = vadd.f32 %v936, %v1052
      %v1059 = vadd.f32 %v937, %v1055
      %s1060 = scalar_lea.vmem %s0, 32
      %v1061 = vld [vmem:[%s1060] sm:$0xf]
      %v1062 = vld [vmem:[%s1060 + $0x4] sm:$0xf]
      %s1063 = scalar_lea.vmem %s1, 32
      %v1064 = vld [vmem:[%s1063] sm:$0xf]
      %v1065 = vld [vmem:[%s1063 + $0x4] sm:$0xf]
      %v1068 = vunpack.c.l.b16 %v1064
      %v1069 = vunpack.c.l.b16 %v1065
      %v1070 = vpack.c.b16 %v1069, %v1068
      %1071 = vrot.lane.b32.xlu0 %v957, 127
      %v1072 = vpop.permute.xlu0 %1071
      %v1075 = vsel %vm614, %v1070, 0
      %1077 = vmatprep.subr.bf16.mxu0 0
      %1078 = vmatpush1.bf16.msra.mxu0 0
      %1079 = vmatprep.subr.bf16.mxu0 0
      %1080 = vmatpush1.bf16.msra.mxu0 0
      %1081 = vmatprep.subr.bf16.mxu0 0
      %1082 = vmatpush1.bf16.msra.mxu0 0
      %1083 = vmatprep.subr.bf16.mxu0 0
      %1084 = vmatpush1.bf16.msra.mxu0 0
      %1085 = vmatprep.subr.bf16.mxu0 0
      %1086 = vmatpush1.bf16.msra.mxu0 0
      %1087 = vmatprep.subr.bf16.mxu0 0
      %1088 = vmatpush1.bf16.msra.mxu0 0
      %1089 = vmatprep.subr.bf16.mxu0 0
      %1090 = vmatpush1.bf16.msra.mxu0 0
      %1091 = vmatprep.subr.bf16.mxu0 0
      %1092 = vmatpush1.bf16.msra.mxu0 %v1072
      %1093 = vmatprep.subr.bf16.mxu0 0
      %1094 = vmatpush2.bf16.msra.mxu0 0
      %1095 = vmatprep.subr.bf16.mxu0 0
      %1096 = vmatpush2.bf16.msra.mxu0 0
      %1097 = vmatprep.subr.bf16.mxu0 0
      %1098 = vmatpush2.bf16.msra.mxu0 0
      %1099 = vmatprep.subr.bf16.mxu0 0
      %1100 = vmatpush2.bf16.msra.mxu0 0
      %1101 = vmatprep.subr.bf16.mxu0 0
      %1102 = vmatpush2.bf16.msra.mxu0 0
      %1103 = vmatprep.subr.bf16.mxu0 0
      %1104 = vmatpush2.bf16.msra.mxu0 0
      %1105 = vmatprep.subr.bf16.mxu0 0
      %1106 = vmatpush2.bf16.msra.mxu0 0
      %1107 = vmatprep.subr.bf16.mxu0 0
      %1108 = vmatpush2.bf16.msra.mxu0 0
      %1109 = vmatprep.mubr.bf16.mxu0 0
      %1110 = vmatmul.mubr.bf16.gmra.mxu0 %v1075
      %v1111 = vpop.f32.mrf.mxu0
      %v1112 = vadd.f32 0.0, %v1111
      %v1113 = vpop.f32.mrf.mxu0
      %v1114 = vpop.f32.mrf.mxu0
      %v1115 = vadd.f32 0.0, %v1114
      %v1116 = vpop.f32.mrf.mxu0
      %1117 = vdwg.mxu0
      %v1120 = vunpack.c.l.b16 %v1061
      %v1121 = vunpack.c.l.b16 %v1062
      %v1122 = vpack.c.b16 %v1121, %v1120
      %1123 = vrot.lane.b32.xlu0 %v1012, 127
      %v1124 = vpop.permute.xlu0 %1123
      %v1127 = vsel %vm614, %v1122, 0
      %1129 = vmatprep.subr.bf16.mxu0 0
      %1130 = vmatpush1.bf16.msra.mxu0 0
      %1131 = vmatprep.subr.bf16.mxu0 0
      %1132 = vmatpush1.bf16.msra.mxu0 0
      %1133 = vmatprep.subr.bf16.mxu0 0
      %1134 = vmatpush1.bf16.msra.mxu0 0
      %1135 = vmatprep.subr.bf16.mxu0 0
      %1136 = vmatpush1.bf16.msra.mxu0 0
      %1137 = vmatprep.subr.bf16.mxu0 0
      %1138 = vmatpush1.bf16.msra.mxu0 0
      %1139 = vmatprep.subr.bf16.mxu0 0
      %1140 = vmatpush1.bf16.msra.mxu0 0
      %1141 = vmatprep.subr.bf16.mxu0 0
      %1142 = vmatpush1.bf16.msra.mxu0 0
      %1143 = vmatprep.subr.bf16.mxu0 0
      %1144 = vmatpush1.bf16.msra.mxu0 %v1124
      %1145 = vmatprep.subr.bf16.mxu0 0
      %1146 = vmatpush2.bf16.msra.mxu0 0
      %1147 = vmatprep.subr.bf16.mxu0 0
      %1148 = vmatpush2.bf16.msra.mxu0 0
      %1149 = vmatprep.subr.bf16.mxu0 0
      %1150 = vmatpush2.bf16.msra.mxu0 0
      %1151 = vmatprep.subr.bf16.mxu0 0
      %1152 = vmatpush2.bf16.msra.mxu0 0
      %1153 = vmatprep.subr.bf16.mxu0 0
      %1154 = vmatpush2.bf16.msra.mxu0 0
      %1155 = vmatprep.subr.bf16.mxu0 0
      %1156 = vmatpush2.bf16.msra.mxu0 0
      %1157 = vmatprep.subr.bf16.mxu0 0
      %1158 = vmatpush2.bf16.msra.mxu0 0
      %1159 = vmatprep.subr.bf16.mxu0 0
      %1160 = vmatpush2.bf16.msra.mxu0 0
      %1161 = vmatprep.mubr.bf16.mxu0 0
      %1162 = vmatmul.mubr.bf16.gmra.mxu0 %v1127
      %v1163 = vpop.f32.mrf.mxu0
      %v1164 = vadd.f32 %v1112, %v1163
      %v1165 = vpop.f32.mrf.mxu0
      %v1166 = vpop.f32.mrf.mxu0
      %v1167 = vadd.f32 %v1115, %v1166
      %v1168 = vpop.f32.mrf.mxu0
      %1169 = vdwg.mxu0
      %v1170 = vadd.f32 %v1058, %v1164
      %v1171 = vadd.f32 %v1059, %v1167
      %s1172 = scalar_lea.vmem %s0, 40
      %v1173 = vld [vmem:[%s1172] sm:$0xf]
      %v1174 = vld [vmem:[%s1172 + $0x4] sm:$0xf]
      %s1175 = scalar_lea.vmem %s1, 40
      %v1176 = vld [vmem:[%s1175] sm:$0xf]
      %v1177 = vld [vmem:[%s1175 + $0x4] sm:$0xf]
      %v1180 = vunpack.c.l.b16 %v1176
      %v1181 = vunpack.c.l.b16 %v1177
      %v1182 = vpack.c.b16 %v1181, %v1180
      %1183 = vrot.lane.b32.xlu0 %v957, 126
      %v1184 = vpop.permute.xlu0 %1183
      %v1187 = vsel %vm614, %v1182, 0
      %1189 = vmatprep.subr.bf16.mxu0 0
      %1190 = vmatpush1.bf16.msra.mxu0 0
      %1191 = vmatprep.subr.bf16.mxu0 0
      %1192 = vmatpush1.bf16.msra.mxu0 0
      %1193 = vmatprep.subr.bf16.mxu0 0
      %1194 = vmatpush1.bf16.msra.mxu0 0
      %1195 = vmatprep.subr.bf16.mxu0 0
      %1196 = vmatpush1.bf16.msra.mxu0 0
      %1197 = vmatprep.subr.bf16.mxu0 0
      %1198 = vmatpush1.bf16.msra.mxu0 0
      %1199 = vmatprep.subr.bf16.mxu0 0
      %1200 = vmatpush1.bf16.msra.mxu0 0
      %1201 = vmatprep.subr.bf16.mxu0 0
      %1202 = vmatpush1.bf16.msra.mxu0 0
      %1203 = vmatprep.subr.bf16.mxu0 0
      %1204 = vmatpush1.bf16.msra.mxu0 %v1184
      %1205 = vmatprep.subr.bf16.mxu0 0
      %1206 = vmatpush2.bf16.msra.mxu0 0
      %1207 = vmatprep.subr.bf16.mxu0 0
      %1208 = vmatpush2.bf16.msra.mxu0 0
      %1209 = vmatprep.subr.bf16.mxu0 0
      %1210 = vmatpush2.bf16.msra.mxu0 0
      %1211 = vmatprep.subr.bf16.mxu0 0
      %1212 = vmatpush2.bf16.msra.mxu0 0
      %1213 = vmatprep.subr.bf16.mxu0 0
      %1214 = vmatpush2.bf16.msra.mxu0 0
      %1215 = vmatprep.subr.bf16.mxu0 0
      %1216 = vmatpush2.bf16.msra.mxu0 0
      %1217 = vmatprep.subr.bf16.mxu0 0
      %1218 = vmatpush2.bf16.msra.mxu0 0
      %1219 = vmatprep.subr.bf16.mxu0 0
      %1220 = vmatpush2.bf16.msra.mxu0 0
      %1221 = vmatprep.mubr.bf16.mxu0 0
      %1222 = vmatmul.mubr.bf16.gmra.mxu0 %v1187
      %v1223 = vpop.f32.mrf.mxu0
      %v1224 = vadd.f32 0.0, %v1223
      %v1225 = vpop.f32.mrf.mxu0
      %v1226 = vpop.f32.mrf.mxu0
      %v1227 = vadd.f32 0.0, %v1226
      %v1228 = vpop.f32.mrf.mxu0
      %1229 = vdwg.mxu0
      %v1232 = vunpack.c.l.b16 %v1173
      %v1233 = vunpack.c.l.b16 %v1174
      %v1234 = vpack.c.b16 %v1233, %v1232
      %1235 = vrot.lane.b32.xlu0 %v1012, 126
      %v1236 = vpop.permute.xlu0 %1235
      %v1239 = vsel %vm614, %v1234, 0
      %1241 = vmatprep.subr.bf16.mxu0 0
      %1242 = vmatpush1.bf16.msra.mxu0 0
      %1243 = vmatprep.subr.bf16.mxu0 0
      %1244 = vmatpush1.bf16.msra.mxu0 0
      %1245 = vmatprep.subr.bf16.mxu0 0
      %1246 = vmatpush1.bf16.msra.mxu0 0
      %1247 = vmatprep.subr.bf16.mxu0 0
      %1248 = vmatpush1.bf16.msra.mxu0 0
      %1249 = vmatprep.subr.bf16.mxu0 0
      %1250 = vmatpush1.bf16.msra.mxu0 0
      %1251 = vmatprep.subr.bf16.mxu0 0
      %1252 = vmatpush1.bf16.msra.mxu0 0
      %1253 = vmatprep.subr.bf16.mxu0 0
      %1254 = vmatpush1.bf16.msra.mxu0 0
      %1255 = vmatprep.subr.bf16.mxu0 0
      %1256 = vmatpush1.bf16.msra.mxu0 %v1236
      %1257 = vmatprep.subr.bf16.mxu0 0
      %1258 = vmatpush2.bf16.msra.mxu0 0
      %1259 = vmatprep.subr.bf16.mxu0 0
      %1260 = vmatpush2.bf16.msra.mxu0 0
      %1261 = vmatprep.subr.bf16.mxu0 0
      %1262 = vmatpush2.bf16.msra.mxu0 0
      %1263 = vmatprep.subr.bf16.mxu0 0
      %1264 = vmatpush2.bf16.msra.mxu0 0
      %1265 = vmatprep.subr.bf16.mxu0 0
      %1266 = vmatpush2.bf16.msra.mxu0 0
      %1267 = vmatprep.subr.bf16.mxu0 0
      %1268 = vmatpush2.bf16.msra.mxu0 0
      %1269 = vmatprep.subr.bf16.mxu0 0
      %1270 = vmatpush2.bf16.msra.mxu0 0
      %1271 = vmatprep.subr.bf16.mxu0 0
      %1272 = vmatpush2.bf16.msra.mxu0 0
      %1273 = vmatprep.mubr.bf16.mxu0 0
      %1274 = vmatmul.mubr.bf16.gmra.mxu0 %v1239
      %v1275 = vpop.f32.mrf.mxu0
      %v1276 = vadd.f32 %v1224, %v1275
      %v1277 = vpop.f32.mrf.mxu0
      %v1278 = vpop.f32.mrf.mxu0
      %v1279 = vadd.f32 %v1227, %v1278
      %v1280 = vpop.f32.mrf.mxu0
      %1281 = vdwg.mxu0
      %v1282 = vadd.f32 %v1170, %v1276
      %v1283 = vadd.f32 %v1171, %v1279
      %v1284 = vld [vmem:[%s552] sm:$0xf]
      %v1285 = vld [vmem:[%s552 + $0x4] sm:$0xf]
      %v1286 = vld [vmem:[%s583] sm:$0xf]
      %v1287 = vld [vmem:[%s583 + $0x4] sm:$0xf]
      %s1288 = scalar_lea.vmem %s0, 48
      %v1289 = vld [vmem:[%s1288] sm:$0xf]
      %v1290 = vld [vmem:[%s1288 + $0x4] sm:$0xf]
      %s1291 = scalar_lea.vmem %s1, 48
      %v1292 = vld [vmem:[%s1291] sm:$0xf]
      %v1293 = vld [vmem:[%s1291 + $0x4] sm:$0xf]
      %v1296 = vunpack.c.l.b16 %v1292
      %v1297 = vunpack.c.l.b16 %v1293
      %v1298 = vpack.c.b16 %v1297, %v1296
      %v1301 = vunpack.c.l.b16 %v1286
      %v1302 = vunpack.c.l.b16 %v1287
      %v1303 = vpack.c.b16 %v1302, %v1301
      %v1306 = vsel %vm614, %v1298, 0
      %1308 = vmatprep.subr.bf16.mxu0 0
      %1309 = vmatpush1.bf16.msra.mxu0 0
      %1310 = vmatprep.subr.bf16.mxu0 0
      %1311 = vmatpush1.bf16.msra.mxu0 0
      %1312 = vmatprep.subr.bf16.mxu0 0
      %1313 = vmatpush1.bf16.msra.mxu0 0
      %1314 = vmatprep.subr.bf16.mxu0 0
      %1315 = vmatpush1.bf16.msra.mxu0 0
      %1316 = vmatprep.subr.bf16.mxu0 0
      %1317 = vmatpush1.bf16.msra.mxu0 0
      %1318 = vmatprep.subr.bf16.mxu0 0
      %1319 = vmatpush1.bf16.msra.mxu0 0
      %1320 = vmatprep.subr.bf16.mxu0 0
      %1321 = vmatpush1.bf16.msra.mxu0 0
      %1322 = vmatprep.subr.bf16.mxu0 0
      %1323 = vmatpush1.bf16.msra.mxu0 %v1303
      %1324 = vmatprep.subr.bf16.mxu0 0
      %1325 = vmatpush2.bf16.msra.mxu0 0
      %1326 = vmatprep.subr.bf16.mxu0 0
      %1327 = vmatpush2.bf16.msra.mxu0 0
      %1328 = vmatprep.subr.bf16.mxu0 0
      %1329 = vmatpush2.bf16.msra.mxu0 0
      %1330 = vmatprep.subr.bf16.mxu0 0
      %1331 = vmatpush2.bf16.msra.mxu0 0
      %1332 = vmatprep.subr.bf16.mxu0 0
      %1333 = vmatpush2.bf16.msra.mxu0 0
      %1334 = vmatprep.subr.bf16.mxu0 0
      %1335 = vmatpush2.bf16.msra.mxu0 0
      %1336 = vmatprep.subr.bf16.mxu0 0
      %1337 = vmatpush2.bf16.msra.mxu0 0
      %1338 = vmatprep.subr.bf16.mxu0 0
      %1339 = vmatpush2.bf16.msra.mxu0 0
      %1340 = vmatprep.mubr.bf16.mxu0 0
      %1341 = vmatmul.mubr.bf16.gmra.mxu0 %v1306
      %v1342 = vpop.f32.mrf.mxu0
      %v1343 = vadd.f32 0.0, %v1342
      %v1344 = vpop.f32.mrf.mxu0
      %v1345 = vpop.f32.mrf.mxu0
      %v1346 = vadd.f32 0.0, %v1345
      %v1347 = vpop.f32.mrf.mxu0
      %1348 = vdwg.mxu0
      %v1351 = vunpack.c.l.b16 %v1289
      %v1352 = vunpack.c.l.b16 %v1290
      %v1353 = vpack.c.b16 %v1352, %v1351
      %v1356 = vunpack.c.l.b16 %v1284
      %v1357 = vunpack.c.l.b16 %v1285
      %v1358 = vpack.c.b16 %v1357, %v1356
      %v1361 = vsel %vm614, %v1353, 0
      %1363 = vmatprep.subr.bf16.mxu0 0
      %1364 = vmatpush1.bf16.msra.mxu0 0
      %1365 = vmatprep.subr.bf16.mxu0 0
      %1366 = vmatpush1.bf16.msra.mxu0 0
      %1367 = vmatprep.subr.bf16.mxu0 0
      %1368 = vmatpush1.bf16.msra.mxu0 0
      %1369 = vmatprep.subr.bf16.mxu0 0
      %1370 = vmatpush1.bf16.msra.mxu0 0
      %1371 = vmatprep.subr.bf16.mxu0 0
      %1372 = vmatpush1.bf16.msra.mxu0 0
      %1373 = vmatprep.subr.bf16.mxu0 0
      %1374 = vmatpush1.bf16.msra.mxu0 0
      %1375 = vmatprep.subr.bf16.mxu0 0
      %1376 = vmatpush1.bf16.msra.mxu0 0
      %1377 = vmatprep.subr.bf16.mxu0 0
      %1378 = vmatpush1.bf16.msra.mxu0 %v1358
      %1379 = vmatprep.subr.bf16.mxu0 0
      %1380 = vmatpush2.bf16.msra.mxu0 0
      %1381 = vmatprep.subr.bf16.mxu0 0
      %1382 = vmatpush2.bf16.msra.mxu0 0
      %1383 = vmatprep.subr.bf16.mxu0 0
      %1384 = vmatpush2.bf16.msra.mxu0 0
      %1385 = vmatprep.subr.bf16.mxu0 0
      %1386 = vmatpush2.bf16.msra.mxu0 0
      %1387 = vmatprep.subr.bf16.mxu0 0
      %1388 = vmatpush2.bf16.msra.mxu0 0
      %1389 = vmatprep.subr.bf16.mxu0 0
      %1390 = vmatpush2.bf16.msra.mxu0 0
      %1391 = vmatprep.subr.bf16.mxu0 0
      %1392 = vmatpush2.bf16.msra.mxu0 0
      %1393 = vmatprep.subr.bf16.mxu0 0
      %1394 = vmatpush2.bf16.msra.mxu0 0
      %1395 = vmatprep.mubr.bf16.mxu0 0
      %1396 = vmatmul.mubr.bf16.gmra.mxu0 %v1361
      %v1397 = vpop.f32.mrf.mxu0
      %v1398 = vadd.f32 %v1343, %v1397
      %v1399 = vpop.f32.mrf.mxu0
      %v1400 = vpop.f32.mrf.mxu0
      %v1401 = vadd.f32 %v1346, %v1400
      %v1402 = vpop.f32.mrf.mxu0
      %1403 = vdwg.mxu0
      %v1404 = vadd.f32 %v1282, %v1398
      %v1405 = vadd.f32 %v1283, %v1401
      %s1406 = scalar_lea.vmem %s0, 56
      %v1407 = vld [vmem:[%s1406] sm:$0xf]
      %v1408 = vld [vmem:[%s1406 + $0x4] sm:$0xf]
      %s1409 = scalar_lea.vmem %s1, 56
      %v1410 = vld [vmem:[%s1409] sm:$0xf]
      %v1411 = vld [vmem:[%s1409 + $0x4] sm:$0xf]
      %v1414 = vunpack.c.l.b16 %v1410
      %v1415 = vunpack.c.l.b16 %v1411
      %v1416 = vpack.c.b16 %v1415, %v1414
      %1417 = vrot.lane.b32.xlu0 %v1303, 127
      %v1418 = vpop.permute.xlu0 %1417
      %v1421 = vsel %vm614, %v1416, 0
      %1423 = vmatprep.subr.bf16.mxu0 0
      %1424 = vmatpush1.bf16.msra.mxu0 0
      %1425 = vmatprep.subr.bf16.mxu0 0
      %1426 = vmatpush1.bf16.msra.mxu0 0
      %1427 = vmatprep.subr.bf16.mxu0 0
      %1428 = vmatpush1.bf16.msra.mxu0 0
      %1429 = vmatprep.subr.bf16.mxu0 0
      %1430 = vmatpush1.bf16.msra.mxu0 0
      %1431 = vmatprep.subr.bf16.mxu0 0
      %1432 = vmatpush1.bf16.msra.mxu0 0
      %1433 = vmatprep.subr.bf16.mxu0 0
      %1434 = vmatpush1.bf16.msra.mxu0 0
      %1435 = vmatprep.subr.bf16.mxu0 0
      %1436 = vmatpush1.bf16.msra.mxu0 0
      %1437 = vmatprep.subr.bf16.mxu0 0
      %1438 = vmatpush1.bf16.msra.mxu0 %v1418
      %1439 = vmatprep.subr.bf16.mxu0 0
      %1440 = vmatpush2.bf16.msra.mxu0 0
      %1441 = vmatprep.subr.bf16.mxu0 0
      %1442 = vmatpush2.bf16.msra.mxu0 0
      %1443 = vmatprep.subr.bf16.mxu0 0
      %1444 = vmatpush2.bf16.msra.mxu0 0
      %1445 = vmatprep.subr.bf16.mxu0 0
      %1446 = vmatpush2.bf16.msra.mxu0 0
      %1447 = vmatprep.subr.bf16.mxu0 0
      %1448 = vmatpush2.bf16.msra.mxu0 0
      %1449 = vmatprep.subr.bf16.mxu0 0
      %1450 = vmatpush2.bf16.msra.mxu0 0
      %1451 = vmatprep.subr.bf16.mxu0 0
      %1452 = vmatpush2.bf16.msra.mxu0 0
      %1453 = vmatprep.subr.bf16.mxu0 0
      %1454 = vmatpush2.bf16.msra.mxu0 0
      %1455 = vmatprep.mubr.bf16.mxu0 0
      %1456 = vmatmul.mubr.bf16.gmra.mxu0 %v1421
      %v1457 = vpop.f32.mrf.mxu0
      %v1458 = vadd.f32 0.0, %v1457
      %v1459 = vpop.f32.mrf.mxu0
      %v1460 = vpop.f32.mrf.mxu0
      %v1461 = vadd.f32 0.0, %v1460
      %v1462 = vpop.f32.mrf.mxu0
      %1463 = vdwg.mxu0
      %v1466 = vunpack.c.l.b16 %v1407
      %v1467 = vunpack.c.l.b16 %v1408
      %v1468 = vpack.c.b16 %v1467, %v1466
      %1469 = vrot.lane.b32.xlu0 %v1358, 127
      %v1470 = vpop.permute.xlu0 %1469
      %v1473 = vsel %vm614, %v1468, 0
      %1475 = vmatprep.subr.bf16.mxu0 0
      %1476 = vmatpush1.bf16.msra.mxu0 0
      %1477 = vmatprep.subr.bf16.mxu0 0
      %1478 = vmatpush1.bf16.msra.mxu0 0
      %1479 = vmatprep.subr.bf16.mxu0 0
      %1480 = vmatpush1.bf16.msra.mxu0 0
      %1481 = vmatprep.subr.bf16.mxu0 0
      %1482 = vmatpush1.bf16.msra.mxu0 0
      %1483 = vmatprep.subr.bf16.mxu0 0
      %1484 = vmatpush1.bf16.msra.mxu0 0
      %1485 = vmatprep.subr.bf16.mxu0 0
      %1486 = vmatpush1.bf16.msra.mxu0 0
      %1487 = vmatprep.subr.bf16.mxu0 0
      %1488 = vmatpush1.bf16.msra.mxu0 0
      %1489 = vmatprep.subr.bf16.mxu0 0
      %1490 = vmatpush1.bf16.msra.mxu0 %v1470
      %1491 = vmatprep.subr.bf16.mxu0 0
      %1492 = vmatpush2.bf16.msra.mxu0 0
      %1493 = vmatprep.subr.bf16.mxu0 0
      %1494 = vmatpush2.bf16.msra.mxu0 0
      %1495 = vmatprep.subr.bf16.mxu0 0
      %1496 = vmatpush2.bf16.msra.mxu0 0
      %1497 = vmatprep.subr.bf16.mxu0 0
      %1498 = vmatpush2.bf16.msra.mxu0 0
      %1499 = vmatprep.subr.bf16.mxu0 0
      %1500 = vmatpush2.bf16.msra.mxu0 0
      %1501 = vmatprep.subr.bf16.mxu0 0
      %1502 = vmatpush2.bf16.msra.mxu0 0
      %1503 = vmatprep.subr.bf16.mxu0 0
      %1504 = vmatpush2.bf16.msra.mxu0 0
      %1505 = vmatprep.subr.bf16.mxu0 0
      %1506 = vmatpush2.bf16.msra.mxu0 0
      %1507 = vmatprep.mubr.bf16.mxu0 0
      %1508 = vmatmul.mubr.bf16.gmra.mxu0 %v1473
      %v1509 = vpop.f32.mrf.mxu0
      %v1510 = vadd.f32 %v1458, %v1509
      %v1511 = vpop.f32.mrf.mxu0
      %v1512 = vpop.f32.mrf.mxu0
      %v1513 = vadd.f32 %v1461, %v1512
      %v1514 = vpop.f32.mrf.mxu0
      %1515 = vdwg.mxu0
      %v1516 = vadd.f32 %v1404, %v1510
      %v1517 = vadd.f32 %v1405, %v1513
      %s1518 = scalar_lea.vmem %s0, 64
      %v1519 = vld [vmem:[%s1518] sm:$0xf]
      %v1520 = vld [vmem:[%s1518 + $0x4] sm:$0xf]
      %s1521 = scalar_lea.vmem %s1, 64
      %v1522 = vld [vmem:[%s1521] sm:$0xf]
      %v1523 = vld [vmem:[%s1521 + $0x4] sm:$0xf]
      %v1526 = vunpack.c.l.b16 %v1522
      %v1527 = vunpack.c.l.b16 %v1523
      %v1528 = vpack.c.b16 %v1527, %v1526
      %1529 = vrot.lane.b32.xlu0 %v1303, 126
      %v1530 = vpop.permute.xlu0 %1529
      %v1533 = vsel %vm614, %v1528, 0
      %1535 = vmatprep.subr.bf16.mxu0 0
      %1536 = vmatpush1.bf16.msra.mxu0 0
      %1537 = vmatprep.subr.bf16.mxu0 0
      %1538 = vmatpush1.bf16.msra.mxu0 0
      %1539 = vmatprep.subr.bf16.mxu0 0
      %1540 = vmatpush1.bf16.msra.mxu0 0
      %1541 = vmatprep.subr.bf16.mxu0 0
      %1542 = vmatpush1.bf16.msra.mxu0 0
      %1543 = vmatprep.subr.bf16.mxu0 0
      %1544 = vmatpush1.bf16.msra.mxu0 0
      %1545 = vmatprep.subr.bf16.mxu0 0
      %1546 = vmatpush1.bf16.msra.mxu0 0
      %1547 = vmatprep.subr.bf16.mxu0 0
      %1548 = vmatpush1.bf16.msra.mxu0 0
      %1549 = vmatprep.subr.bf16.mxu0 0
      %1550 = vmatpush1.bf16.msra.mxu0 %v1530
      %1551 = vmatprep.subr.bf16.mxu0 0
      %1552 = vmatpush2.bf16.msra.mxu0 0
      %1553 = vmatprep.subr.bf16.mxu0 0
      %1554 = vmatpush2.bf16.msra.mxu0 0
      %1555 = vmatprep.subr.bf16.mxu0 0
      %1556 = vmatpush2.bf16.msra.mxu0 0
      %1557 = vmatprep.subr.bf16.mxu0 0
      %1558 = vmatpush2.bf16.msra.mxu0 0
      %1559 = vmatprep.subr.bf16.mxu0 0
      %1560 = vmatpush2.bf16.msra.mxu0 0
      %1561 = vmatprep.subr.bf16.mxu0 0
      %1562 = vmatpush2.bf16.msra.mxu0 0
      %1563 = vmatprep.subr.bf16.mxu0 0
      %1564 = vmatpush2.bf16.msra.mxu0 0
      %1565 = vmatprep.subr.bf16.mxu0 0
      %1566 = vmatpush2.bf16.msra.mxu0 0
      %1567 = vmatprep.mubr.bf16.mxu0 0
      %1568 = vmatmul.mubr.bf16.gmra.mxu0 %v1533
      %v1569 = vpop.f32.mrf.mxu0
      %v1570 = vadd.f32 0.0, %v1569
      %v1571 = vpop.f32.mrf.mxu0
      %v1572 = vpop.f32.mrf.mxu0
      %v1573 = vadd.f32 0.0, %v1572
      %v1574 = vpop.f32.mrf.mxu0
      %1575 = vdwg.mxu0
      %v1578 = vunpack.c.l.b16 %v1519
      %v1579 = vunpack.c.l.b16 %v1520
      %v1580 = vpack.c.b16 %v1579, %v1578
      %1581 = vrot.lane.b32.xlu0 %v1358, 126
      %v1582 = vpop.permute.xlu0 %1581
      %v1585 = vsel %vm614, %v1580, 0
      %1587 = vmatprep.subr.bf16.mxu0 0
      %1588 = vmatpush1.bf16.msra.mxu0 0
      %1589 = vmatprep.subr.bf16.mxu0 0
      %1590 = vmatpush1.bf16.msra.mxu0 0
      %1591 = vmatprep.subr.bf16.mxu0 0
      %1592 = vmatpush1.bf16.msra.mxu0 0
      %1593 = vmatprep.subr.bf16.mxu0 0
      %1594 = vmatpush1.bf16.msra.mxu0 0
      %1595 = vmatprep.subr.bf16.mxu0 0
      %1596 = vmatpush1.bf16.msra.mxu0 0
      %1597 = vmatprep.subr.bf16.mxu0 0
      %1598 = vmatpush1.bf16.msra.mxu0 0
      %1599 = vmatprep.subr.bf16.mxu0 0
      %1600 = vmatpush1.bf16.msra.mxu0 0
      %1601 = vmatprep.subr.bf16.mxu0 0
      %1602 = vmatpush1.bf16.msra.mxu0 %v1582
      %1603 = vmatprep.subr.bf16.mxu0 0
      %1604 = vmatpush2.bf16.msra.mxu0 0
      %1605 = vmatprep.subr.bf16.mxu0 0
      %1606 = vmatpush2.bf16.msra.mxu0 0
      %1607 = vmatprep.subr.bf16.mxu0 0
      %1608 = vmatpush2.bf16.msra.mxu0 0
      %1609 = vmatprep.subr.bf16.mxu0 0
      %1610 = vmatpush2.bf16.msra.mxu0 0
      %1611 = vmatprep.subr.bf16.mxu0 0
      %1612 = vmatpush2.bf16.msra.mxu0 0
      %1613 = vmatprep.subr.bf16.mxu0 0
      %1614 = vmatpush2.bf16.msra.mxu0 0
      %1615 = vmatprep.subr.bf16.mxu0 0
      %1616 = vmatpush2.bf16.msra.mxu0 0
      %1617 = vmatprep.subr.bf16.mxu0 0
      %1618 = vmatpush2.bf16.msra.mxu0 0
      %1619 = vmatprep.mubr.bf16.mxu0 0
      %1620 = vmatmul.mubr.bf16.gmra.mxu0 %v1585
      %v1621 = vpop.f32.mrf.mxu0
      %v1622 = vadd.f32 %v1570, %v1621
      %v1623 = vpop.f32.mrf.mxu0
      %v1624 = vpop.f32.mrf.mxu0
      %v1625 = vadd.f32 %v1573, %v1624
      %v1626 = vpop.f32.mrf.mxu0
      %1627 = vdwg.mxu0
      %v1628 = vadd.f32 %v1516, %v1622
      %v1629 = vadd.f32 %v1517, %v1625
      %v1630 = vld [vmem:[%s2] sm:$0xff]
      %v1631 = vld [vmem:[%s2 + $0x8] sm:$0xff]
      %1633 = vset.pattern.permute.xlu0 0
      %1634 = vperm.xlu0 %1633, %v1630
      %v1635 = vpop.permute.xlu0 %1634
      %1638 = vset.pattern.permute.xlu0 0
      %1639 = vperm.xlu0 %1638, %v1631
      %v1640 = vpop.permute.xlu0 %1639
      %v1642 = vmul.f32 %v1628, %v1635
      %v1643 = vmul.f32 %v1629, %v1640
      %v1644 = vld [vmem:[%s3] sm:$0xff]
      %v1645 = vld [vmem:[%s3 + $0x8] sm:$0xff]
      %1647 = vset.pattern.permute.xlu0 0
      %1648 = vperm.xlu0 %1647, %v1644
      %v1649 = vpop.permute.xlu0 %1648
      %1652 = vset.pattern.permute.xlu0 0
      %1653 = vperm.xlu0 %1652, %v1645
      %v1654 = vpop.permute.xlu0 %1653
      %v1656 = vadd.f32 %v1642, %v1649
      %v1657 = vadd.f32 %v1643, %v1654
      %v1658 = vmax.f32 %v1656, 0.0
      %v1659 = vmax.f32 %v1657, 0.0
      %vm1660 = vcmask 31744
      %1661 = vst.msk [vmem:[%s593] sm:$0xff] %vm1660, %v1658
      %1662 = vst.msk [vmem:[%s593 + $0x8] sm:$0xff] %vm1660, %v1659
      %p1663 = scmp.lt.s32.totalorder %s25, 1
      %s1664 = scalar_select %p1663, %s25, 1
      %p1665 = scmp.lt.s32.totalorder %s26, 3
      %s1666 = scalar_select %p1665, %s26, 3
      %s1667 = smul.addr %s1666, 2
      %s1668 = smul.addr %s1664, 8
      %s1669 = sadd.s32 %s1667, %s1668
      %s1670 = smul.addr %s1669, 8
      %s1671 = scalar_lea.vmem %s10, %s1670
      // Predicated region
      $region61: #{stem_block.7} parent=59 // pred_check
        %p1672 = pneg %p313
      $region62: #{stem_block.7} parent=59 // pred_check_branch
        %1674 = sbr.rel (%p1672) target = $region64
      $region63: #{stem_block.7} parent=59 // pred_region
        _
      $region64: #{stem_block.7} parent=59 // pred_fallthru
        _
    $region60: #{stem_block.7} parent=5 // pred_fallthru
      _
    %p1675 = scmp.le.s32.totalorder 2, %s16
    // Predicated region
    $region65: #{stem_block.7} parent=5 // pred_check
      %p1676 = pneg %p1675
    $region66: #{stem_block.7} parent=5 // pred_check_branch
      %1678 = sbr.rel (%p1676) target = $region68
    $region67: #{stem_block.7} parent=5 // pred_region
      %s1679 = ssub.s32 %s16, 2
      // Predicated region
      $region69: #{stem_block.7} parent=67 // pred_check
        %p1680 = pneg %p319
      $region70: #{stem_block.7} parent=67 // pred_check_branch
        %1682 = sbr.rel (%p1680) target = $region72
      $region71: #{stem_block.7} parent=67 // pred_region
        %p1683 = scmp.lt.s32.totalorder %s27, 1
        %s1684 = scalar_select %p1683, %s27, 1
        %p1685 = scmp.lt.s32.totalorder %s28, 3
        %s1686 = scalar_select %p1685, %s28, 3
        %s1687 = smul.addr %s1686, 2
        %s1688 = smul.addr %s1684, 8
        %s1689 = sadd.s32 %s1687, %s1688
        %s1690 = smul.addr %s1689, 8
        %s1691 = scalar_lea.vmem %s10, %s1690
      $region72: #{stem_block.7} parent=67 // pred_fallthru
        _
    $region68: #{stem_block.7} parent=5 // pred_fallthru
      _
  $region6: #{stem_block.7} parent=0 // loop_footer
    %s20 = sadd.s32 1, %s16
  $region7: #{stem_block.7} parent=0 // loop_footer_branch
    %15 = sbr.rel target = $region3
  $region8: #{stem_block.7} parent=0 // loop_exit
    _

</llo_original>
